<compile_context>
chip_gen: v7x
topology: tpu7x:2x2x1
jax: 0.10.0
libtpu: 0.0.40
codegen_flags: <defaults>
</compile_context>

<pallas_src>
import numpy as np

import jax
import jax.numpy as jnp
from jax.experimental import pallas as pl
from jax.experimental.pallas import tpu as pltpu

EPS = 1e-5                              # PyTorch BatchNorm1d default eps
HIGHEST = jax.lax.Precision.HIGHEST


# ------------------------------- fused kernel -------------------------------
#
# Activation layout: (rows, channels) with channels on the lane axis.
# Conv stride-2 + MaxPool(2) are handled by computing the conv output split by
# output-position parity (even / odd stacked along rows of one matmul) and
# taking the elementwise max of the two row-halves.
#
# Row ordering (set up by the wrapper):  h1 rows are grouped by
# (h1-position mod 4) [outer], then (g, r, b) [inner], where the conv2/pool2
# output position is q = 4r + g.  With that ordering every conv2 / conv3 tap
# slab is a contiguous row slice + lane concat -- no gathers, no strides.

def _simple_cnn_kernel(x1_ref, w1_ref, t1_ref,        # (96B,3), (3,32),  (1,32)
                       w2_ref, t2_ref,                # (96,64),          (1,64)
                       w3_ref, t3_ref,                # (192,128),        (1,128)
                       wf1_ref, bf1_ref,              # (384,128),        (1,128)
                       wf2_ref, bf2_ref,              # (1,128),          (1,1)
                       out_ref):                      # (B, 1)
    f32 = jnp.float32
    B = out_ref.shape[0]

    # ---------------- block 1: conv1 + BN1 (folded) + MaxPool1d(2) ----------
    # one matmul, M = 96B (48B even-parity rows stacked over 48B odd-parity)
    y1 = jnp.dot(x1_ref[...], w1_ref[...],
                 preferred_element_type=f32, precision=HIGHEST)       # (96B,32)
    n1 = 48 * B
    h1 = jnp.maximum(y1[:n1], y1[n1:]) + t1_ref[...]                  # (48B,32)

    # ---------------- block 2: conv2 + BN2 (folded) + MaxPool1d(2) ----------
    # h1 rows: [G0 | G1 | G2 | G3] blocks of 12B rows; G_s row (g,r,b) holds
    # h1[b, 16r + 4g + s].  Slab row (g,r,b) is conv2/pool2 position q = 4r+g.
    n2 = 12 * B
    G0 = h1[0 * n2:1 * n2]
    G1 = h1[1 * n2:2 * n2]
    G2 = h1[2 * n2:3 * n2]
    G3 = h1[3 * n2:4 * n2]
    # tap at h1 position 4q-1 (left pad -> zero block for q == 0)
    G3s = jnp.concatenate(
        [jnp.zeros((B, 32), f32), G3[9 * B:11 * B], G3[:9 * B]], axis=0)
    x2 = jnp.concatenate(
        [jnp.concatenate([G3s, G0, G1], axis=-1),     # even conv2 outputs (12B,96)
         jnp.concatenate([G1, G2, G3], axis=-1)],     # odd  conv2 outputs (12B,96)
        axis=0)                                       # (24B, 96)
    y2 = jnp.dot(x2, w2_ref[...],
                 preferred_element_type=f32, precision=HIGHEST)       # (24B,64)
    h2 = jnp.maximum(y2[:n2], y2[n2:]) + t2_ref[...]                  # (12B,64)

    # ---------------- block 3: conv3 + BN3 (folded) + MaxPool1d(2) ----------
    # h2 rows ordered (g, r, b) (q = 4r+g)  =>  H_g = contiguous 3B-row slice,
    # rows inside ordered (r, b).
    n3 = 3 * B
    H0 = h2[0 * n3:1 * n3]
    H1 = h2[1 * n3:2 * n3]
    H2 = h2[2 * n3:3 * n3]
    H3 = h2[3 * n3:4 * n3]
    H3s = jnp.concatenate([jnp.zeros((B, 64), f32), H3[:2 * B]], axis=0)
    x3 = jnp.concatenate(
        [jnp.concatenate([H3s, H0, H1], axis=-1),     # even conv3 outputs (3B,192)
         jnp.concatenate([H1, H2, H3], axis=-1)],     # odd  conv3 outputs (3B,192)
        axis=0)                                       # (6B, 192)
    y3 = jnp.dot(x3, w3_ref[...],
                 preferred_element_type=f32, precision=HIGHEST)       # (6B,128)
    h3 = jnp.maximum(y3[:n3], y3[n3:]) + t3_ref[...]                  # (3B,128)

    # ---------------- head: fc1 + ELU + fc2 + sigmoid ------------------------
    # h3 rows are (position l, batch b); lane-concat the 3 positions -> (B,384)
    xf = jnp.concatenate([h3[:B], h3[B:2 * B], h3[2 * B:]], axis=-1)   # (B,384)
    z = jnp.dot(xf, wf1_ref[...],
                preferred_element_type=f32, precision=HIGHEST) + bf1_ref[...]
    z = jnp.where(z > 0, z, jnp.exp(z) - 1.0)          # ELU(alpha=1)
    y = jnp.sum(z * wf2_ref[...], axis=-1, keepdims=True) + bf2_ref[...]
    out_ref[...] = 1.0 / (1.0 + jnp.exp(-y))           # sigmoid


# --------------------------- parameter preparation ---------------------------

def prepare_params(p):
    """One-time re-layout of the PyTorch parameters for the fused kernel."""
    prep = {}
    # eval-mode BN folded into per-channel scale s / shift t (conv bias included)
    s = {}
    for i, c in ((1, 32), (2, 64), (3, 128)):
        si = p[f'bn{i}_g'] / jnp.sqrt(p[f'bn{i}_v'] + EPS)
        ti = p[f'bn{i}_b'] + (p[f'conv{i}_b'] - p[f'bn{i}_m']) * si
        s[i] = si
        prep[f't{i}'] = ti.reshape(1, c)
    # conv weights (Cout, Cin, 3) -> tap-major (3*Cin, Cout), BN scale folded in.
    # Column layout matches the slab lanes: [tap k=0 chans | k=1 chans | k=2 chans]
    prep['w1s'] = jnp.transpose(p['conv1_w'], (2, 1, 0)).reshape(3, 32) * s[1][None, :]
    prep['w2c'] = jnp.transpose(p['conv2_w'], (2, 1, 0)).reshape(96, 64) * s[2][None, :]
    prep['w3c'] = jnp.transpose(p['conv3_w'], (2, 1, 0)).reshape(192, 128) * s[3][None, :]
    # fc1 consumes torch-flattened (channel-major) features of an NCW (B,128,3)
    # tensor; pre-permute so the kernel's [pos0 chans | pos1 | pos2] lane layout
    # works directly:  w1c[l*128 + c, n] = fc1_w[n, c*3 + l]
    prep['w1c'] = jnp.transpose(p['fc1_w'].reshape(128, 128, 3), (2, 1, 0)).reshape(384, 128)
    prep['b1'] = p['fc1_b'].reshape(1, 128)
    prep['w2r'] = p['fc2_w'].reshape(1, 128)
    prep['b2'] = p['fc2_b'].reshape(1, 1)
    return prep


# ------------------------------- forward pass --------------------------------

@jax.jit
def simple_cnn_forward(prep, x_ncl):
    """Fused Pallas forward for simpleCNN.  x_ncl: (B, 1, 200) float32 (NCW)."""
    B, cin, L = x_ncl.shape
    # fc1.in_features == 384 == 128 channels * 3  =>  L must be 200, Cin must be 1.
    assert cin == 1 and L == 200, (cin, L)
    xs = x_ncl[:, 0, :]                               # (B, 200)
    xp = jnp.pad(xs, ((0, 0), (1, 0)))                # xp[:, i+1] = x[:, i]; xp[:,0]=0

    # Static row ordering of the conv1 im2col slab (numpy, trace-time only).
    # h1 row t = s*12B + g*3B + r*B + b  holds pooled conv1 output at
    # position p = 16r + 4g + s of batch b.  Even half: conv1 output 2p,
    # odd half: conv1 output 2p+1.
    t = np.arange(48 * B)
    s_ = t // (12 * B)
    rem = t % (12 * B)
    g_ = rem // (3 * B)
    rem2 = rem % (3 * B)
    r_ = rem2 // B
    b_ = (rem2 % B).astype(np.int32)
    p_ = 16 * r_ + 4 * g_ + s_                        # h1 position, 0..47
    base = (4 * p_ + 1).astype(np.int32)              # xp-index of x[4p]
    col_e = np.stack([base - 1, base, base + 1], axis=-1).astype(np.int32)  # x[4p-1..4p+1]
    col_o = np.stack([base + 1, base + 2, base + 3], axis=-1).astype(np.int32)
    x1 = jnp.concatenate([xp[b_[:, None], col_e],
                          xp[b_[:, None], col_o]], axis=0)               # (96B, 3)

    vmem = pl.BlockSpec(memory_space=pltpu.MemorySpace.VMEM)
    args = (x1,
            prep['w1s'], prep['t1'],
            prep['w2c'], prep['t2'],
            prep['w3c'], prep['t3'],
            prep['w1c'], prep['b1'], prep['w2r'], prep['b2'])

    flops = 2 * (96 * B * 3 * 32 + 24 * B * 96 * 64 + 6 * B * 192 * 128
                 + B * 384 * 128 + B * 128)
    bytes_accessed = int(sum(int(a.size) * 4 for a in args) + B * 4)

    return pl.pallas_call(
        _simple_cnn_kernel,
        out_shape=jax.ShapeDtypeStruct((B, 1), jnp.float32),
        in_specs=[vmem] * len(args),
        out_specs=vmem,
        cost_estimate=pl.CostEstimate(flops=flops,
                                      transcendentals=B * 129,
                                      bytes_accessed=bytes_accessed),
    )(*args)


# --------------------------- reference (pure JAX) -----------------------------

def reference_forward(params, x):
    def conv(x, w, b):
        y = jax.lax.conv_general_dilated(
            x, w, window_strides=(2,), padding=[(1, 1)],
            dimension_numbers=('NCH', 'OIH', 'NCH'), precision=HIGHEST)
        return y + b[None, :, None]

    def bn(x, g, b, m, v):
        return (x - m[None, :, None]) / jnp.sqrt(v[None, :, None] + EPS) \
            * g[None, :, None] + b[None, :, None]

    def pool(x):
        B, C, L = x.shape
        L2 = L // 2
        return x[:, :, :2 * L2].reshape(B, C, L2, 2).max(-1)

    h = x
    for i in (1, 2, 3):
        h = pool(bn(conv(h, params[f'conv{i}_w'], params[f'conv{i}_b']),
                    params[f'bn{i}_g'], params[f'bn{i}_b'],
                    params[f'bn{i}_m'], params[f'bn{i}_v']))
    h = h.reshape(h.shape[0], -1)
    h = h @ params['fc1_w'].T + params['fc1_b']
    h = jnp.where(h > 0, h, jnp.expm1(h))
    h = h @ params['fc2_w'].T + params['fc2_b']
    return jax.nn.sigmoid(h)


# --------------------------- deterministic params -----------------------------

def init_params(key):
    ks = jax.random.split(key, 32)
    ki = iter(range(32))

    def nrm(shape, scale=0.1):
        return scale * jax.random.normal(ks[next(ki)], shape, dtype=jnp.float32)

    p = {}
    for li, (cin, cout) in enumerate([(1, 32), (32, 64), (64, 128)], start=1):
        p[f'conv{li}_w'] = nrm((cout, cin, 3))
        p[f'conv{li}_b'] = nrm((cout,))
        p[f'bn{li}_g'] = 1.0 + nrm((cout,))
        p[f'bn{li}_b'] = nrm((cout,))
        p[f'bn{li}_m'] = nrm((cout,))
        p[f'bn{li}_v'] = jax.random.uniform(ks[next(ki)], (cout,),
                                            minval=0.5, maxval=1.5,
                                            dtype=jnp.float32)
    p['fc1_w'] = nrm((128, 384), 0.05)   # PyTorch Linear weight: (out, in)
    p['fc1_b'] = nrm((128,))
    p['fc2_w'] = nrm((1, 128), 0.05)
    p['fc2_b'] = nrm((1,))
    return p


if __name__ == "__main__":
    key = jax.random.PRNGKey(0)
    pkey, xkey = jax.random.split(key)
    params = init_params(pkey)
    prep = prepare_params(params)

    # Input length 200 is implied by fc1.in_features == 384 (= 128 channels * 3).
    x = jax.random.normal(xkey, (2, 1, 200), dtype=jnp.float32)

    out = jax.block_until_ready(simple_cnn_forward(prep, x))
    ref = jax.block_until_ready(reference_forward(params, x))

    assert out.shape == (2, 1), out.shape
    # precision=HIGHEST on all matmuls -> expected deviation vs the f32
    # reference is O(1e-6) on sigmoid outputs (ELU uses exp(z)-1 vs expm1).
    max_err = float(jnp.max(jnp.abs(out - ref)))
    assert max_err < 1e-3, f"mismatch vs pure-JAX reference: {max_err}"
    print("KERNEL_OK")
</pallas_src>

<mosaic_0001>
module attributes {stable_mosaic.version = 11 : i64} {
  func.func @_simple_cnn_kernel(%arg0: memref<192x3xf32, #tpu.memory_space<vmem>>, %arg1: memref<3x32xf32, #tpu.memory_space<vmem>>, %arg2: memref<1x32xf32, #tpu.memory_space<vmem>>, %arg3: memref<96x64xf32, #tpu.memory_space<vmem>>, %arg4: memref<1x64xf32, #tpu.memory_space<vmem>>, %arg5: memref<192x128xf32, #tpu.memory_space<vmem>>, %arg6: memref<1x128xf32, #tpu.memory_space<vmem>>, %arg7: memref<384x128xf32, #tpu.memory_space<vmem>>, %arg8: memref<1x128xf32, #tpu.memory_space<vmem>>, %arg9: memref<1x128xf32, #tpu.memory_space<vmem>>, %arg10: memref<1x1xf32, #tpu.memory_space<vmem>>, %arg11: memref<2x1xf32, #tpu.memory_space<vmem>>) attributes {dimension_semantics = [], scalar_prefetch = 0 : i64, scratch_operands = 0 : i64, tpu.core_type = #tpu.core_type<tc>} {
    %c0 = arith.constant 0 : index
    %c0_0 = arith.constant 0 : index
    %0 = vector.load %arg0[%c0, %c0_0] : memref<192x3xf32, #tpu.memory_space<vmem>>, vector<192x3xf32>
    %c0_1 = arith.constant 0 : index
    %c0_2 = arith.constant 0 : index
    %1 = vector.load %arg1[%c0_1, %c0_2] : memref<3x32xf32, #tpu.memory_space<vmem>>, vector<3x32xf32>
    %cst = arith.constant dense<0.000000e+00> : vector<192x32xf32>
    %2 = tpu.matmul %0, %1, %cst {dimension_numbers = #tpu.dot_dimension_numbers<[1], [0], [0], [1], [0, 0, 1, 1], [], []>, precision = #tpu.contract_precision<fp32>} : vector<192x3xf32>, vector<3x32xf32>, vector<192x32xf32> -> vector<192x32xf32>
    %3 = vector.extract_strided_slice %2 {offsets = [0, 0], sizes = [96, 32], strides = [1, 1]} : vector<192x32xf32> to vector<96x32xf32>
    %4 = vector.extract_strided_slice %2 {offsets = [96, 0], sizes = [96, 32], strides = [1, 1]} : vector<192x32xf32> to vector<96x32xf32>
    %5 = arith.maximumf %3, %4 : vector<96x32xf32>
    %c0_3 = arith.constant 0 : index
    %c0_4 = arith.constant 0 : index
    %6 = vector.load %arg2[%c0_3, %c0_4] : memref<1x32xf32, #tpu.memory_space<vmem>>, vector<1x32xf32>
    %7 = vector.broadcast %6 : vector<1x32xf32> to vector<96x32xf32>
    %8 = arith.addf %5, %7 : vector<96x32xf32>
    %9 = vector.extract_strided_slice %8 {offsets = [0, 0], sizes = [24, 32], strides = [1, 1]} : vector<96x32xf32> to vector<24x32xf32>
    %10 = vector.extract_strided_slice %8 {offsets = [24, 0], sizes = [24, 32], strides = [1, 1]} : vector<96x32xf32> to vector<24x32xf32>
    %11 = vector.extract_strided_slice %8 {offsets = [48, 0], sizes = [24, 32], strides = [1, 1]} : vector<96x32xf32> to vector<24x32xf32>
    %12 = vector.extract_strided_slice %8 {offsets = [72, 0], sizes = [24, 32], strides = [1, 1]} : vector<96x32xf32> to vector<24x32xf32>
    %cst_5 = arith.constant 0.000000e+00 : f32
    %13 = vector.broadcast %cst_5 : f32 to vector<2x32xf32>
    %14 = vector.extract_strided_slice %12 {offsets = [18, 0], sizes = [4, 32], strides = [1, 1]} : vector<24x32xf32> to vector<4x32xf32>
    %15 = vector.extract_strided_slice %12 {offsets = [0, 0], sizes = [18, 32], strides = [1, 1]} : vector<24x32xf32> to vector<18x32xf32>
    %16 = tpu.concatenate %13, %14, %15 in 0 : vector<2x32xf32>, vector<4x32xf32>, vector<18x32xf32> -> vector<24x32xf32>
    %17 = tpu.concatenate %16, %9, %10 in 1 : vector<24x32xf32>, vector<24x32xf32>, vector<24x32xf32> -> vector<24x96xf32>
    %18 = tpu.concatenate %10, %11, %12 in 1 : vector<24x32xf32>, vector<24x32xf32>, vector<24x32xf32> -> vector<24x96xf32>
    %19 = tpu.concatenate %17, %18 in 0 : vector<24x96xf32>, vector<24x96xf32> -> vector<48x96xf32>
    %c0_6 = arith.constant 0 : index
    %c0_7 = arith.constant 0 : index
    %20 = vector.load %arg3[%c0_6, %c0_7] : memref<96x64xf32, #tpu.memory_space<vmem>>, vector<96x64xf32>
    %cst_8 = arith.constant dense<0.000000e+00> : vector<48x64xf32>
    %21 = tpu.matmul %19, %20, %cst_8 {dimension_numbers = #tpu.dot_dimension_numbers<[1], [0], [0], [1], [0, 0, 1, 1], [], []>, precision = #tpu.contract_precision<fp32>} : vector<48x96xf32>, vector<96x64xf32>, vector<48x64xf32> -> vector<48x64xf32>
    %22 = vector.extract_strided_slice %21 {offsets = [0, 0], sizes = [24, 64], strides = [1, 1]} : vector<48x64xf32> to vector<24x64xf32>
    %23 = vector.extract_strided_slice %21 {offsets = [24, 0], sizes = [24, 64], strides = [1, 1]} : vector<48x64xf32> to vector<24x64xf32>
    %24 = arith.maximumf %22, %23 : vector<24x64xf32>
    %c0_9 = arith.constant 0 : index
    %c0_10 = arith.constant 0 : index
    %25 = vector.load %arg4[%c0_9, %c0_10] : memref<1x64xf32, #tpu.memory_space<vmem>>, vector<1x64xf32>
    %26 = vector.broadcast %25 : vector<1x64xf32> to vector<24x64xf32>
    %27 = arith.addf %24, %26 : vector<24x64xf32>
    %28 = vector.extract_strided_slice %27 {offsets = [0, 0], sizes = [6, 64], strides = [1, 1]} : vector<24x64xf32> to vector<6x64xf32>
    %29 = vector.extract_strided_slice %27 {offsets = [6, 0], sizes = [6, 64], strides = [1, 1]} : vector<24x64xf32> to vector<6x64xf32>
    %30 = vector.extract_strided_slice %27 {offsets = [12, 0], sizes = [6, 64], strides = [1, 1]} : vector<24x64xf32> to vector<6x64xf32>
    %31 = vector.extract_strided_slice %27 {offsets = [18, 0], sizes = [6, 64], strides = [1, 1]} : vector<24x64xf32> to vector<6x64xf32>
    %cst_11 = arith.constant 0.000000e+00 : f32
    %32 = vector.broadcast %cst_11 : f32 to vector<2x64xf32>
    %33 = vector.extract_strided_slice %31 {offsets = [0, 0], sizes = [4, 64], strides = [1, 1]} : vector<6x64xf32> to vector<4x64xf32>
    %34 = tpu.concatenate %32, %33 in 0 : vector<2x64xf32>, vector<4x64xf32> -> vector<6x64xf32>
    %35 = tpu.concatenate %34, %28, %29 in 1 : vector<6x64xf32>, vector<6x64xf32>, vector<6x64xf32> -> vector<6x192xf32>
    %36 = tpu.concatenate %29, %30, %31 in 1 : vector<6x64xf32>, vector<6x64xf32>, vector<6x64xf32> -> vector<6x192xf32>
    %37 = tpu.concatenate %35, %36 in 0 : vector<6x192xf32>, vector<6x192xf32> -> vector<12x192xf32>
    %c0_12 = arith.constant 0 : index
    %c0_13 = arith.constant 0 : index
    %38 = vector.load %arg5[%c0_12, %c0_13] : memref<192x128xf32, #tpu.memory_space<vmem>>, vector<192x128xf32>
    %cst_14 = arith.constant dense<0.000000e+00> : vector<12x128xf32>
    %39 = tpu.matmul %37, %38, %cst_14 {dimension_numbers = #tpu.dot_dimension_numbers<[1], [0], [0], [1], [0, 0, 1, 1], [], []>, precision = #tpu.contract_precision<fp32>} : vector<12x192xf32>, vector<192x128xf32>, vector<12x128xf32> -> vector<12x128xf32>
    %40 = vector.extract_strided_slice %39 {offsets = [0, 0], sizes = [6, 128], strides = [1, 1]} : vector<12x128xf32> to vector<6x128xf32>
    %41 = vector.extract_strided_slice %39 {offsets = [6, 0], sizes = [6, 128], strides = [1, 1]} : vector<12x128xf32> to vector<6x128xf32>
    %42 = arith.maximumf %40, %41 : vector<6x128xf32>
    %c0_15 = arith.constant 0 : index
    %c0_16 = arith.constant 0 : index
    %43 = vector.load %arg6[%c0_15, %c0_16] : memref<1x128xf32, #tpu.memory_space<vmem>>, vector<1x128xf32>
    %44 = vector.broadcast %43 : vector<1x128xf32> to vector<6x128xf32>
    %45 = arith.addf %42, %44 : vector<6x128xf32>
    %46 = vector.extract_strided_slice %45 {offsets = [0, 0], sizes = [2, 128], strides = [1, 1]} : vector<6x128xf32> to vector<2x128xf32>
    %47 = vector.extract_strided_slice %45 {offsets = [2, 0], sizes = [2, 128], strides = [1, 1]} : vector<6x128xf32> to vector<2x128xf32>
    %48 = vector.extract_strided_slice %45 {offsets = [4, 0], sizes = [2, 128], strides = [1, 1]} : vector<6x128xf32> to vector<2x128xf32>
    %49 = tpu.concatenate %46, %47, %48 in 1 : vector<2x128xf32>, vector<2x128xf32>, vector<2x128xf32> -> vector<2x384xf32>
    %c0_17 = arith.constant 0 : index
    %c0_18 = arith.constant 0 : index
    %50 = vector.load %arg7[%c0_17, %c0_18] : memref<384x128xf32, #tpu.memory_space<vmem>>, vector<384x128xf32>
    %cst_19 = arith.constant dense<0.000000e+00> : vector<2x128xf32>
    %51 = tpu.matmul %49, %50, %cst_19 {dimension_numbers = #tpu.dot_dimension_numbers<[1], [0], [0], [1], [0, 0, 1, 1], [], []>, precision = #tpu.contract_precision<fp32>} : vector<2x384xf32>, vector<384x128xf32>, vector<2x128xf32> -> vector<2x128xf32>
    %c0_20 = arith.constant 0 : index
    %c0_21 = arith.constant 0 : index
    %52 = vector.load %arg8[%c0_20, %c0_21] : memref<1x128xf32, #tpu.memory_space<vmem>>, vector<1x128xf32>
    %53 = vector.broadcast %52 : vector<1x128xf32> to vector<2x128xf32>
    %54 = arith.addf %51, %53 : vector<2x128xf32>
    %cst_22 = arith.constant 0.000000e+00 : f32
    %55 = vector.broadcast %cst_22 : f32 to vector<2x128xf32>
    %56 = arith.cmpf ogt, %54, %55 : vector<2x128xf32>
    %57 = math.exp %54 : vector<2x128xf32>
    %cst_23 = arith.constant 1.000000e+00 : f32
    %58 = vector.broadcast %cst_23 : f32 to vector<2x128xf32>
    %59 = arith.subf %57, %58 : vector<2x128xf32>
    %60 = arith.select %56, %54, %59 : vector<2x128xi1>, vector<2x128xf32>
    %c0_24 = arith.constant 0 : index
    %c0_25 = arith.constant 0 : index
    %61 = vector.load %arg9[%c0_24, %c0_25] : memref<1x128xf32, #tpu.memory_space<vmem>>, vector<1x128xf32>
    %62 = vector.broadcast %61 : vector<1x128xf32> to vector<2x128xf32>
    %63 = arith.mulf %60, %62 : vector<2x128xf32>
    %cst_26 = arith.constant dense<0.000000e+00> : vector<2xf32>
    %64 = vector.multi_reduction <add>, %63, %cst_26 [1] : vector<2x128xf32> to vector<2xf32>
    %65 = vector.shape_cast %64 : vector<2xf32> to vector<2x1xf32>
    %c0_27 = arith.constant 0 : index
    %c0_28 = arith.constant 0 : index
    %66 = vector.load %arg10[%c0_27, %c0_28] : memref<1x1xf32, #tpu.memory_space<vmem>>, vector<1x1xf32>
    %67 = vector.broadcast %66 : vector<1x1xf32> to vector<2x1xf32>
    %68 = arith.addf %65, %67 : vector<2x1xf32>
    %cst_29 = arith.constant 0.000000e+00 : f32
    %69 = vector.broadcast %cst_29 : f32 to vector<2x1xf32>
    %70 = arith.subf %69, %68 : vector<2x1xf32>
    %71 = math.exp %70 : vector<2x1xf32>
    %cst_30 = arith.constant 1.000000e+00 : f32
    %72 = vector.broadcast %cst_30 : f32 to vector<2x1xf32>
    %73 = arith.addf %72, %71 : vector<2x1xf32>
    %cst_31 = arith.constant 1.000000e+00 : f32
    %74 = vector.broadcast %cst_31 : f32 to vector<2x1xf32>
    %75 = arith.divf %74, %73 : vector<2x1xf32>
    %c0_32 = arith.constant 0 : index
    %c0_33 = arith.constant 0 : index
    %76 = vector.load %arg11[%c0_32, %c0_33] : memref<2x1xf32, #tpu.memory_space<vmem>>, vector<2x1xf32>
    tpu.vector_store %arg11[%c0_32, %c0_33], %75 {strides = array<i32>} : memref<2x1xf32, #tpu.memory_space<vmem>>, vector<2x1xf32>,
    return
  }
}

</mosaic_0001>

<llo_original>
// kernel: simple_cnn_forward.1
$region0: #{simple_cnn_forward.1}
  #allocation0 [shape = 'u32[]', space=smem, size = 0x4, offset = 0x4, fixed_abs, tag = 'smem constant byte address 0x4 - core index']
  #allocation1 [shape = 'u32[144,128]{1,0:T(1,128)}', space=vmem, size = 0x12000, scoped, tag = 'internal scratch']
  #allocation2 [shape = 'f32[1,1]{1,0:T(1,128)S(1)}', space=vmem, size = 0x200, scoped, tag = 'scoped memory for simple_cnn_forward.1']
  %s0 = inlined_call_operand.vmem [shape: f32[192,3], index: 0, kind: input, shape index: {}]
  %s1 = inlined_call_operand.vmem [shape: f32[3,32], index: 1, kind: input, shape index: {}]
  %s2 = inlined_call_operand.vmem [shape: f32[1,32], index: 2, kind: input, shape index: {}]
  %s3 = inlined_call_operand.vmem [shape: f32[96,64], index: 3, kind: input, shape index: {}]
  %s4 = inlined_call_operand.vmem [shape: f32[1,64], index: 4, kind: input, shape index: {}]
  %s5 = inlined_call_operand.vmem [shape: f32[192,128], index: 5, kind: input, shape index: {}]
  %s6 = inlined_call_operand.vmem [shape: f32[1,128], index: 6, kind: input, shape index: {}]
  %s7 = inlined_call_operand.vmem [shape: f32[384,128], index: 7, kind: input, shape index: {}]
  %s8 = inlined_call_operand.vmem [shape: f32[1,128], index: 8, kind: input, shape index: {}]
  %s9 = inlined_call_operand.vmem [shape: f32[1,128], index: 9, kind: input, shape index: {}]
  %s10 = inlined_call_operand.<no memory space> [shape: f32[1,1], index: 10, kind: input, shape index: {}]
  %s11 = inlined_call_operand.vmem [shape: f32[2,1], index: 11, kind: output, shape index: {}]
  %s12 = sld [smem:[#allocation0]]
  $region54: #{simple_cnn_forward.1} parent=0
    _
  %s14 = ssub.s32 1, %s12
  %s15 = scalar_select 0, %s14, %s12
  %v16 = vstv %s10
  %17 = vst [vmem:[#allocation2] sm:$0x1] %v16
  // Predicated region
  $region2: #{simple_cnn_forward.1} parent=0 // pred_check
    _
  $region3: #{simple_cnn_forward.1} parent=0 // pred_check_branch
    %19 = sbr.rel (0) target = $region5
  $region4: #{simple_cnn_forward.1} parent=0 // pred_region
    _
  $region5: #{simple_cnn_forward.1} parent=0 // pred_fallthru
    _
  // Predicated region
  $region6: #{simple_cnn_forward.1} parent=0 // pred_check
    _
  $region7: #{simple_cnn_forward.1} parent=0 // pred_check_branch
    %21 = sbr.rel (0) target = $region9
  $region8: #{simple_cnn_forward.1} parent=0 // pred_region
    _
  $region9: #{simple_cnn_forward.1} parent=0 // pred_fallthru
    _
  // Predicated region
  $region10: #{simple_cnn_forward.1} parent=0 // pred_check
    _
  $region11: #{simple_cnn_forward.1} parent=0 // pred_check_branch
    %23 = sbr.rel (0) target = $region13
  $region12: #{simple_cnn_forward.1} parent=0 // pred_region
    _
  $region13: #{simple_cnn_forward.1} parent=0 // pred_fallthru
    _
  // Predicated region
  $region14: #{simple_cnn_forward.1} parent=0 // pred_check
    _
  $region15: #{simple_cnn_forward.1} parent=0 // pred_check_branch
    %25 = sbr.rel (0) target = $region17
  $region16: #{simple_cnn_forward.1} parent=0 // pred_region
    _
  $region17: #{simple_cnn_forward.1} parent=0 // pred_fallthru
    _
  // Predicated region
  $region18: #{simple_cnn_forward.1} parent=0 // pred_check
    _
  $region19: #{simple_cnn_forward.1} parent=0 // pred_check_branch
    %27 = sbr.rel (0) target = $region21
  $region20: #{simple_cnn_forward.1} parent=0 // pred_region
    _
  $region21: #{simple_cnn_forward.1} parent=0 // pred_fallthru
    _
  // Predicated region
  $region22: #{simple_cnn_forward.1} parent=0 // pred_check
    _
  $region23: #{simple_cnn_forward.1} parent=0 // pred_check_branch
    %29 = sbr.rel (0) target = $region25
  $region24: #{simple_cnn_forward.1} parent=0 // pred_region
    _
  $region25: #{simple_cnn_forward.1} parent=0 // pred_fallthru
    _
  // Predicated region
  $region26: #{simple_cnn_forward.1} parent=0 // pred_check
    _
  $region27: #{simple_cnn_forward.1} parent=0 // pred_check_branch
    %31 = sbr.rel (0) target = $region29
  $region28: #{simple_cnn_forward.1} parent=0 // pred_region
    _
  $region29: #{simple_cnn_forward.1} parent=0 // pred_fallthru
    _
  // Predicated region
  $region30: #{simple_cnn_forward.1} parent=0 // pred_check
    _
  $region31: #{simple_cnn_forward.1} parent=0 // pred_check_branch
    %33 = sbr.rel (0) target = $region33
  $region32: #{simple_cnn_forward.1} parent=0 // pred_region
    _
  $region33: #{simple_cnn_forward.1} parent=0 // pred_fallthru
    _
  // Predicated region
  $region34: #{simple_cnn_forward.1} parent=0 // pred_check
    _
  $region35: #{simple_cnn_forward.1} parent=0 // pred_check_branch
    %35 = sbr.rel (0) target = $region37
  $region36: #{simple_cnn_forward.1} parent=0 // pred_region
    _
  $region37: #{simple_cnn_forward.1} parent=0 // pred_fallthru
    _
  // Predicated region
  $region38: #{simple_cnn_forward.1} parent=0 // pred_check
    _
  $region39: #{simple_cnn_forward.1} parent=0 // pred_check_branch
    %37 = sbr.rel (0) target = $region41
  $region40: #{simple_cnn_forward.1} parent=0 // pred_region
    _
  $region41: #{simple_cnn_forward.1} parent=0 // pred_fallthru
    _
  // Predicated region
  $region42: #{simple_cnn_forward.1} parent=0 // pred_check
    _
  $region43: #{simple_cnn_forward.1} parent=0 // pred_check_branch
    %39 = sbr.rel (0) target = $region45
  $region44: #{simple_cnn_forward.1} parent=0 // pred_region
    _
  $region45: #{simple_cnn_forward.1} parent=0 // pred_fallthru
    _
  %v40 = vld [vmem:[%s0] sm:$0xff]
  %v41 = vld [vmem:[%s0 + $0x8] sm:$0xff]
  %v42 = vld [vmem:[%s0 + $0x10] sm:$0xff]
  %v43 = vld [vmem:[%s0 + $0x18] sm:$0xff]
  %v44 = vld [vmem:[%s0 + $0x20] sm:$0xff]
  %v45 = vld [vmem:[%s0 + $0x28] sm:$0xff]
  %v46 = vld [vmem:[%s0 + $0x30] sm:$0xff]
  %v47 = vld [vmem:[%s0 + $0x38] sm:$0xff]
  %v48 = vld [vmem:[%s0 + $0x40] sm:$0xff]
  %v49 = vld [vmem:[%s0 + $0x48] sm:$0xff]
  %v50 = vld [vmem:[%s0 + $0x50] sm:$0xff]
  %v51 = vld [vmem:[%s0 + $0x58] sm:$0xff]
  %v52 = vld [vmem:[%s0 + $0x60] sm:$0xff]
  %v53 = vld [vmem:[%s0 + $0x68] sm:$0xff]
  %v54 = vld [vmem:[%s0 + $0x70] sm:$0xff]
  %v55 = vld [vmem:[%s0 + $0x78] sm:$0xff]
  %v56 = vld [vmem:[%s0 + $0x80] sm:$0xff]
  %v57 = vld [vmem:[%s0 + $0x88] sm:$0xff]
  %v58 = vld [vmem:[%s0 + $0x90] sm:$0xff]
  %v59 = vld [vmem:[%s0 + $0x98] sm:$0xff]
  %v60 = vld [vmem:[%s0 + $0xa0] sm:$0xff]
  %v61 = vld [vmem:[%s0 + $0xa8] sm:$0xff]
  %v62 = vld [vmem:[%s0 + $0xb0] sm:$0xff]
  %v63 = vld [vmem:[%s0 + $0xb8] sm:$0xff]
  %v64 = vld [vmem:[%s1] sm:$0x7]
  %vm65 = vcmask 23552
  %v67 = vsel %vm65, %v40, 0
  %v70 = vsel %vm65, %v41, 0
  %v73 = vsel %vm65, %v42, 0
  %v76 = vsel %vm65, %v43, 0
  %v79 = vsel %vm65, %v44, 0
  %v82 = vsel %vm65, %v45, 0
  %v85 = vsel %vm65, %v46, 0
  %v88 = vsel %vm65, %v47, 0
  %v91 = vsel %vm65, %v48, 0
  %v94 = vsel %vm65, %v49, 0
  %v97 = vsel %vm65, %v50, 0
  %v100 = vsel %vm65, %v51, 0
  %v103 = vsel %vm65, %v52, 0
  %v106 = vsel %vm65, %v53, 0
  %v109 = vsel %vm65, %v54, 0
  %v112 = vsel %vm65, %v55, 0
  %v115 = vsel %vm65, %v56, 0
  %v118 = vsel %vm65, %v57, 0
  %v121 = vsel %vm65, %v58, 0
  %v124 = vsel %vm65, %v59, 0
  %v127 = vsel %vm65, %v60, 0
  %v130 = vsel %vm65, %v61, 0
  %v133 = vsel %vm65, %v62, 0
  %v136 = vsel %vm65, %v63, 0
  %vm138 = vcmask 1042432
  %v140 = vsel %vm138, %v64, 0
  %142 = vmatprep.subr.mxu0 0.0
  %v143 = vand.u32 %v140, 4294901760
  %144 = vmatpush1.msra.mxu0 %v143
  %145 = vmatprep.subr.mxu0 0.0
  %146 = vmatpush1.msra.mxu0 0.0
  %147 = vmatprep.subr.mxu0 0.0
  %148 = vmatpush1.msra.mxu0 0.0
  %149 = vmatprep.subr.mxu0 0.0
  %150 = vmatpush1.msra.mxu0 0.0
  %151 = vmatprep.subr.mxu0 0.0
  %152 = vmatpush1.msra.mxu0 0.0
  %153 = vmatprep.subr.mxu0 0.0
  %154 = vmatpush1.msra.mxu0 0.0
  %155 = vmatprep.subr.mxu0 0.0
  %156 = vmatpush1.msra.mxu0 0.0
  %157 = vmatprep.subr.mxu0 0.0
  %158 = vmatpush1.msra.mxu0 0.0
  %159 = vmatprep.subr.mxu0 0.0
  %160 = vmatpush1.msra.mxu0 0.0
  %161 = vmatprep.subr.mxu0 0.0
  %162 = vmatpush1.msra.mxu0 0.0
  %163 = vmatprep.subr.mxu0 0.0
  %164 = vmatpush1.msra.mxu0 0.0
  %165 = vmatprep.subr.mxu0 0.0
  %166 = vmatpush1.msra.mxu0 0.0
  %167 = vmatprep.subr.mxu0 0.0
  %168 = vmatpush1.msra.mxu0 0.0
  %169 = vmatprep.subr.mxu0 0.0
  %170 = vmatpush1.msra.mxu0 0.0
  %171 = vmatprep.subr.mxu0 0.0
  %172 = vmatpush1.msra.mxu0 0.0
  %173 = vmatprep.subr.mxu0 0.0
  %174 = vmatpush1.msra.mxu0 0.0
  %175 = vmatprep.subr.mxu0 0.0
  %176 = vmatpush1.msra.mxu0 0.0
  %177 = vmatprep.subr.mxu0 0.0
  %178 = vmatpush1.msra.mxu0 0.0
  %179 = vmatprep.subr.mxu0 0.0
  %180 = vmatpush1.msra.mxu0 0.0
  %181 = vmatprep.subr.mxu0 0.0
  %182 = vmatpush1.msra.mxu0 0.0
  %183 = vmatprep.subr.mxu0 0.0
  %184 = vmatpush1.msra.mxu0 0.0
  %185 = vmatprep.subr.mxu0 0.0
  %186 = vmatpush1.msra.mxu0 0.0
  %187 = vmatprep.subr.mxu0 0.0
  %188 = vmatpush1.msra.mxu0 0.0
  %189 = vmatprep.subr.mxu0 0.0
  %190 = vmatpush1.msra.mxu0 0.0
  %191 = vmatprep.subr.mxu0 0.0
  %192 = vmatpush1.msra.mxu0 0.0
  %193 = vmatprep.subr.mxu0 0.0
  %194 = vmatpush1.msra.mxu0 0.0
  %195 = vmatprep.subr.mxu0 0.0
  %196 = vmatpush1.msra.mxu0 0.0
  %197 = vmatprep.subr.mxu0 0.0
  %198 = vmatpush1.msra.mxu0 0.0
  %199 = vmatprep.subr.mxu0 0.0
  %200 = vmatpush1.msra.mxu0 0.0
  %201 = vmatprep.subr.mxu0 0.0
  %202 = vmatpush1.msra.mxu0 0.0
  %203 = vmatprep.subr.mxu0 0.0
  %204 = vmatpush1.msra.mxu0 0.0
  %205 = vmatprep.subr.mxu0 0.0
  %206 = vmatpush1.msra.mxu0 0.0
  %207 = vmatprep.mubr.f32.mxu0 0.0
  %v208 = vand.u32 %v67, 4294901760
  %v209 = vsub.f32 %v67, %v208
  %v210 = vand.u32 %v209, 4294901760
  %v211 = vsub.f32 %v209, %v210
  %v212 = vand.u32 %v211, 4294901760
  %213 = vmatmul.mubr.f32.gmra.mrb[0].mxu0 %v212
  %v214 = vpop.f32.mrb[0].mxu0
  %v215 = vadd.f32 0.0, %v214
  %v216 = vpop.f32.mrb[0].mxu0
  %217 = vmatprep.mubr.f32.mxu0 0.0
  %v218 = vand.u32 %v70, 4294901760
  %v219 = vsub.f32 %v70, %v218
  %v220 = vand.u32 %v219, 4294901760
  %v221 = vsub.f32 %v219, %v220
  %v222 = vand.u32 %v221, 4294901760
  %223 = vmatmul.mubr.f32.gmra.mrb[0].mxu0 %v222
  %v224 = vpop.f32.mrb[0].mxu0
  %v225 = vadd.f32 0.0, %v224
  %v226 = vpop.f32.mrb[0].mxu0
  %227 = vmatprep.mubr.f32.mxu0 0.0
  %v228 = vand.u32 %v73, 4294901760
  %v229 = vsub.f32 %v73, %v228
  %v230 = vand.u32 %v229, 4294901760
  %v231 = vsub.f32 %v229, %v230
  %v232 = vand.u32 %v231, 4294901760
  %233 = vmatmul.mubr.f32.gmra.mrb[0].mxu0 %v232
  %v234 = vpop.f32.mrb[0].mxu0
  %v235 = vadd.f32 0.0, %v234
  %v236 = vpop.f32.mrb[0].mxu0
  %237 = vmatprep.mubr.f32.mxu0 0.0
  %v238 = vand.u32 %v76, 4294901760
  %v239 = vsub.f32 %v76, %v238
  %v240 = vand.u32 %v239, 4294901760
  %v241 = vsub.f32 %v239, %v240
  %v242 = vand.u32 %v241, 4294901760
  %243 = vmatmul.mubr.f32.gmra.mrb[0].mxu0 %v242
  %v244 = vpop.f32.mrb[0].mxu0
  %v245 = vadd.f32 0.0, %v244
  %v246 = vpop.f32.mrb[0].mxu0
  %247 = vmatprep.mubr.f32.mxu0 0.0
  %v248 = vand.u32 %v79, 4294901760
  %v249 = vsub.f32 %v79, %v248
  %v250 = vand.u32 %v249, 4294901760
  %v251 = vsub.f32 %v249, %v250
  %v252 = vand.u32 %v251, 4294901760
  %253 = vmatmul.mubr.f32.gmra.mrb[0].mxu0 %v252
  %v254 = vpop.f32.mrb[0].mxu0
  %v255 = vadd.f32 0.0, %v254
  %v256 = vpop.f32.mrb[0].mxu0
  %257 = vmatprep.mubr.f32.mxu0 0.0
  %v258 = vand.u32 %v82, 4294901760
  %v259 = vsub.f32 %v82, %v258
  %v260 = vand.u32 %v259, 4294901760
  %v261 = vsub.f32 %v259, %v260
  %v262 = vand.u32 %v261, 4294901760
  %263 = vmatmul.mubr.f32.gmra.mrb[0].mxu0 %v262
  %v264 = vpop.f32.mrb[0].mxu0
  %v265 = vadd.f32 0.0, %v264
  %v266 = vpop.f32.mrb[0].mxu0
  %267 = vmatprep.mubr.f32.mxu0 0.0
  %v268 = vand.u32 %v85, 4294901760
  %v269 = vsub.f32 %v85, %v268
  %v270 = vand.u32 %v269, 4294901760
  %v271 = vsub.f32 %v269, %v270
  %v272 = vand.u32 %v271, 4294901760
  %273 = vmatmul.mubr.f32.gmra.mrb[0].mxu0 %v272
  %v274 = vpop.f32.mrb[0].mxu0
  %v275 = vadd.f32 0.0, %v274
  %v276 = vpop.f32.mrb[0].mxu0
  %277 = vmatprep.mubr.f32.mxu0 0.0
  %v278 = vand.u32 %v88, 4294901760
  %v279 = vsub.f32 %v88, %v278
  %v280 = vand.u32 %v279, 4294901760
  %v281 = vsub.f32 %v279, %v280
  %v282 = vand.u32 %v281, 4294901760
  %283 = vmatmul.mubr.f32.gmra.mrb[0].mxu0 %v282
  %v284 = vpop.f32.mrb[0].mxu0
  %v285 = vadd.f32 0.0, %v284
  %v286 = vpop.f32.mrb[0].mxu0
  %287 = vmatprep.mubr.f32.mxu0 0.0
  %v288 = vand.u32 %v91, 4294901760
  %v289 = vsub.f32 %v91, %v288
  %v290 = vand.u32 %v289, 4294901760
  %v291 = vsub.f32 %v289, %v290
  %v292 = vand.u32 %v291, 4294901760
  %293 = vmatmul.mubr.f32.gmra.mrb[0].mxu0 %v292
  %v294 = vpop.f32.mrb[0].mxu0
  %v295 = vadd.f32 0.0, %v294
  %v296 = vpop.f32.mrb[0].mxu0
  %297 = vmatprep.mubr.f32.mxu0 0.0
  %v298 = vand.u32 %v94, 4294901760
  %v299 = vsub.f32 %v94, %v298
  %v300 = vand.u32 %v299, 4294901760
  %v301 = vsub.f32 %v299, %v300
  %v302 = vand.u32 %v301, 4294901760
  %303 = vmatmul.mubr.f32.gmra.mrb[0].mxu0 %v302
  %v304 = vpop.f32.mrb[0].mxu0
  %v305 = vadd.f32 0.0, %v304
  %v306 = vpop.f32.mrb[0].mxu0
  %307 = vmatprep.mubr.f32.mxu0 0.0
  %v308 = vand.u32 %v97, 4294901760
  %v309 = vsub.f32 %v97, %v308
  %v310 = vand.u32 %v309, 4294901760
  %v311 = vsub.f32 %v309, %v310
  %v312 = vand.u32 %v311, 4294901760
  %313 = vmatmul.mubr.f32.gmra.mrb[0].mxu0 %v312
  %v314 = vpop.f32.mrb[0].mxu0
  %v315 = vadd.f32 0.0, %v314
  %v316 = vpop.f32.mrb[0].mxu0
  %317 = vmatprep.mubr.f32.mxu0 0.0
  %v318 = vand.u32 %v100, 4294901760
  %v319 = vsub.f32 %v100, %v318
  %v320 = vand.u32 %v319, 4294901760
  %v321 = vsub.f32 %v319, %v320
  %v322 = vand.u32 %v321, 4294901760
  %323 = vmatmul.mubr.f32.gmra.mrb[0].mxu0 %v322
  %v324 = vpop.f32.mrb[0].mxu0
  %v325 = vadd.f32 0.0, %v324
  %v326 = vpop.f32.mrb[0].mxu0
  %327 = vmatprep.mubr.f32.mxu0 0.0
  %v328 = vand.u32 %v103, 4294901760
  %v329 = vsub.f32 %v103, %v328
  %v330 = vand.u32 %v329, 4294901760
  %v331 = vsub.f32 %v329, %v330
  %v332 = vand.u32 %v331, 4294901760
  %333 = vmatmul.mubr.f32.gmra.mrb[0].mxu0 %v332
  %v334 = vpop.f32.mrb[0].mxu0
  %v335 = vadd.f32 0.0, %v334
  %v336 = vpop.f32.mrb[0].mxu0
  %337 = vmatprep.mubr.f32.mxu0 0.0
  %v338 = vand.u32 %v106, 4294901760
  %v339 = vsub.f32 %v106, %v338
  %v340 = vand.u32 %v339, 4294901760
  %v341 = vsub.f32 %v339, %v340
  %v342 = vand.u32 %v341, 4294901760
  %343 = vmatmul.mubr.f32.gmra.mrb[0].mxu0 %v342
  %v344 = vpop.f32.mrb[0].mxu0
  %v345 = vadd.f32 0.0, %v344
  %v346 = vpop.f32.mrb[0].mxu0
  %347 = vmatprep.mubr.f32.mxu0 0.0
  %v348 = vand.u32 %v109, 4294901760
  %v349 = vsub.f32 %v109, %v348
  %v350 = vand.u32 %v349, 4294901760
  %v351 = vsub.f32 %v349, %v350
  %v352 = vand.u32 %v351, 4294901760
  %353 = vmatmul.mubr.f32.gmra.mrb[0].mxu0 %v352
  %v354 = vpop.f32.mrb[0].mxu0
  %v355 = vadd.f32 0.0, %v354
  %v356 = vpop.f32.mrb[0].mxu0
  %357 = vmatprep.mubr.f32.mxu0 0.0
  %v358 = vand.u32 %v112, 4294901760
  %v359 = vsub.f32 %v112, %v358
  %v360 = vand.u32 %v359, 4294901760
  %v361 = vsub.f32 %v359, %v360
  %v362 = vand.u32 %v361, 4294901760
  %363 = vmatmul.mubr.f32.gmra.mrb[0].mxu0 %v362
  %v364 = vpop.f32.mrb[0].mxu0
  %v365 = vadd.f32 0.0, %v364
  %v366 = vpop.f32.mrb[0].mxu0
  %367 = vmatprep.mubr.f32.mxu0 0.0
  %v368 = vand.u32 %v115, 4294901760
  %v369 = vsub.f32 %v115, %v368
  %v370 = vand.u32 %v369, 4294901760
  %v371 = vsub.f32 %v369, %v370
  %v372 = vand.u32 %v371, 4294901760
  %373 = vmatmul.mubr.f32.gmra.mrb[0].mxu0 %v372
  %v374 = vpop.f32.mrb[0].mxu0
  %v375 = vadd.f32 0.0, %v374
  %v376 = vpop.f32.mrb[0].mxu0
  %377 = vmatprep.mubr.f32.mxu0 0.0
  %v378 = vand.u32 %v118, 4294901760
  %v379 = vsub.f32 %v118, %v378
  %v380 = vand.u32 %v379, 4294901760
  %v381 = vsub.f32 %v379, %v380
  %v382 = vand.u32 %v381, 4294901760
  %383 = vmatmul.mubr.f32.gmra.mrb[0].mxu0 %v382
  %v384 = vpop.f32.mrb[0].mxu0
  %v385 = vadd.f32 0.0, %v384
  %v386 = vpop.f32.mrb[0].mxu0
  %387 = vmatprep.mubr.f32.mxu0 0.0
  %v388 = vand.u32 %v121, 4294901760
  %v389 = vsub.f32 %v121, %v388
  %v390 = vand.u32 %v389, 4294901760
  %v391 = vsub.f32 %v389, %v390
  %v392 = vand.u32 %v391, 4294901760
  %393 = vmatmul.mubr.f32.gmra.mrb[0].mxu0 %v392
  %v394 = vpop.f32.mrb[0].mxu0
  %v395 = vadd.f32 0.0, %v394
  %v396 = vpop.f32.mrb[0].mxu0
  %397 = vmatprep.mubr.f32.mxu0 0.0
  %v398 = vand.u32 %v124, 4294901760
  %v399 = vsub.f32 %v124, %v398
  %v400 = vand.u32 %v399, 4294901760
  %v401 = vsub.f32 %v399, %v400
  %v402 = vand.u32 %v401, 4294901760
  %403 = vmatmul.mubr.f32.gmra.mrb[0].mxu0 %v402
  %v404 = vpop.f32.mrb[0].mxu0
  %v405 = vadd.f32 0.0, %v404
  %v406 = vpop.f32.mrb[0].mxu0
  %407 = vmatprep.mubr.f32.mxu0 0.0
  %v408 = vand.u32 %v127, 4294901760
  %v409 = vsub.f32 %v127, %v408
  %v410 = vand.u32 %v409, 4294901760
  %v411 = vsub.f32 %v409, %v410
  %v412 = vand.u32 %v411, 4294901760
  %413 = vmatmul.mubr.f32.gmra.mrb[0].mxu0 %v412
  %v414 = vpop.f32.mrb[0].mxu0
  %v415 = vadd.f32 0.0, %v414
  %v416 = vpop.f32.mrb[0].mxu0
  %417 = vmatprep.mubr.f32.mxu0 0.0
  %v418 = vand.u32 %v130, 4294901760
  %v419 = vsub.f32 %v130, %v418
  %v420 = vand.u32 %v419, 4294901760
  %v421 = vsub.f32 %v419, %v420
  %v422 = vand.u32 %v421, 4294901760
  %423 = vmatmul.mubr.f32.gmra.mrb[0].mxu0 %v422
  %v424 = vpop.f32.mrb[0].mxu0
  %v425 = vadd.f32 0.0, %v424
  %v426 = vpop.f32.mrb[0].mxu0
  %427 = vmatprep.mubr.f32.mxu0 0.0
  %v428 = vand.u32 %v133, 4294901760
  %v429 = vsub.f32 %v133, %v428
  %v430 = vand.u32 %v429, 4294901760
  %v431 = vsub.f32 %v429, %v430
  %v432 = vand.u32 %v431, 4294901760
  %433 = vmatmul.mubr.f32.gmra.mrb[0].mxu0 %v432
  %v434 = vpop.f32.mrb[0].mxu0
  %v435 = vadd.f32 0.0, %v434
  %v436 = vpop.f32.mrb[0].mxu0
  %437 = vmatprep.mubr.f32.mxu0 0.0
  %v438 = vand.u32 %v136, 4294901760
  %v439 = vsub.f32 %v136, %v438
  %v440 = vand.u32 %v439, 4294901760
  %v441 = vsub.f32 %v439, %v440
  %v442 = vand.u32 %v441, 4294901760
  %443 = vmatmul.mubr.f32.gmra.mrb[0].mxu0 %v442
  %v444 = vpop.f32.mrb[0].mxu0
  %v445 = vadd.f32 0.0, %v444
  %v446 = vpop.f32.mrb[0].mxu0
  %447 = vdwg.mxu0
  %448 = vmatprep.subr.mxu0 0.0
  %v449 = vand.u32 %v140, 4294901760
  %v450 = vsub.f32 %v140, %v449
  %v451 = vand.u32 %v450, 4294901760
  %v452 = vsub.f32 %v450, %v451
  %v453 = vand.u32 %v452, 4294901760
  %454 = vmatpush1.msra.mxu0 %v453
  %455 = vmatprep.subr.mxu0 0.0
  %456 = vmatpush1.msra.mxu0 0.0
  %457 = vmatprep.subr.mxu0 0.0
  %458 = vmatpush1.msra.mxu0 0.0
  %459 = vmatprep.subr.mxu0 0.0
  %460 = vmatpush1.msra.mxu0 0.0
  %461 = vmatprep.subr.mxu0 0.0
  %462 = vmatpush1.msra.mxu0 0.0
  %463 = vmatprep.subr.mxu0 0.0
  %464 = vmatpush1.msra.mxu0 0.0
  %465 = vmatprep.subr.mxu0 0.0
  %466 = vmatpush1.msra.mxu0 0.0
  %467 = vmatprep.subr.mxu0 0.0
  %468 = vmatpush1.msra.mxu0 0.0
  %469 = vmatprep.subr.mxu0 0.0
  %470 = vmatpush1.msra.mxu0 0.0
  %471 = vmatprep.subr.mxu0 0.0
  %472 = vmatpush1.msra.mxu0 0.0
  %473 = vmatprep.subr.mxu0 0.0
  %474 = vmatpush1.msra.mxu0 0.0
  %475 = vmatprep.subr.mxu0 0.0
  %476 = vmatpush1.msra.mxu0 0.0
  %477 = vmatprep.subr.mxu0 0.0
  %478 = vmatpush1.msra.mxu0 0.0
  %479 = vmatprep.subr.mxu0 0.0
  %480 = vmatpush1.msra.mxu0 0.0
  %481 = vmatprep.subr.mxu0 0.0
  %482 = vmatpush1.msra.mxu0 0.0
  %483 = vmatprep.subr.mxu0 0.0
  %484 = vmatpush1.msra.mxu0 0.0
  %485 = vmatprep.subr.mxu0 0.0
  %486 = vmatpush1.msra.mxu0 0.0
  %487 = vmatprep.subr.mxu0 0.0
  %488 = vmatpush1.msra.mxu0 0.0
  %489 = vmatprep.subr.mxu0 0.0
  %490 = vmatpush1.msra.mxu0 0.0
  %491 = vmatprep.subr.mxu0 0.0
  %492 = vmatpush1.msra.mxu0 0.0
  %493 = vmatprep.subr.mxu0 0.0
  %494 = vmatpush1.msra.mxu0 0.0
  %495 = vmatprep.subr.mxu0 0.0
  %496 = vmatpush1.msra.mxu0 0.0
  %497 = vmatprep.subr.mxu0 0.0
  %498 = vmatpush1.msra.mxu0 0.0
  %499 = vmatprep.subr.mxu0 0.0
  %500 = vmatpush1.msra.mxu0 0.0
  %501 = vmatprep.subr.mxu0 0.0
  %502 = vmatpush1.msra.mxu0 0.0
  %503 = vmatprep.subr.mxu0 0.0
  %504 = vmatpush1.msra.mxu0 0.0
  %505 = vmatprep.subr.mxu0 0.0
  %506 = vmatpush1.msra.mxu0 0.0
  %507 = vmatprep.subr.mxu0 0.0
  %508 = vmatpush1.msra.mxu0 0.0
  %509 = vmatprep.subr.mxu0 0.0
  %510 = vmatpush1.msra.mxu0 0.0
  %511 = vmatprep.subr.mxu0 0.0
  %512 = vmatpush1.msra.mxu0 0.0
  %513 = vmatprep.subr.mxu0 0.0
  %514 = vmatpush1.msra.mxu0 0.0
  %515 = vmatprep.subr.mxu0 0.0
  %516 = vmatpush1.msra.mxu0 0.0
  %517 = vmatprep.mubr.f32.mxu0 0.0
  %v518 = vand.u32 %v67, 4294901760
  %519 = vmatmul.mubr.f32.gmra.mrb[0].mxu0 %v518
  %v520 = vpop.f32.mrb[0].mxu0
  %v521 = vadd.f32 %v215, %v520
  %v522 = vpop.f32.mrb[0].mxu0
  %523 = vmatprep.mubr.f32.mxu0 0.0
  %v524 = vand.u32 %v70, 4294901760
  %525 = vmatmul.mubr.f32.gmra.mrb[0].mxu0 %v524
  %v526 = vpop.f32.mrb[0].mxu0
  %v527 = vadd.f32 %v225, %v526
  %v528 = vpop.f32.mrb[0].mxu0
  %529 = vmatprep.mubr.f32.mxu0 0.0
  %v530 = vand.u32 %v73, 4294901760
  %531 = vmatmul.mubr.f32.gmra.mrb[0].mxu0 %v530
  %v532 = vpop.f32.mrb[0].mxu0
  %v533 = vadd.f32 %v235, %v532
  %v534 = vpop.f32.mrb[0].mxu0
  %535 = vmatprep.mubr.f32.mxu0 0.0
  %v536 = vand.u32 %v76, 4294901760
  %537 = vmatmul.mubr.f32.gmra.mrb[0].mxu0 %v536
  %v538 = vpop.f32.mrb[0].mxu0
  %v539 = vadd.f32 %v245, %v538
  %v540 = vpop.f32.mrb[0].mxu0
  %541 = vmatprep.mubr.f32.mxu0 0.0
  %v542 = vand.u32 %v79, 4294901760
  %543 = vmatmul.mubr.f32.gmra.mrb[0].mxu0 %v542
  %v544 = vpop.f32.mrb[0].mxu0
  %v545 = vadd.f32 %v255, %v544
  %v546 = vpop.f32.mrb[0].mxu0
  %547 = vmatprep.mubr.f32.mxu0 0.0
  %v548 = vand.u32 %v82, 4294901760
  %549 = vmatmul.mubr.f32.gmra.mrb[0].mxu0 %v548
  %v550 = vpop.f32.mrb[0].mxu0
  %v551 = vadd.f32 %v265, %v550
  %v552 = vpop.f32.mrb[0].mxu0
  %553 = vmatprep.mubr.f32.mxu0 0.0
  %v554 = vand.u32 %v85, 4294901760
  %555 = vmatmul.mubr.f32.gmra.mrb[0].mxu0 %v554
  %v556 = vpop.f32.mrb[0].mxu0
  %v557 = vadd.f32 %v275, %v556
  %v558 = vpop.f32.mrb[0].mxu0
  %559 = vmatprep.mubr.f32.mxu0 0.0
  %v560 = vand.u32 %v88, 4294901760
  %561 = vmatmul.mubr.f32.gmra.mrb[0].mxu0 %v560
  %v562 = vpop.f32.mrb[0].mxu0
  %v563 = vadd.f32 %v285, %v562
  %v564 = vpop.f32.mrb[0].mxu0
  %565 = vmatprep.mubr.f32.mxu0 0.0
  %v566 = vand.u32 %v91, 4294901760
  %567 = vmatmul.mubr.f32.gmra.mrb[0].mxu0 %v566
  %v568 = vpop.f32.mrb[0].mxu0
  %v569 = vadd.f32 %v295, %v568
  %v570 = vpop.f32.mrb[0].mxu0
  %571 = vmatprep.mubr.f32.mxu0 0.0
  %v572 = vand.u32 %v94, 4294901760
  %573 = vmatmul.mubr.f32.gmra.mrb[0].mxu0 %v572
  %v574 = vpop.f32.mrb[0].mxu0
  %v575 = vadd.f32 %v305, %v574
  %v576 = vpop.f32.mrb[0].mxu0
  %577 = vmatprep.mubr.f32.mxu0 0.0
  %v578 = vand.u32 %v97, 4294901760
  %579 = vmatmul.mubr.f32.gmra.mrb[0].mxu0 %v578
  %v580 = vpop.f32.mrb[0].mxu0
  %v581 = vadd.f32 %v315, %v580
  %v582 = vpop.f32.mrb[0].mxu0
  %583 = vmatprep.mubr.f32.mxu0 0.0
  %v584 = vand.u32 %v100, 4294901760
  %585 = vmatmul.mubr.f32.gmra.mrb[0].mxu0 %v584
  %v586 = vpop.f32.mrb[0].mxu0
  %v587 = vadd.f32 %v325, %v586
  %v588 = vpop.f32.mrb[0].mxu0
  %589 = vmatprep.mubr.f32.mxu0 0.0
  %v590 = vand.u32 %v103, 4294901760
  %591 = vmatmul.mubr.f32.gmra.mrb[0].mxu0 %v590
  %v592 = vpop.f32.mrb[0].mxu0
  %v593 = vadd.f32 %v335, %v592
  %v594 = vpop.f32.mrb[0].mxu0
  %595 = vmatprep.mubr.f32.mxu0 0.0
  %v596 = vand.u32 %v106, 4294901760
  %597 = vmatmul.mubr.f32.gmra.mrb[0].mxu0 %v596
  %v598 = vpop.f32.mrb[0].mxu0
  %v599 = vadd.f32 %v345, %v598
  %v600 = vpop.f32.mrb[0].mxu0
  %601 = vmatprep.mubr.f32.mxu0 0.0
  %v602 = vand.u32 %v109, 4294901760
  %603 = vmatmul.mubr.f32.gmra.mrb[0].mxu0 %v602
  %v604 = vpop.f32.mrb[0].mxu0
  %v605 = vadd.f32 %v355, %v604
  %v606 = vpop.f32.mrb[0].mxu0
  %607 = vmatprep.mubr.f32.mxu0 0.0
  %v608 = vand.u32 %v112, 4294901760
  %609 = vmatmul.mubr.f32.gmra.mrb[0].mxu0 %v608
  %v610 = vpop.f32.mrb[0].mxu0
  %v611 = vadd.f32 %v365, %v610
  %v612 = vpop.f32.mrb[0].mxu0
  %613 = vmatprep.mubr.f32.mxu0 0.0
  %v614 = vand.u32 %v115, 4294901760
  %615 = vmatmul.mubr.f32.gmra.mrb[0].mxu0 %v614
  %v616 = vpop.f32.mrb[0].mxu0
  %v617 = vadd.f32 %v375, %v616
  %v618 = vpop.f32.mrb[0].mxu0
  %619 = vmatprep.mubr.f32.mxu0 0.0
  %v620 = vand.u32 %v118, 4294901760
  %621 = vmatmul.mubr.f32.gmra.mrb[0].mxu0 %v620
  %v622 = vpop.f32.mrb[0].mxu0
  %v623 = vadd.f32 %v385, %v622
  %v624 = vpop.f32.mrb[0].mxu0
  %625 = vmatprep.mubr.f32.mxu0 0.0
  %v626 = vand.u32 %v121, 4294901760
  %627 = vmatmul.mubr.f32.gmra.mrb[0].mxu0 %v626
  %v628 = vpop.f32.mrb[0].mxu0
  %v629 = vadd.f32 %v395, %v628
  %v630 = vpop.f32.mrb[0].mxu0
  %631 = vmatprep.mubr.f32.mxu0 0.0
  %v632 = vand.u32 %v124, 4294901760
  %633 = vmatmul.mubr.f32.gmra.mrb[0].mxu0 %v632
  %v634 = vpop.f32.mrb[0].mxu0
  %v635 = vadd.f32 %v405, %v634
  %v636 = vpop.f32.mrb[0].mxu0
  %637 = vmatprep.mubr.f32.mxu0 0.0
  %v638 = vand.u32 %v127, 4294901760
  %639 = vmatmul.mubr.f32.gmra.mrb[0].mxu0 %v638
  %v640 = vpop.f32.mrb[0].mxu0
  %v641 = vadd.f32 %v415, %v640
  %v642 = vpop.f32.mrb[0].mxu0
  %643 = vmatprep.mubr.f32.mxu0 0.0
  %v644 = vand.u32 %v130, 4294901760
  %645 = vmatmul.mubr.f32.gmra.mrb[0].mxu0 %v644
  %v646 = vpop.f32.mrb[0].mxu0
  %v647 = vadd.f32 %v425, %v646
  %v648 = vpop.f32.mrb[0].mxu0
  %649 = vmatprep.mubr.f32.mxu0 0.0
  %v650 = vand.u32 %v133, 4294901760
  %651 = vmatmul.mubr.f32.gmra.mrb[0].mxu0 %v650
  %v652 = vpop.f32.mrb[0].mxu0
  %v653 = vadd.f32 %v435, %v652
  %v654 = vpop.f32.mrb[0].mxu0
  %655 = vmatprep.mubr.f32.mxu0 0.0
  %v656 = vand.u32 %v136, 4294901760
  %657 = vmatmul.mubr.f32.gmra.mrb[0].mxu0 %v656
  %v658 = vpop.f32.mrb[0].mxu0
  %v659 = vadd.f32 %v445, %v658
  %v660 = vpop.f32.mrb[0].mxu0
  %661 = vdwg.mxu0
  %662 = vmatprep.subr.mxu0 0.0
  %v663 = vand.u32 %v140, 4294901760
  %v664 = vsub.f32 %v140, %v663
  %665 = vmatpush1.msra.mxu0 %v664
  %666 = vmatprep.subr.mxu0 0.0
  %667 = vmatpush1.msra.mxu0 0.0
  %668 = vmatprep.subr.mxu0 0.0
  %669 = vmatpush1.msra.mxu0 0.0
  %670 = vmatprep.subr.mxu0 0.0
  %671 = vmatpush1.msra.mxu0 0.0
  %672 = vmatprep.subr.mxu0 0.0
  %673 = vmatpush1.msra.mxu0 0.0
  %674 = vmatprep.subr.mxu0 0.0
  %675 = vmatpush1.msra.mxu0 0.0
  %676 = vmatprep.subr.mxu0 0.0
  %677 = vmatpush1.msra.mxu0 0.0
  %678 = vmatprep.subr.mxu0 0.0
  %679 = vmatpush1.msra.mxu0 0.0
  %680 = vmatprep.subr.mxu0 0.0
  %681 = vmatpush1.msra.mxu0 0.0
  %682 = vmatprep.subr.mxu0 0.0
  %683 = vmatpush1.msra.mxu0 0.0
  %684 = vmatprep.subr.mxu0 0.0
  %685 = vmatpush1.msra.mxu0 0.0
  %686 = vmatprep.subr.mxu0 0.0
  %687 = vmatpush1.msra.mxu0 0.0
  %688 = vmatprep.subr.mxu0 0.0
  %689 = vmatpush1.msra.mxu0 0.0
  %690 = vmatprep.subr.mxu0 0.0
  %691 = vmatpush1.msra.mxu0 0.0
  %692 = vmatprep.subr.mxu0 0.0
  %693 = vmatpush1.msra.mxu0 0.0
  %694 = vmatprep.subr.mxu0 0.0
  %695 = vmatpush1.msra.mxu0 0.0
  %696 = vmatprep.subr.mxu0 0.0
  %697 = vmatpush1.msra.mxu0 0.0
  %698 = vmatprep.subr.mxu0 0.0
  %699 = vmatpush1.msra.mxu0 0.0
  %700 = vmatprep.subr.mxu0 0.0
  %701 = vmatpush1.msra.mxu0 0.0
  %702 = vmatprep.subr.mxu0 0.0
  %703 = vmatpush1.msra.mxu0 0.0
  %704 = vmatprep.subr.mxu0 0.0
  %705 = vmatpush1.msra.mxu0 0.0
  %706 = vmatprep.subr.mxu0 0.0
  %707 = vmatpush1.msra.mxu0 0.0
  %708 = vmatprep.subr.mxu0 0.0
  %709 = vmatpush1.msra.mxu0 0.0
  %710 = vmatprep.subr.mxu0 0.0
  %711 = vmatpush1.msra.mxu0 0.0
  %712 = vmatprep.subr.mxu0 0.0
  %713 = vmatpush1.msra.mxu0 0.0
  %714 = vmatprep.subr.mxu0 0.0
  %715 = vmatpush1.msra.mxu0 0.0
  %716 = vmatprep.subr.mxu0 0.0
  %717 = vmatpush1.msra.mxu0 0.0
  %718 = vmatprep.subr.mxu0 0.0
  %719 = vmatpush1.msra.mxu0 0.0
  %720 = vmatprep.subr.mxu0 0.0
  %721 = vmatpush1.msra.mxu0 0.0
  %722 = vmatprep.subr.mxu0 0.0
  %723 = vmatpush1.msra.mxu0 0.0
  %724 = vmatprep.subr.mxu0 0.0
  %725 = vmatpush1.msra.mxu0 0.0
  %726 = vmatprep.subr.mxu0 0.0
  %727 = vmatpush1.msra.mxu0 0.0
  %728 = vmatprep.mubr.f32.mxu0 0.0
  %v729 = vand.u32 %v67, 4294901760
  %v730 = vsub.f32 %v67, %v729
  %731 = vmatmul.mubr.f32.gmra.mrb[0].mxu0 %v730
  %v732 = vpop.f32.mrb[0].mxu0
  %v733 = vadd.f32 %v521, %v732
  %v734 = vpop.f32.mrb[0].mxu0
  %735 = vmatprep.mubr.f32.mxu0 0.0
  %v736 = vand.u32 %v70, 4294901760
  %v737 = vsub.f32 %v70, %v736
  %738 = vmatmul.mubr.f32.gmra.mrb[0].mxu0 %v737
  %v739 = vpop.f32.mrb[0].mxu0
  %v740 = vadd.f32 %v527, %v739
  %v741 = vpop.f32.mrb[0].mxu0
  %742 = vmatprep.mubr.f32.mxu0 0.0
  %v743 = vand.u32 %v73, 4294901760
  %v744 = vsub.f32 %v73, %v743
  %745 = vmatmul.mubr.f32.gmra.mrb[0].mxu0 %v744
  %v746 = vpop.f32.mrb[0].mxu0
  %v747 = vadd.f32 %v533, %v746
  %v748 = vpop.f32.mrb[0].mxu0
  %749 = vmatprep.mubr.f32.mxu0 0.0
  %v750 = vand.u32 %v76, 4294901760
  %v751 = vsub.f32 %v76, %v750
  %752 = vmatmul.mubr.f32.gmra.mrb[0].mxu0 %v751
  %v753 = vpop.f32.mrb[0].mxu0
  %v754 = vadd.f32 %v539, %v753
  %v755 = vpop.f32.mrb[0].mxu0
  %756 = vmatprep.mubr.f32.mxu0 0.0
  %v757 = vand.u32 %v79, 4294901760
  %v758 = vsub.f32 %v79, %v757
  %759 = vmatmul.mubr.f32.gmra.mrb[0].mxu0 %v758
  %v760 = vpop.f32.mrb[0].mxu0
  %v761 = vadd.f32 %v545, %v760
  %v762 = vpop.f32.mrb[0].mxu0
  %763 = vmatprep.mubr.f32.mxu0 0.0
  %v764 = vand.u32 %v82, 4294901760
  %v765 = vsub.f32 %v82, %v764
  %766 = vmatmul.mubr.f32.gmra.mrb[0].mxu0 %v765
  %v767 = vpop.f32.mrb[0].mxu0
  %v768 = vadd.f32 %v551, %v767
  %v769 = vpop.f32.mrb[0].mxu0
  %770 = vmatprep.mubr.f32.mxu0 0.0
  %v771 = vand.u32 %v85, 4294901760
  %v772 = vsub.f32 %v85, %v771
  %773 = vmatmul.mubr.f32.gmra.mrb[0].mxu0 %v772
  %v774 = vpop.f32.mrb[0].mxu0
  %v775 = vadd.f32 %v557, %v774
  %v776 = vpop.f32.mrb[0].mxu0
  %777 = vmatprep.mubr.f32.mxu0 0.0
  %v778 = vand.u32 %v88, 4294901760
  %v779 = vsub.f32 %v88, %v778
  %780 = vmatmul.mubr.f32.gmra.mrb[0].mxu0 %v779
  %v781 = vpop.f32.mrb[0].mxu0
  %v782 = vadd.f32 %v563, %v781
  %v783 = vpop.f32.mrb[0].mxu0
  %784 = vmatprep.mubr.f32.mxu0 0.0
  %v785 = vand.u32 %v91, 4294901760
  %v786 = vsub.f32 %v91, %v785
  %787 = vmatmul.mubr.f32.gmra.mrb[0].mxu0 %v786
  %v788 = vpop.f32.mrb[0].mxu0
  %v789 = vadd.f32 %v569, %v788
  %v790 = vpop.f32.mrb[0].mxu0
  %791 = vmatprep.mubr.f32.mxu0 0.0
  %v792 = vand.u32 %v94, 4294901760
  %v793 = vsub.f32 %v94, %v792
  %794 = vmatmul.mubr.f32.gmra.mrb[0].mxu0 %v793
  %v795 = vpop.f32.mrb[0].mxu0
  %v796 = vadd.f32 %v575, %v795
  %v797 = vpop.f32.mrb[0].mxu0
  %798 = vmatprep.mubr.f32.mxu0 0.0
  %v799 = vand.u32 %v97, 4294901760
  %v800 = vsub.f32 %v97, %v799
  %801 = vmatmul.mubr.f32.gmra.mrb[0].mxu0 %v800
  %v802 = vpop.f32.mrb[0].mxu0
  %v803 = vadd.f32 %v581, %v802
  %v804 = vpop.f32.mrb[0].mxu0
  %805 = vmatprep.mubr.f32.mxu0 0.0
  %v806 = vand.u32 %v100, 4294901760
  %v807 = vsub.f32 %v100, %v806
  %808 = vmatmul.mubr.f32.gmra.mrb[0].mxu0 %v807
  %v809 = vpop.f32.mrb[0].mxu0
  %v810 = vadd.f32 %v587, %v809
  %v811 = vpop.f32.mrb[0].mxu0
  %812 = vmatprep.mubr.f32.mxu0 0.0
  %v813 = vand.u32 %v103, 4294901760
  %v814 = vsub.f32 %v103, %v813
  %815 = vmatmul.mubr.f32.gmra.mrb[0].mxu0 %v814
  %v816 = vpop.f32.mrb[0].mxu0
  %v817 = vadd.f32 %v593, %v816
  %v818 = vpop.f32.mrb[0].mxu0
  %819 = vmatprep.mubr.f32.mxu0 0.0
  %v820 = vand.u32 %v106, 4294901760
  %v821 = vsub.f32 %v106, %v820
  %822 = vmatmul.mubr.f32.gmra.mrb[0].mxu0 %v821
  %v823 = vpop.f32.mrb[0].mxu0
  %v824 = vadd.f32 %v599, %v823
  %v825 = vpop.f32.mrb[0].mxu0
  %826 = vmatprep.mubr.f32.mxu0 0.0
  %v827 = vand.u32 %v109, 4294901760
  %v828 = vsub.f32 %v109, %v827
  %829 = vmatmul.mubr.f32.gmra.mrb[0].mxu0 %v828
  %v830 = vpop.f32.mrb[0].mxu0
  %v831 = vadd.f32 %v605, %v830
  %v832 = vpop.f32.mrb[0].mxu0
  %833 = vmatprep.mubr.f32.mxu0 0.0
  %v834 = vand.u32 %v112, 4294901760
  %v835 = vsub.f32 %v112, %v834
  %836 = vmatmul.mubr.f32.gmra.mrb[0].mxu0 %v835
  %v837 = vpop.f32.mrb[0].mxu0
  %v838 = vadd.f32 %v611, %v837
  %v839 = vpop.f32.mrb[0].mxu0
  %840 = vmatprep.mubr.f32.mxu0 0.0
  %v841 = vand.u32 %v115, 4294901760
  %v842 = vsub.f32 %v115, %v841
  %843 = vmatmul.mubr.f32.gmra.mrb[0].mxu0 %v842
  %v844 = vpop.f32.mrb[0].mxu0
  %v845 = vadd.f32 %v617, %v844
  %v846 = vpop.f32.mrb[0].mxu0
  %847 = vmatprep.mubr.f32.mxu0 0.0
  %v848 = vand.u32 %v118, 4294901760
  %v849 = vsub.f32 %v118, %v848
  %850 = vmatmul.mubr.f32.gmra.mrb[0].mxu0 %v849
  %v851 = vpop.f32.mrb[0].mxu0
  %v852 = vadd.f32 %v623, %v851
  %v853 = vpop.f32.mrb[0].mxu0
  %854 = vmatprep.mubr.f32.mxu0 0.0
  %v855 = vand.u32 %v121, 4294901760
  %v856 = vsub.f32 %v121, %v855
  %857 = vmatmul.mubr.f32.gmra.mrb[0].mxu0 %v856
  %v858 = vpop.f32.mrb[0].mxu0
  %v859 = vadd.f32 %v629, %v858
  %v860 = vpop.f32.mrb[0].mxu0
  %861 = vmatprep.mubr.f32.mxu0 0.0
  %v862 = vand.u32 %v124, 4294901760
  %v863 = vsub.f32 %v124, %v862
  %864 = vmatmul.mubr.f32.gmra.mrb[0].mxu0 %v863
  %v865 = vpop.f32.mrb[0].mxu0
  %v866 = vadd.f32 %v635, %v865
  %v867 = vpop.f32.mrb[0].mxu0
  %868 = vmatprep.mubr.f32.mxu0 0.0
  %v869 = vand.u32 %v127, 4294901760
  %v870 = vsub.f32 %v127, %v869
  %871 = vmatmul.mubr.f32.gmra.mrb[0].mxu0 %v870
  %v872 = vpop.f32.mrb[0].mxu0
  %v873 = vadd.f32 %v641, %v872
  %v874 = vpop.f32.mrb[0].mxu0
  %875 = vmatprep.mubr.f32.mxu0 0.0
  %v876 = vand.u32 %v130, 4294901760
  %v877 = vsub.f32 %v130, %v876
  %878 = vmatmul.mubr.f32.gmra.mrb[0].mxu0 %v877
  %v879 = vpop.f32.mrb[0].mxu0
  %v880 = vadd.f32 %v647, %v879
  %v881 = vpop.f32.mrb[0].mxu0
  %882 = vmatprep.mubr.f32.mxu0 0.0
  %v883 = vand.u32 %v133, 4294901760
  %v884 = vsub.f32 %v133, %v883
  %885 = vmatmul.mubr.f32.gmra.mrb[0].mxu0 %v884
  %v886 = vpop.f32.mrb[0].mxu0
  %v887 = vadd.f32 %v653, %v886
  %v888 = vpop.f32.mrb[0].mxu0
  %889 = vmatprep.mubr.f32.mxu0 0.0
  %v890 = vand.u32 %v136, 4294901760
  %v891 = vsub.f32 %v136, %v890
  %892 = vmatmul.mubr.f32.gmra.mrb[0].mxu0 %v891
  %v893 = vpop.f32.mrb[0].mxu0
  %v894 = vadd.f32 %v659, %v893
  %v895 = vpop.f32.mrb[0].mxu0
  %896 = vdwg.mxu0
  %897 = vmatprep.subr.mxu0 0.0
  %v898 = vand.u32 %v140, 4294901760
  %899 = vmatpush1.msra.mxu0 %v898
  %900 = vmatprep.subr.mxu0 0.0
  %901 = vmatpush1.msra.mxu0 0.0
  %902 = vmatprep.subr.mxu0 0.0
  %903 = vmatpush1.msra.mxu0 0.0
  %904 = vmatprep.subr.mxu0 0.0
  %905 = vmatpush1.msra.mxu0 0.0
  %906 = vmatprep.subr.mxu0 0.0
  %907 = vmatpush1.msra.mxu0 0.0
  %908 = vmatprep.subr.mxu0 0.0
  %909 = vmatpush1.msra.mxu0 0.0
  %910 = vmatprep.subr.mxu0 0.0
  %911 = vmatpush1.msra.mxu0 0.0
  %912 = vmatprep.subr.mxu0 0.0
  %913 = vmatpush1.msra.mxu0 0.0
  %914 = vmatprep.subr.mxu0 0.0
  %915 = vmatpush1.msra.mxu0 0.0
  %916 = vmatprep.subr.mxu0 0.0
  %917 = vmatpush1.msra.mxu0 0.0
  %918 = vmatprep.subr.mxu0 0.0
  %919 = vmatpush1.msra.mxu0 0.0
  %920 = vmatprep.subr.mxu0 0.0
  %921 = vmatpush1.msra.mxu0 0.0
  %922 = vmatprep.subr.mxu0 0.0
  %923 = vmatpush1.msra.mxu0 0.0
  %924 = vmatprep.subr.mxu0 0.0
  %925 = vmatpush1.msra.mxu0 0.0
  %926 = vmatprep.subr.mxu0 0.0
  %927 = vmatpush1.msra.mxu0 0.0
  %928 = vmatprep.subr.mxu0 0.0
  %929 = vmatpush1.msra.mxu0 0.0
  %930 = vmatprep.subr.mxu0 0.0
  %931 = vmatpush1.msra.mxu0 0.0
  %932 = vmatprep.subr.mxu0 0.0
  %933 = vmatpush1.msra.mxu0 0.0
  %934 = vmatprep.subr.mxu0 0.0
  %935 = vmatpush1.msra.mxu0 0.0
  %936 = vmatprep.subr.mxu0 0.0
  %937 = vmatpush1.msra.mxu0 0.0
  %938 = vmatprep.subr.mxu0 0.0
  %939 = vmatpush1.msra.mxu0 0.0
  %940 = vmatprep.subr.mxu0 0.0
  %941 = vmatpush1.msra.mxu0 0.0
  %942 = vmatprep.subr.mxu0 0.0
  %943 = vmatpush1.msra.mxu0 0.0
  %944 = vmatprep.subr.mxu0 0.0
  %945 = vmatpush1.msra.mxu0 0.0
  %946 = vmatprep.subr.mxu0 0.0
  %947 = vmatpush1.msra.mxu0 0.0
  %948 = vmatprep.subr.mxu0 0.0
  %949 = vmatpush1.msra.mxu0 0.0
  %950 = vmatprep.subr.mxu0 0.0
  %951 = vmatpush1.msra.mxu0 0.0
  %952 = vmatprep.subr.mxu0 0.0
  %953 = vmatpush1.msra.mxu0 0.0
  %954 = vmatprep.subr.mxu0 0.0
  %955 = vmatpush1.msra.mxu0 0.0
  %956 = vmatprep.subr.mxu0 0.0
  %957 = vmatpush1.msra.mxu0 0.0
  %958 = vmatprep.subr.mxu0 0.0
  %959 = vmatpush1.msra.mxu0 0.0
  %960 = vmatprep.subr.mxu0 0.0
  %961 = vmatpush1.msra.mxu0 0.0
  %962 = vmatprep.mubr.f32.mxu0 0.0
  %v963 = vand.u32 %v67, 4294901760
  %v964 = vsub.f32 %v67, %v963
  %v965 = vand.u32 %v964, 4294901760
  %966 = vmatmul.mubr.f32.gmra.mrb[0].mxu0 %v965
  %v967 = vpop.f32.mrb[0].mxu0
  %v968 = vadd.f32 %v733, %v967
  %v969 = vpop.f32.mrb[0].mxu0
  %970 = vmatprep.mubr.f32.mxu0 0.0
  %v971 = vand.u32 %v70, 4294901760
  %v972 = vsub.f32 %v70, %v971
  %v973 = vand.u32 %v972, 4294901760
  %974 = vmatmul.mubr.f32.gmra.mrb[0].mxu0 %v973
  %v975 = vpop.f32.mrb[0].mxu0
  %v976 = vadd.f32 %v740, %v975
  %v977 = vpop.f32.mrb[0].mxu0
  %978 = vmatprep.mubr.f32.mxu0 0.0
  %v979 = vand.u32 %v73, 4294901760
  %v980 = vsub.f32 %v73, %v979
  %v981 = vand.u32 %v980, 4294901760
  %982 = vmatmul.mubr.f32.gmra.mrb[0].mxu0 %v981
  %v983 = vpop.f32.mrb[0].mxu0
  %v984 = vadd.f32 %v747, %v983
  %v985 = vpop.f32.mrb[0].mxu0
  %986 = vmatprep.mubr.f32.mxu0 0.0
  %v987 = vand.u32 %v76, 4294901760
  %v988 = vsub.f32 %v76, %v987
  %v989 = vand.u32 %v988, 4294901760
  %990 = vmatmul.mubr.f32.gmra.mrb[0].mxu0 %v989
  %v991 = vpop.f32.mrb[0].mxu0
  %v992 = vadd.f32 %v754, %v991
  %v993 = vpop.f32.mrb[0].mxu0
  %994 = vmatprep.mubr.f32.mxu0 0.0
  %v995 = vand.u32 %v79, 4294901760
  %v996 = vsub.f32 %v79, %v995
  %v997 = vand.u32 %v996, 4294901760
  %998 = vmatmul.mubr.f32.gmra.mrb[0].mxu0 %v997
  %v999 = vpop.f32.mrb[0].mxu0
  %v1000 = vadd.f32 %v761, %v999
  %v1001 = vpop.f32.mrb[0].mxu0
  %1002 = vmatprep.mubr.f32.mxu0 0.0
  %v1003 = vand.u32 %v82, 4294901760
  %v1004 = vsub.f32 %v82, %v1003
  %v1005 = vand.u32 %v1004, 4294901760
  %1006 = vmatmul.mubr.f32.gmra.mrb[0].mxu0 %v1005
  %v1007 = vpop.f32.mrb[0].mxu0
  %v1008 = vadd.f32 %v768, %v1007
  %v1009 = vpop.f32.mrb[0].mxu0
  %1010 = vmatprep.mubr.f32.mxu0 0.0
  %v1011 = vand.u32 %v85, 4294901760
  %v1012 = vsub.f32 %v85, %v1011
  %v1013 = vand.u32 %v1012, 4294901760
  %1014 = vmatmul.mubr.f32.gmra.mrb[0].mxu0 %v1013
  %v1015 = vpop.f32.mrb[0].mxu0
  %v1016 = vadd.f32 %v775, %v1015
  %v1017 = vpop.f32.mrb[0].mxu0
  %1018 = vmatprep.mubr.f32.mxu0 0.0
  %v1019 = vand.u32 %v88, 4294901760
  %v1020 = vsub.f32 %v88, %v1019
  %v1021 = vand.u32 %v1020, 4294901760
  %1022 = vmatmul.mubr.f32.gmra.mrb[0].mxu0 %v1021
  %v1023 = vpop.f32.mrb[0].mxu0
  %v1024 = vadd.f32 %v782, %v1023
  %v1025 = vpop.f32.mrb[0].mxu0
  %1026 = vmatprep.mubr.f32.mxu0 0.0
  %v1027 = vand.u32 %v91, 4294901760
  %v1028 = vsub.f32 %v91, %v1027
  %v1029 = vand.u32 %v1028, 4294901760
  %1030 = vmatmul.mubr.f32.gmra.mrb[0].mxu0 %v1029
  %v1031 = vpop.f32.mrb[0].mxu0
  %v1032 = vadd.f32 %v789, %v1031
  %v1033 = vpop.f32.mrb[0].mxu0
  %1034 = vmatprep.mubr.f32.mxu0 0.0
  %v1035 = vand.u32 %v94, 4294901760
  %v1036 = vsub.f32 %v94, %v1035
  %v1037 = vand.u32 %v1036, 4294901760
  %1038 = vmatmul.mubr.f32.gmra.mrb[0].mxu0 %v1037
  %v1039 = vpop.f32.mrb[0].mxu0
  %v1040 = vadd.f32 %v796, %v1039
  %v1041 = vpop.f32.mrb[0].mxu0
  %1042 = vmatprep.mubr.f32.mxu0 0.0
  %v1043 = vand.u32 %v97, 4294901760
  %v1044 = vsub.f32 %v97, %v1043
  %v1045 = vand.u32 %v1044, 4294901760
  %1046 = vmatmul.mubr.f32.gmra.mrb[0].mxu0 %v1045
  %v1047 = vpop.f32.mrb[0].mxu0
  %v1048 = vadd.f32 %v803, %v1047
  %v1049 = vpop.f32.mrb[0].mxu0
  %1050 = vmatprep.mubr.f32.mxu0 0.0
  %v1051 = vand.u32 %v100, 4294901760
  %v1052 = vsub.f32 %v100, %v1051
  %v1053 = vand.u32 %v1052, 4294901760
  %1054 = vmatmul.mubr.f32.gmra.mrb[0].mxu0 %v1053
  %v1055 = vpop.f32.mrb[0].mxu0
  %v1056 = vadd.f32 %v810, %v1055
  %v1057 = vpop.f32.mrb[0].mxu0
  %1058 = vmatprep.mubr.f32.mxu0 0.0
  %v1059 = vand.u32 %v103, 4294901760
  %v1060 = vsub.f32 %v103, %v1059
  %v1061 = vand.u32 %v1060, 4294901760
  %1062 = vmatmul.mubr.f32.gmra.mrb[0].mxu0 %v1061
  %v1063 = vpop.f32.mrb[0].mxu0
  %v1064 = vadd.f32 %v817, %v1063
  %v1065 = vpop.f32.mrb[0].mxu0
  %1066 = vmatprep.mubr.f32.mxu0 0.0
  %v1067 = vand.u32 %v106, 4294901760
  %v1068 = vsub.f32 %v106, %v1067
  %v1069 = vand.u32 %v1068, 4294901760
  %1070 = vmatmul.mubr.f32.gmra.mrb[0].mxu0 %v1069
  %v1071 = vpop.f32.mrb[0].mxu0
  %v1072 = vadd.f32 %v824, %v1071
  %v1073 = vpop.f32.mrb[0].mxu0
  %1074 = vmatprep.mubr.f32.mxu0 0.0
  %v1075 = vand.u32 %v109, 4294901760
  %v1076 = vsub.f32 %v109, %v1075
  %v1077 = vand.u32 %v1076, 4294901760
  %1078 = vmatmul.mubr.f32.gmra.mrb[0].mxu0 %v1077
  %v1079 = vpop.f32.mrb[0].mxu0
  %v1080 = vadd.f32 %v831, %v1079
  %v1081 = vpop.f32.mrb[0].mxu0
  %1082 = vmatprep.mubr.f32.mxu0 0.0
  %v1083 = vand.u32 %v112, 4294901760
  %v1084 = vsub.f32 %v112, %v1083
  %v1085 = vand.u32 %v1084, 4294901760
  %1086 = vmatmul.mubr.f32.gmra.mrb[0].mxu0 %v1085
  %v1087 = vpop.f32.mrb[0].mxu0
  %v1088 = vadd.f32 %v838, %v1087
  %v1089 = vpop.f32.mrb[0].mxu0
  %1090 = vmatprep.mubr.f32.mxu0 0.0
  %v1091 = vand.u32 %v115, 4294901760
  %v1092 = vsub.f32 %v115, %v1091
  %v1093 = vand.u32 %v1092, 4294901760
  %1094 = vmatmul.mubr.f32.gmra.mrb[0].mxu0 %v1093
  %v1095 = vpop.f32.mrb[0].mxu0
  %v1096 = vadd.f32 %v845, %v1095
  %v1097 = vpop.f32.mrb[0].mxu0
  %1098 = vmatprep.mubr.f32.mxu0 0.0
  %v1099 = vand.u32 %v118, 4294901760
  %v1100 = vsub.f32 %v118, %v1099
  %v1101 = vand.u32 %v1100, 4294901760
  %1102 = vmatmul.mubr.f32.gmra.mrb[0].mxu0 %v1101
  %v1103 = vpop.f32.mrb[0].mxu0
  %v1104 = vadd.f32 %v852, %v1103
  %v1105 = vpop.f32.mrb[0].mxu0
  %1106 = vmatprep.mubr.f32.mxu0 0.0
  %v1107 = vand.u32 %v121, 4294901760
  %v1108 = vsub.f32 %v121, %v1107
  %v1109 = vand.u32 %v1108, 4294901760
  %1110 = vmatmul.mubr.f32.gmra.mrb[0].mxu0 %v1109
  %v1111 = vpop.f32.mrb[0].mxu0
  %v1112 = vadd.f32 %v859, %v1111
  %v1113 = vpop.f32.mrb[0].mxu0
  %1114 = vmatprep.mubr.f32.mxu0 0.0
  %v1115 = vand.u32 %v124, 4294901760
  %v1116 = vsub.f32 %v124, %v1115
  %v1117 = vand.u32 %v1116, 4294901760
  %1118 = vmatmul.mubr.f32.gmra.mrb[0].mxu0 %v1117
  %v1119 = vpop.f32.mrb[0].mxu0
  %v1120 = vadd.f32 %v866, %v1119
  %v1121 = vpop.f32.mrb[0].mxu0
  %1122 = vmatprep.mubr.f32.mxu0 0.0
  %v1123 = vand.u32 %v127, 4294901760
  %v1124 = vsub.f32 %v127, %v1123
  %v1125 = vand.u32 %v1124, 4294901760
  %1126 = vmatmul.mubr.f32.gmra.mrb[0].mxu0 %v1125
  %v1127 = vpop.f32.mrb[0].mxu0
  %v1128 = vadd.f32 %v873, %v1127
  %v1129 = vpop.f32.mrb[0].mxu0
  %1130 = vmatprep.mubr.f32.mxu0 0.0
  %v1131 = vand.u32 %v130, 4294901760
  %v1132 = vsub.f32 %v130, %v1131
  %v1133 = vand.u32 %v1132, 4294901760
  %1134 = vmatmul.mubr.f32.gmra.mrb[0].mxu0 %v1133
  %v1135 = vpop.f32.mrb[0].mxu0
  %v1136 = vadd.f32 %v880, %v1135
  %v1137 = vpop.f32.mrb[0].mxu0
  %1138 = vmatprep.mubr.f32.mxu0 0.0
  %v1139 = vand.u32 %v133, 4294901760
  %v1140 = vsub.f32 %v133, %v1139
  %v1141 = vand.u32 %v1140, 4294901760
  %1142 = vmatmul.mubr.f32.gmra.mrb[0].mxu0 %v1141
  %v1143 = vpop.f32.mrb[0].mxu0
  %v1144 = vadd.f32 %v887, %v1143
  %v1145 = vpop.f32.mrb[0].mxu0
  %1146 = vmatprep.mubr.f32.mxu0 0.0
  %v1147 = vand.u32 %v136, 4294901760
  %v1148 = vsub.f32 %v136, %v1147
  %v1149 = vand.u32 %v1148, 4294901760
  %1150 = vmatmul.mubr.f32.gmra.mrb[0].mxu0 %v1149
  %v1151 = vpop.f32.mrb[0].mxu0
  %v1152 = vadd.f32 %v894, %v1151
  %v1153 = vpop.f32.mrb[0].mxu0
  %1154 = vdwg.mxu0
  %1155 = vmatprep.subr.mxu0 0.0
  %v1156 = vand.u32 %v140, 4294901760
  %v1157 = vsub.f32 %v140, %v1156
  %v1158 = vand.u32 %v1157, 4294901760
  %1159 = vmatpush1.msra.mxu0 %v1158
  %1160 = vmatprep.subr.mxu0 0.0
  %1161 = vmatpush1.msra.mxu0 0.0
  %1162 = vmatprep.subr.mxu0 0.0
  %1163 = vmatpush1.msra.mxu0 0.0
  %1164 = vmatprep.subr.mxu0 0.0
  %1165 = vmatpush1.msra.mxu0 0.0
  %1166 = vmatprep.subr.mxu0 0.0
  %1167 = vmatpush1.msra.mxu0 0.0
  %1168 = vmatprep.subr.mxu0 0.0
  %1169 = vmatpush1.msra.mxu0 0.0
  %1170 = vmatprep.subr.mxu0 0.0
  %1171 = vmatpush1.msra.mxu0 0.0
  %1172 = vmatprep.subr.mxu0 0.0
  %1173 = vmatpush1.msra.mxu0 0.0
  %1174 = vmatprep.subr.mxu0 0.0
  %1175 = vmatpush1.msra.mxu0 0.0
  %1176 = vmatprep.subr.mxu0 0.0
  %1177 = vmatpush1.msra.mxu0 0.0
  %1178 = vmatprep.subr.mxu0 0.0
  %1179 = vmatpush1.msra.mxu0 0.0
  %1180 = vmatprep.subr.mxu0 0.0
  %1181 = vmatpush1.msra.mxu0 0.0
  %1182 = vmatprep.subr.mxu0 0.0
  %1183 = vmatpush1.msra.mxu0 0.0
  %1184 = vmatprep.subr.mxu0 0.0
  %1185 = vmatpush1.msra.mxu0 0.0
  %1186 = vmatprep.subr.mxu0 0.0
  %1187 = vmatpush1.msra.mxu0 0.0
  %1188 = vmatprep.subr.mxu0 0.0
  %1189 = vmatpush1.msra.mxu0 0.0
  %1190 = vmatprep.subr.mxu0 0.0
  %1191 = vmatpush1.msra.mxu0 0.0
  %1192 = vmatprep.subr.mxu0 0.0
  %1193 = vmatpush1.msra.mxu0 0.0
  %1194 = vmatprep.subr.mxu0 0.0
  %1195 = vmatpush1.msra.mxu0 0.0
  %1196 = vmatprep.subr.mxu0 0.0
  %1197 = vmatpush1.msra.mxu0 0.0
  %1198 = vmatprep.subr.mxu0 0.0
  %1199 = vmatpush1.msra.mxu0 0.0
  %1200 = vmatprep.subr.mxu0 0.0
  %1201 = vmatpush1.msra.mxu0 0.0
  %1202 = vmatprep.subr.mxu0 0.0
  %1203 = vmatpush1.msra.mxu0 0.0
  %1204 = vmatprep.subr.mxu0 0.0
  %1205 = vmatpush1.msra.mxu0 0.0
  %1206 = vmatprep.subr.mxu0 0.0
  %1207 = vmatpush1.msra.mxu0 0.0
  %1208 = vmatprep.subr.mxu0 0.0
  %1209 = vmatpush1.msra.mxu0 0.0
  %1210 = vmatprep.subr.mxu0 0.0
  %1211 = vmatpush1.msra.mxu0 0.0
  %1212 = vmatprep.subr.mxu0 0.0
  %1213 = vmatpush1.msra.mxu0 0.0
  %1214 = vmatprep.subr.mxu0 0.0
  %1215 = vmatpush1.msra.mxu0 0.0
  %1216 = vmatprep.subr.mxu0 0.0
  %1217 = vmatpush1.msra.mxu0 0.0
  %1218 = vmatprep.subr.mxu0 0.0
  %1219 = vmatpush1.msra.mxu0 0.0
  %1220 = vmatprep.subr.mxu0 0.0
  %1221 = vmatpush1.msra.mxu0 0.0
  %1222 = vmatprep.mubr.f32.mxu0 0.0
  %v1223 = vand.u32 %v67, 4294901760
  %1224 = vmatmul.mubr.f32.gmra.mrb[0].mxu0 %v1223
  %v1225 = vpop.f32.mrb[0].mxu0
  %v1226 = vadd.f32 %v968, %v1225
  %v1227 = vpop.f32.mrb[0].mxu0
  %1228 = vmatprep.mubr.f32.mxu0 0.0
  %v1229 = vand.u32 %v70, 4294901760
  %1230 = vmatmul.mubr.f32.gmra.mrb[0].mxu0 %v1229
  %v1231 = vpop.f32.mrb[0].mxu0
  %v1232 = vadd.f32 %v976, %v1231
  %v1233 = vpop.f32.mrb[0].mxu0
  %1234 = vmatprep.mubr.f32.mxu0 0.0
  %v1235 = vand.u32 %v73, 4294901760
  %1236 = vmatmul.mubr.f32.gmra.mrb[0].mxu0 %v1235
  %v1237 = vpop.f32.mrb[0].mxu0
  %v1238 = vadd.f32 %v984, %v1237
  %v1239 = vpop.f32.mrb[0].mxu0
  %1240 = vmatprep.mubr.f32.mxu0 0.0
  %v1241 = vand.u32 %v76, 4294901760
  %1242 = vmatmul.mubr.f32.gmra.mrb[0].mxu0 %v1241
  %v1243 = vpop.f32.mrb[0].mxu0
  %v1244 = vadd.f32 %v992, %v1243
  %v1245 = vpop.f32.mrb[0].mxu0
  %1246 = vmatprep.mubr.f32.mxu0 0.0
  %v1247 = vand.u32 %v79, 4294901760
  %1248 = vmatmul.mubr.f32.gmra.mrb[0].mxu0 %v1247
  %v1249 = vpop.f32.mrb[0].mxu0
  %v1250 = vadd.f32 %v1000, %v1249
  %v1251 = vpop.f32.mrb[0].mxu0
  %1252 = vmatprep.mubr.f32.mxu0 0.0
  %v1253 = vand.u32 %v82, 4294901760
  %1254 = vmatmul.mubr.f32.gmra.mrb[0].mxu0 %v1253
  %v1255 = vpop.f32.mrb[0].mxu0
  %v1256 = vadd.f32 %v1008, %v1255
  %v1257 = vpop.f32.mrb[0].mxu0
  %1258 = vmatprep.mubr.f32.mxu0 0.0
  %v1259 = vand.u32 %v85, 4294901760
  %1260 = vmatmul.mubr.f32.gmra.mrb[0].mxu0 %v1259
  %v1261 = vpop.f32.mrb[0].mxu0
  %v1262 = vadd.f32 %v1016, %v1261
  %v1263 = vpop.f32.mrb[0].mxu0
  %1264 = vmatprep.mubr.f32.mxu0 0.0
  %v1265 = vand.u32 %v88, 4294901760
  %1266 = vmatmul.mubr.f32.gmra.mrb[0].mxu0 %v1265
  %v1267 = vpop.f32.mrb[0].mxu0
  %v1268 = vadd.f32 %v1024, %v1267
  %v1269 = vpop.f32.mrb[0].mxu0
  %1270 = vmatprep.mubr.f32.mxu0 0.0
  %v1271 = vand.u32 %v91, 4294901760
  %1272 = vmatmul.mubr.f32.gmra.mrb[0].mxu0 %v1271
  %v1273 = vpop.f32.mrb[0].mxu0
  %v1274 = vadd.f32 %v1032, %v1273
  %v1275 = vpop.f32.mrb[0].mxu0
  %1276 = vmatprep.mubr.f32.mxu0 0.0
  %v1277 = vand.u32 %v94, 4294901760
  %1278 = vmatmul.mubr.f32.gmra.mrb[0].mxu0 %v1277
  %v1279 = vpop.f32.mrb[0].mxu0
  %v1280 = vadd.f32 %v1040, %v1279
  %v1281 = vpop.f32.mrb[0].mxu0
  %1282 = vmatprep.mubr.f32.mxu0 0.0
  %v1283 = vand.u32 %v97, 4294901760
  %1284 = vmatmul.mubr.f32.gmra.mrb[0].mxu0 %v1283
  %v1285 = vpop.f32.mrb[0].mxu0
  %v1286 = vadd.f32 %v1048, %v1285
  %v1287 = vpop.f32.mrb[0].mxu0
  %1288 = vmatprep.mubr.f32.mxu0 0.0
  %v1289 = vand.u32 %v100, 4294901760
  %1290 = vmatmul.mubr.f32.gmra.mrb[0].mxu0 %v1289
  %v1291 = vpop.f32.mrb[0].mxu0
  %v1292 = vadd.f32 %v1056, %v1291
  %v1293 = vpop.f32.mrb[0].mxu0
  %1294 = vmatprep.mubr.f32.mxu0 0.0
  %v1295 = vand.u32 %v103, 4294901760
  %1296 = vmatmul.mubr.f32.gmra.mrb[0].mxu0 %v1295
  %v1297 = vpop.f32.mrb[0].mxu0
  %v1298 = vadd.f32 %v1064, %v1297
  %v1299 = vpop.f32.mrb[0].mxu0
  %1300 = vmatprep.mubr.f32.mxu0 0.0
  %v1301 = vand.u32 %v106, 4294901760
  %1302 = vmatmul.mubr.f32.gmra.mrb[0].mxu0 %v1301
  %v1303 = vpop.f32.mrb[0].mxu0
  %v1304 = vadd.f32 %v1072, %v1303
  %v1305 = vpop.f32.mrb[0].mxu0
  %1306 = vmatprep.mubr.f32.mxu0 0.0
  %v1307 = vand.u32 %v109, 4294901760
  %1308 = vmatmul.mubr.f32.gmra.mrb[0].mxu0 %v1307
  %v1309 = vpop.f32.mrb[0].mxu0
  %v1310 = vadd.f32 %v1080, %v1309
  %v1311 = vpop.f32.mrb[0].mxu0
  %1312 = vmatprep.mubr.f32.mxu0 0.0
  %v1313 = vand.u32 %v112, 4294901760
  %1314 = vmatmul.mubr.f32.gmra.mrb[0].mxu0 %v1313
  %v1315 = vpop.f32.mrb[0].mxu0
  %v1316 = vadd.f32 %v1088, %v1315
  %v1317 = vpop.f32.mrb[0].mxu0
  %1318 = vmatprep.mubr.f32.mxu0 0.0
  %v1319 = vand.u32 %v115, 4294901760
  %1320 = vmatmul.mubr.f32.gmra.mrb[0].mxu0 %v1319
  %v1321 = vpop.f32.mrb[0].mxu0
  %v1322 = vadd.f32 %v1096, %v1321
  %v1323 = vpop.f32.mrb[0].mxu0
  %1324 = vmatprep.mubr.f32.mxu0 0.0
  %v1325 = vand.u32 %v118, 4294901760
  %1326 = vmatmul.mubr.f32.gmra.mrb[0].mxu0 %v1325
  %v1327 = vpop.f32.mrb[0].mxu0
  %v1328 = vadd.f32 %v1104, %v1327
  %v1329 = vpop.f32.mrb[0].mxu0
  %1330 = vmatprep.mubr.f32.mxu0 0.0
  %v1331 = vand.u32 %v121, 4294901760
  %1332 = vmatmul.mubr.f32.gmra.mrb[0].mxu0 %v1331
  %v1333 = vpop.f32.mrb[0].mxu0
  %v1334 = vadd.f32 %v1112, %v1333
  %v1335 = vpop.f32.mrb[0].mxu0
  %1336 = vmatprep.mubr.f32.mxu0 0.0
  %v1337 = vand.u32 %v124, 4294901760
  %1338 = vmatmul.mubr.f32.gmra.mrb[0].mxu0 %v1337
  %v1339 = vpop.f32.mrb[0].mxu0
  %v1340 = vadd.f32 %v1120, %v1339
  %v1341 = vpop.f32.mrb[0].mxu0
  %1342 = vmatprep.mubr.f32.mxu0 0.0
  %v1343 = vand.u32 %v127, 4294901760
  %1344 = vmatmul.mubr.f32.gmra.mrb[0].mxu0 %v1343
  %v1345 = vpop.f32.mrb[0].mxu0
  %v1346 = vadd.f32 %v1128, %v1345
  %v1347 = vpop.f32.mrb[0].mxu0
  %1348 = vmatprep.mubr.f32.mxu0 0.0
  %v1349 = vand.u32 %v130, 4294901760
  %1350 = vmatmul.mubr.f32.gmra.mrb[0].mxu0 %v1349
  %v1351 = vpop.f32.mrb[0].mxu0
  %v1352 = vadd.f32 %v1136, %v1351
  %v1353 = vpop.f32.mrb[0].mxu0
  %1354 = vmatprep.mubr.f32.mxu0 0.0
  %v1355 = vand.u32 %v133, 4294901760
  %1356 = vmatmul.mubr.f32.gmra.mrb[0].mxu0 %v1355
  %v1357 = vpop.f32.mrb[0].mxu0
  %v1358 = vadd.f32 %v1144, %v1357
  %v1359 = vpop.f32.mrb[0].mxu0
  %1360 = vmatprep.mubr.f32.mxu0 0.0
  %v1361 = vand.u32 %v136, 4294901760
  %1362 = vmatmul.mubr.f32.gmra.mrb[0].mxu0 %v1361
  %v1363 = vpop.f32.mrb[0].mxu0
  %v1364 = vadd.f32 %v1152, %v1363
  %v1365 = vpop.f32.mrb[0].mxu0
  %1366 = vdwg.mxu0
  %1367 = vmatprep.subr.mxu0 0.0
  %v1368 = vand.u32 %v140, 4294901760
  %1369 = vmatpush1.msra.mxu0 %v1368
  %1370 = vmatprep.subr.mxu0 0.0
  %1371 = vmatpush1.msra.mxu0 0.0
  %1372 = vmatprep.subr.mxu0 0.0
  %1373 = vmatpush1.msra.mxu0 0.0
  %1374 = vmatprep.subr.mxu0 0.0
  %1375 = vmatpush1.msra.mxu0 0.0
  %1376 = vmatprep.subr.mxu0 0.0
  %1377 = vmatpush1.msra.mxu0 0.0
  %1378 = vmatprep.subr.mxu0 0.0
  %1379 = vmatpush1.msra.mxu0 0.0
  %1380 = vmatprep.subr.mxu0 0.0
  %1381 = vmatpush1.msra.mxu0 0.0
  %1382 = vmatprep.subr.mxu0 0.0
  %1383 = vmatpush1.msra.mxu0 0.0
  %1384 = vmatprep.subr.mxu0 0.0
  %1385 = vmatpush1.msra.mxu0 0.0
  %1386 = vmatprep.subr.mxu0 0.0
  %1387 = vmatpush1.msra.mxu0 0.0
  %1388 = vmatprep.subr.mxu0 0.0
  %1389 = vmatpush1.msra.mxu0 0.0
  %1390 = vmatprep.subr.mxu0 0.0
  %1391 = vmatpush1.msra.mxu0 0.0
  %1392 = vmatprep.subr.mxu0 0.0
  %1393 = vmatpush1.msra.mxu0 0.0
  %1394 = vmatprep.subr.mxu0 0.0
  %1395 = vmatpush1.msra.mxu0 0.0
  %1396 = vmatprep.subr.mxu0 0.0
  %1397 = vmatpush1.msra.mxu0 0.0
  %1398 = vmatprep.subr.mxu0 0.0
  %1399 = vmatpush1.msra.mxu0 0.0
  %1400 = vmatprep.subr.mxu0 0.0
  %1401 = vmatpush1.msra.mxu0 0.0
  %1402 = vmatprep.subr.mxu0 0.0
  %1403 = vmatpush1.msra.mxu0 0.0
  %1404 = vmatprep.subr.mxu0 0.0
  %1405 = vmatpush1.msra.mxu0 0.0
  %1406 = vmatprep.subr.mxu0 0.0
  %1407 = vmatpush1.msra.mxu0 0.0
  %1408 = vmatprep.subr.mxu0 0.0
  %1409 = vmatpush1.msra.mxu0 0.0
  %1410 = vmatprep.subr.mxu0 0.0
  %1411 = vmatpush1.msra.mxu0 0.0
  %1412 = vmatprep.subr.mxu0 0.0
  %1413 = vmatpush1.msra.mxu0 0.0
  %1414 = vmatprep.subr.mxu0 0.0
  %1415 = vmatpush1.msra.mxu0 0.0
  %1416 = vmatprep.subr.mxu0 0.0
  %1417 = vmatpush1.msra.mxu0 0.0
  %1418 = vmatprep.subr.mxu0 0.0
  %1419 = vmatpush1.msra.mxu0 0.0
  %1420 = vmatprep.subr.mxu0 0.0
  %1421 = vmatpush1.msra.mxu0 0.0
  %1422 = vmatprep.subr.mxu0 0.0
  %1423 = vmatpush1.msra.mxu0 0.0
  %1424 = vmatprep.subr.mxu0 0.0
  %1425 = vmatpush1.msra.mxu0 0.0
  %1426 = vmatprep.subr.mxu0 0.0
  %1427 = vmatpush1.msra.mxu0 0.0
  %1428 = vmatprep.subr.mxu0 0.0
  %1429 = vmatpush1.msra.mxu0 0.0
  %1430 = vmatprep.subr.mxu0 0.0
  %1431 = vmatpush1.msra.mxu0 0.0
  %1432 = vmatprep.mubr.f32.mxu0 0.0
  %v1433 = vand.u32 %v67, 4294901760
  %1434 = vmatmul.mubr.f32.gmra.mrb[0].mxu0 %v1433
  %v1435 = vpop.f32.mrb[0].mxu0
  %v1436 = vadd.f32 %v1226, %v1435
  %v1437 = vpop.f32.mrb[0].mxu0
  %1438 = vmatprep.mubr.f32.mxu0 0.0
  %v1439 = vand.u32 %v70, 4294901760
  %1440 = vmatmul.mubr.f32.gmra.mrb[0].mxu0 %v1439
  %v1441 = vpop.f32.mrb[0].mxu0
  %v1442 = vadd.f32 %v1232, %v1441
  %v1443 = vpop.f32.mrb[0].mxu0
  %1444 = vmatprep.mubr.f32.mxu0 0.0
  %v1445 = vand.u32 %v73, 4294901760
  %1446 = vmatmul.mubr.f32.gmra.mrb[0].mxu0 %v1445
  %v1447 = vpop.f32.mrb[0].mxu0
  %v1448 = vadd.f32 %v1238, %v1447
  %v1449 = vpop.f32.mrb[0].mxu0
  %1450 = vmatprep.mubr.f32.mxu0 0.0
  %v1451 = vand.u32 %v76, 4294901760
  %1452 = vmatmul.mubr.f32.gmra.mrb[0].mxu0 %v1451
  %v1453 = vpop.f32.mrb[0].mxu0
  %v1454 = vadd.f32 %v1244, %v1453
  %v1455 = vpop.f32.mrb[0].mxu0
  %1456 = vmatprep.mubr.f32.mxu0 0.0
  %v1457 = vand.u32 %v79, 4294901760
  %1458 = vmatmul.mubr.f32.gmra.mrb[0].mxu0 %v1457
  %v1459 = vpop.f32.mrb[0].mxu0
  %v1460 = vadd.f32 %v1250, %v1459
  %v1461 = vpop.f32.mrb[0].mxu0
  %1462 = vmatprep.mubr.f32.mxu0 0.0
  %v1463 = vand.u32 %v82, 4294901760
  %1464 = vmatmul.mubr.f32.gmra.mrb[0].mxu0 %v1463
  %v1465 = vpop.f32.mrb[0].mxu0
  %v1466 = vadd.f32 %v1256, %v1465
  %v1467 = vpop.f32.mrb[0].mxu0
  %1468 = vmatprep.mubr.f32.mxu0 0.0
  %v1469 = vand.u32 %v85, 4294901760
  %1470 = vmatmul.mubr.f32.gmra.mrb[0].mxu0 %v1469
  %v1471 = vpop.f32.mrb[0].mxu0
  %v1472 = vadd.f32 %v1262, %v1471
  %v1473 = vpop.f32.mrb[0].mxu0
  %1474 = vmatprep.mubr.f32.mxu0 0.0
  %v1475 = vand.u32 %v88, 4294901760
  %1476 = vmatmul.mubr.f32.gmra.mrb[0].mxu0 %v1475
  %v1477 = vpop.f32.mrb[0].mxu0
  %v1478 = vadd.f32 %v1268, %v1477
  %v1479 = vpop.f32.mrb[0].mxu0
  %1480 = vmatprep.mubr.f32.mxu0 0.0
  %v1481 = vand.u32 %v91, 4294901760
  %1482 = vmatmul.mubr.f32.gmra.mrb[0].mxu0 %v1481
  %v1483 = vpop.f32.mrb[0].mxu0
  %v1484 = vadd.f32 %v1274, %v1483
  %v1485 = vpop.f32.mrb[0].mxu0
  %1486 = vmatprep.mubr.f32.mxu0 0.0
  %v1487 = vand.u32 %v94, 4294901760
  %1488 = vmatmul.mubr.f32.gmra.mrb[0].mxu0 %v1487
  %v1489 = vpop.f32.mrb[0].mxu0
  %v1490 = vadd.f32 %v1280, %v1489
  %v1491 = vpop.f32.mrb[0].mxu0
  %1492 = vmatprep.mubr.f32.mxu0 0.0
  %v1493 = vand.u32 %v97, 4294901760
  %1494 = vmatmul.mubr.f32.gmra.mrb[0].mxu0 %v1493
  %v1495 = vpop.f32.mrb[0].mxu0
  %v1496 = vadd.f32 %v1286, %v1495
  %v1497 = vpop.f32.mrb[0].mxu0
  %1498 = vmatprep.mubr.f32.mxu0 0.0
  %v1499 = vand.u32 %v100, 4294901760
  %1500 = vmatmul.mubr.f32.gmra.mrb[0].mxu0 %v1499
  %v1501 = vpop.f32.mrb[0].mxu0
  %v1502 = vadd.f32 %v1292, %v1501
  %v1503 = vpop.f32.mrb[0].mxu0
  %1504 = vmatprep.mubr.f32.mxu0 0.0
  %v1505 = vand.u32 %v103, 4294901760
  %1506 = vmatmul.mubr.f32.gmra.mrb[0].mxu0 %v1505
  %v1507 = vpop.f32.mrb[0].mxu0
  %v1508 = vadd.f32 %v1298, %v1507
  %v1509 = vpop.f32.mrb[0].mxu0
  %1510 = vmatprep.mubr.f32.mxu0 0.0
  %v1511 = vand.u32 %v106, 4294901760
  %1512 = vmatmul.mubr.f32.gmra.mrb[0].mxu0 %v1511
  %v1513 = vpop.f32.mrb[0].mxu0
  %v1514 = vadd.f32 %v1304, %v1513
  %v1515 = vpop.f32.mrb[0].mxu0
  %1516 = vmatprep.mubr.f32.mxu0 0.0
  %v1517 = vand.u32 %v109, 4294901760
  %1518 = vmatmul.mubr.f32.gmra.mrb[0].mxu0 %v1517
  %v1519 = vpop.f32.mrb[0].mxu0
  %v1520 = vadd.f32 %v1310, %v1519
  %v1521 = vpop.f32.mrb[0].mxu0
  %1522 = vmatprep.mubr.f32.mxu0 0.0
  %v1523 = vand.u32 %v112, 4294901760
  %1524 = vmatmul.mubr.f32.gmra.mrb[0].mxu0 %v1523
  %v1525 = vpop.f32.mrb[0].mxu0
  %v1526 = vadd.f32 %v1316, %v1525
  %v1527 = vpop.f32.mrb[0].mxu0
  %1528 = vmatprep.mubr.f32.mxu0 0.0
  %v1529 = vand.u32 %v115, 4294901760
  %1530 = vmatmul.mubr.f32.gmra.mrb[0].mxu0 %v1529
  %v1531 = vpop.f32.mrb[0].mxu0
  %v1532 = vadd.f32 %v1322, %v1531
  %v1533 = vpop.f32.mrb[0].mxu0
  %1534 = vmatprep.mubr.f32.mxu0 0.0
  %v1535 = vand.u32 %v118, 4294901760
  %1536 = vmatmul.mubr.f32.gmra.mrb[0].mxu0 %v1535
  %v1537 = vpop.f32.mrb[0].mxu0
  %v1538 = vadd.f32 %v1328, %v1537
  %v1539 = vpop.f32.mrb[0].mxu0
  %1540 = vmatprep.mubr.f32.mxu0 0.0
  %v1541 = vand.u32 %v121, 4294901760
  %1542 = vmatmul.mubr.f32.gmra.mrb[0].mxu0 %v1541
  %v1543 = vpop.f32.mrb[0].mxu0
  %v1544 = vadd.f32 %v1334, %v1543
  %v1545 = vpop.f32.mrb[0].mxu0
  %1546 = vmatprep.mubr.f32.mxu0 0.0
  %v1547 = vand.u32 %v124, 4294901760
  %1548 = vmatmul.mubr.f32.gmra.mrb[0].mxu0 %v1547
  %v1549 = vpop.f32.mrb[0].mxu0
  %v1550 = vadd.f32 %v1340, %v1549
  %v1551 = vpop.f32.mrb[0].mxu0
  %1552 = vmatprep.mubr.f32.mxu0 0.0
  %v1553 = vand.u32 %v127, 4294901760
  %1554 = vmatmul.mubr.f32.gmra.mrb[0].mxu0 %v1553
  %v1555 = vpop.f32.mrb[0].mxu0
  %v1556 = vadd.f32 %v1346, %v1555
  %v1557 = vpop.f32.mrb[0].mxu0
  %1558 = vmatprep.mubr.f32.mxu0 0.0
  %v1559 = vand.u32 %v130, 4294901760
  %1560 = vmatmul.mubr.f32.gmra.mrb[0].mxu0 %v1559
  %v1561 = vpop.f32.mrb[0].mxu0
  %v1562 = vadd.f32 %v1352, %v1561
  %v1563 = vpop.f32.mrb[0].mxu0
  %1564 = vmatprep.mubr.f32.mxu0 0.0
  %v1565 = vand.u32 %v133, 4294901760
  %1566 = vmatmul.mubr.f32.gmra.mrb[0].mxu0 %v1565
  %v1567 = vpop.f32.mrb[0].mxu0
  %v1568 = vadd.f32 %v1358, %v1567
  %v1569 = vpop.f32.mrb[0].mxu0
  %1570 = vmatprep.mubr.f32.mxu0 0.0
  %v1571 = vand.u32 %v136, 4294901760
  %1572 = vmatmul.mubr.f32.gmra.mrb[0].mxu0 %v1571
  %v1573 = vpop.f32.mrb[0].mxu0
  %v1574 = vadd.f32 %v1364, %v1573
  %v1575 = vpop.f32.mrb[0].mxu0
  %1576 = vdwg.mxu0
  %v1577 = vmax.f32 %v1436, %v1508
  %v1578 = vmax.f32 %v1442, %v1514
  %v1579 = vmax.f32 %v1448, %v1520
  %v1580 = vmax.f32 %v1454, %v1526
  %v1581 = vmax.f32 %v1460, %v1532
  %v1582 = vmax.f32 %v1466, %v1538
  %v1583 = vmax.f32 %v1472, %v1544
  %v1584 = vmax.f32 %v1478, %v1550
  %v1585 = vmax.f32 %v1484, %v1556
  %v1586 = vmax.f32 %v1490, %v1562
  %v1587 = vmax.f32 %v1496, %v1568
  %v1588 = vmax.f32 %v1502, %v1574
  %v1589 = vld [vmem:[%s2] sm:$0x1]
  %v1591 = vlaneseq
  %v1592 = vshrl.u32 %v1591, 7
  %v1593 = vsub.s32 0, %v1592
  %v1594 = vrot.slane %v1589, %v1593
  %v1596 = vadd.f32 %v1577, %v1594
  %v1597 = vadd.f32 %v1578, %v1594
  %v1598 = vadd.f32 %v1579, %v1594
  %v1599 = vadd.f32 %v1580, %v1594
  %v1600 = vadd.f32 %v1581, %v1594
  %v1601 = vadd.f32 %v1582, %v1594
  %v1602 = vadd.f32 %v1583, %v1594
  %v1603 = vadd.f32 %v1584, %v1594
  %v1604 = vadd.f32 %v1585, %v1594
  %v1605 = vadd.f32 %v1586, %v1594
  %v1606 = vadd.f32 %v1587, %v1594
  %v1607 = vadd.f32 %v1588, %v1594
  %vm1611 = vcmask 1045504
  %v1612 = vrot.slane %v1605, 2
  %v1613 = vrot.slane %v1606, 2
  %v1614 = vsel %vm1611, %v1612, %v1613
  %v1615 = vrot.slane %v1607, 2
  %v1616 = vsel %vm1611, %v1613, %v1615
  %vm1620 = vcmask 1041408
  %v1621 = vsel %vm1620, 0.0, %v1607
  %v1622 = vsel %vm1611, %v1621, %v1612
  %1626 = vrot.lane.b32.xlu0 %v1596, 32
  %v1627 = vpop.permute.xlu0 %1626
  %1628 = vrot.lane.b32.xlu0 %v1597, 32
  %v1629 = vpop.permute.xlu0 %1628
  %1630 = vrot.lane.b32.xlu0 %v1598, 32
  %v1631 = vpop.permute.xlu0 %1630
  %1638 = vrot.lane.b32.xlu0 %v1599, 64
  %v1639 = vpop.permute.xlu0 %1638
  %1640 = vrot.lane.b32.xlu0 %v1600, 64
  %v1641 = vpop.permute.xlu0 %1640
  %1642 = vrot.lane.b32.xlu0 %v1601, 64
  %v1643 = vpop.permute.xlu0 %1642
  %vm1647 = vcmask 261120
  %v1648 = vsel %vm1647, %v1622, %v1627
  %v1649 = vsel %vm1647, %v1614, %v1629
  %v1650 = vsel %vm1647, %v1616, %v1631
  %vm1651 = vcmask 523264
  %v1652 = vsel %vm1651, %v1648, %v1639
  %v1653 = vsel %vm1651, %v1649, %v1641
  %v1654 = vsel %vm1651, %v1650, %v1643
  %1658 = vrot.lane.b32.xlu0 %v1602, 32
  %v1659 = vpop.permute.xlu0 %1658
  %1660 = vrot.lane.b32.xlu0 %v1603, 32
  %v1661 = vpop.permute.xlu0 %1660
  %1662 = vrot.lane.b32.xlu0 %v1604, 32
  %v1663 = vpop.permute.xlu0 %1662
  %1667 = vrot.lane.b32.xlu0 %v1605, 64
  %v1668 = vpop.permute.xlu0 %1667
  %1669 = vrot.lane.b32.xlu0 %v1606, 64
  %v1670 = vpop.permute.xlu0 %1669
  %1671 = vrot.lane.b32.xlu0 %v1607, 64
  %v1672 = vpop.permute.xlu0 %1671
  %v1676 = vsel %vm1647, %v1599, %v1659
  %v1677 = vsel %vm1647, %v1600, %v1661
  %v1678 = vsel %vm1647, %v1601, %v1663
  %v1679 = vsel %vm1651, %v1676, %v1668
  %v1680 = vsel %vm1651, %v1677, %v1670
  %v1681 = vsel %vm1651, %v1678, %v1672
  %v1682 = vld [vmem:[%s3] sm:$0xff]
  %v1683 = vld [vmem:[%s3 + $0x8] sm:$0xff]
  %v1684 = vld [vmem:[%s3 + $0x10] sm:$0xff]
  %v1685 = vld [vmem:[%s3 + $0x18] sm:$0xff]
  %v1686 = vld [vmem:[%s3 + $0x20] sm:$0xff]
  %v1687 = vld [vmem:[%s3 + $0x28] sm:$0xff]
  %v1688 = vld [vmem:[%s3 + $0x30] sm:$0xff]
  %v1689 = vld [vmem:[%s3 + $0x38] sm:$0xff]
  %v1690 = vld [vmem:[%s3 + $0x40] sm:$0xff]
  %v1691 = vld [vmem:[%s3 + $0x48] sm:$0xff]
  %v1692 = vld [vmem:[%s3 + $0x50] sm:$0xff]
  %v1693 = vld [vmem:[%s3 + $0x58] sm:$0xff]
  %vm1694 = vcmask 785408
  %v1696 = vsel %vm1694, %v1652, 0
  %v1699 = vsel %vm1694, %v1653, 0
  %v1702 = vsel %vm1694, %v1654, 0
  %v1705 = vsel %vm1694, %v1679, 0
  %v1708 = vsel %vm1694, %v1680, 0
  %v1711 = vsel %vm1694, %v1681, 0
  %1713 = vmatprep.subr.mxu0 0.0
  %v1714 = vand.u32 %v1682, 4294901760
  %1715 = vmatpush1.msra.mxu0 %v1714
  %1716 = vmatprep.subr.mxu0 0.0
  %v1717 = vand.u32 %v1683, 4294901760
  %1718 = vmatpush1.msra.mxu0 %v1717
  %1719 = vmatprep.subr.mxu0 0.0
  %v1720 = vand.u32 %v1684, 4294901760
  %1721 = vmatpush1.msra.mxu0 %v1720
  %1722 = vmatprep.subr.mxu0 0.0
  %v1723 = vand.u32 %v1685, 4294901760
  %1724 = vmatpush1.msra.mxu0 %v1723
  %1725 = vmatprep.subr.mxu0 0.0
  %v1726 = vand.u32 %v1686, 4294901760
  %1727 = vmatpush1.msra.mxu0 %v1726
  %1728 = vmatprep.subr.mxu0 0.0
  %v1729 = vand.u32 %v1687, 4294901760
  %1730 = vmatpush1.msra.mxu0 %v1729
  %1731 = vmatprep.subr.mxu0 0.0
  %v1732 = vand.u32 %v1688, 4294901760
  %1733 = vmatpush1.msra.mxu0 %v1732
  %1734 = vmatprep.subr.mxu0 0.0
  %v1735 = vand.u32 %v1689, 4294901760
  %1736 = vmatpush1.msra.mxu0 %v1735
  %1737 = vmatprep.subr.mxu0 0.0
  %v1738 = vand.u32 %v1690, 4294901760
  %1739 = vmatpush1.msra.mxu0 %v1738
  %1740 = vmatprep.subr.mxu0 0.0
  %v1741 = vand.u32 %v1691, 4294901760
  %1742 = vmatpush1.msra.mxu0 %v1741
  %1743 = vmatprep.subr.mxu0 0.0
  %v1744 = vand.u32 %v1692, 4294901760
  %1745 = vmatpush1.msra.mxu0 %v1744
  %1746 = vmatprep.subr.mxu0 0.0
  %v1747 = vand.u32 %v1693, 4294901760
  %1748 = vmatpush1.msra.mxu0 %v1747
  %1749 = vmatprep.subr.mxu0 0.0
  %1750 = vmatpush1.msra.mxu0 0.0
  %1751 = vmatprep.subr.mxu0 0.0
  %1752 = vmatpush1.msra.mxu0 0.0
  %1753 = vmatprep.subr.mxu0 0.0
  %1754 = vmatpush1.msra.mxu0 0.0
  %1755 = vmatprep.subr.mxu0 0.0
  %1756 = vmatpush1.msra.mxu0 0.0
  %1757 = vmatprep.subr.mxu0 0.0
  %1758 = vmatpush1.msra.mxu0 0.0
  %1759 = vmatprep.subr.mxu0 0.0
  %1760 = vmatpush1.msra.mxu0 0.0
  %1761 = vmatprep.subr.mxu0 0.0
  %1762 = vmatpush1.msra.mxu0 0.0
  %1763 = vmatprep.subr.mxu0 0.0
  %1764 = vmatpush1.msra.mxu0 0.0
  %1765 = vmatprep.subr.mxu0 0.0
  %1766 = vmatpush1.msra.mxu0 0.0
  %1767 = vmatprep.subr.mxu0 0.0
  %1768 = vmatpush1.msra.mxu0 0.0
  %1769 = vmatprep.subr.mxu0 0.0
  %1770 = vmatpush1.msra.mxu0 0.0
  %1771 = vmatprep.subr.mxu0 0.0
  %1772 = vmatpush1.msra.mxu0 0.0
  %1773 = vmatprep.subr.mxu0 0.0
  %1774 = vmatpush1.msra.mxu0 0.0
  %1775 = vmatprep.subr.mxu0 0.0
  %1776 = vmatpush1.msra.mxu0 0.0
  %1777 = vmatprep.subr.mxu0 0.0
  %1778 = vmatpush1.msra.mxu0 0.0
  %1779 = vmatprep.subr.mxu0 0.0
  %1780 = vmatpush1.msra.mxu0 0.0
  %1781 = vmatprep.subr.mxu0 0.0
  %1782 = vmatpush1.msra.mxu0 0.0
  %1783 = vmatprep.subr.mxu0 0.0
  %1784 = vmatpush1.msra.mxu0 0.0
  %1785 = vmatprep.subr.mxu0 0.0
  %1786 = vmatpush1.msra.mxu0 0.0
  %1787 = vmatprep.subr.mxu0 0.0
  %1788 = vmatpush1.msra.mxu0 0.0
  %1789 = vmatprep.mubr.f32.mxu0 0.0
  %v1790 = vand.u32 %v1696, 4294901760
  %v1791 = vsub.f32 %v1696, %v1790
  %v1792 = vand.u32 %v1791, 4294901760
  %v1793 = vsub.f32 %v1791, %v1792
  %v1794 = vand.u32 %v1793, 4294901760
  %1795 = vmatmul.mubr.f32.gmra.mrb[0].mxu0 %v1794
  %v1796 = vpop.f32.mrb[0].mxu0
  %v1797 = vadd.f32 0.0, %v1796
  %v1798 = vpop.f32.mrb[0].mxu0
  %1799 = vmatprep.mubr.f32.mxu0 0.0
  %v1800 = vand.u32 %v1699, 4294901760
  %v1801 = vsub.f32 %v1699, %v1800
  %v1802 = vand.u32 %v1801, 4294901760
  %v1803 = vsub.f32 %v1801, %v1802
  %v1804 = vand.u32 %v1803, 4294901760
  %1805 = vmatmul.mubr.f32.gmra.mrb[0].mxu0 %v1804
  %v1806 = vpop.f32.mrb[0].mxu0
  %v1807 = vadd.f32 0.0, %v1806
  %v1808 = vpop.f32.mrb[0].mxu0
  %1809 = vmatprep.mubr.f32.mxu0 0.0
  %v1810 = vand.u32 %v1702, 4294901760
  %v1811 = vsub.f32 %v1702, %v1810
  %v1812 = vand.u32 %v1811, 4294901760
  %v1813 = vsub.f32 %v1811, %v1812
  %v1814 = vand.u32 %v1813, 4294901760
  %1815 = vmatmul.mubr.f32.gmra.mrb[0].mxu0 %v1814
  %v1816 = vpop.f32.mrb[0].mxu0
  %v1817 = vadd.f32 0.0, %v1816
  %v1818 = vpop.f32.mrb[0].mxu0
  %1819 = vmatprep.mubr.f32.mxu0 0.0
  %v1820 = vand.u32 %v1705, 4294901760
  %v1821 = vsub.f32 %v1705, %v1820
  %v1822 = vand.u32 %v1821, 4294901760
  %v1823 = vsub.f32 %v1821, %v1822
  %v1824 = vand.u32 %v1823, 4294901760
  %1825 = vmatmul.mubr.f32.gmra.mrb[0].mxu0 %v1824
  %v1826 = vpop.f32.mrb[0].mxu0
  %v1827 = vadd.f32 0.0, %v1826
  %v1828 = vpop.f32.mrb[0].mxu0
  %1829 = vmatprep.mubr.f32.mxu0 0.0
  %v1830 = vand.u32 %v1708, 4294901760
  %v1831 = vsub.f32 %v1708, %v1830
  %v1832 = vand.u32 %v1831, 4294901760
  %v1833 = vsub.f32 %v1831, %v1832
  %v1834 = vand.u32 %v1833, 4294901760
  %1835 = vmatmul.mubr.f32.gmra.mrb[0].mxu0 %v1834
  %v1836 = vpop.f32.mrb[0].mxu0
  %v1837 = vadd.f32 0.0, %v1836
  %v1838 = vpop.f32.mrb[0].mxu0
  %1839 = vmatprep.mubr.f32.mxu0 0.0
  %v1840 = vand.u32 %v1711, 4294901760
  %v1841 = vsub.f32 %v1711, %v1840
  %v1842 = vand.u32 %v1841, 4294901760
  %v1843 = vsub.f32 %v1841, %v1842
  %v1844 = vand.u32 %v1843, 4294901760
  %1845 = vmatmul.mubr.f32.gmra.mrb[0].mxu0 %v1844
  %v1846 = vpop.f32.mrb[0].mxu0
  %v1847 = vadd.f32 0.0, %v1846
  %v1848 = vpop.f32.mrb[0].mxu0
  %1849 = vdwg.mxu0
  %1850 = vmatprep.subr.mxu0 0.0
  %v1851 = vand.u32 %v1682, 4294901760
  %v1852 = vsub.f32 %v1682, %v1851
  %v1853 = vand.u32 %v1852, 4294901760
  %v1854 = vsub.f32 %v1852, %v1853
  %v1855 = vand.u32 %v1854, 4294901760
  %1856 = vmatpush1.msra.mxu0 %v1855
  %1857 = vmatprep.subr.mxu0 0.0
  %v1858 = vand.u32 %v1683, 4294901760
  %v1859 = vsub.f32 %v1683, %v1858
  %v1860 = vand.u32 %v1859, 4294901760
  %v1861 = vsub.f32 %v1859, %v1860
  %v1862 = vand.u32 %v1861, 4294901760
  %1863 = vmatpush1.msra.mxu0 %v1862
  %1864 = vmatprep.subr.mxu0 0.0
  %v1865 = vand.u32 %v1684, 4294901760
  %v1866 = vsub.f32 %v1684, %v1865
  %v1867 = vand.u32 %v1866, 4294901760
  %v1868 = vsub.f32 %v1866, %v1867
  %v1869 = vand.u32 %v1868, 4294901760
  %1870 = vmatpush1.msra.mxu0 %v1869
  %1871 = vmatprep.subr.mxu0 0.0
  %v1872 = vand.u32 %v1685, 4294901760
  %v1873 = vsub.f32 %v1685, %v1872
  %v1874 = vand.u32 %v1873, 4294901760
  %v1875 = vsub.f32 %v1873, %v1874
  %v1876 = vand.u32 %v1875, 4294901760
  %1877 = vmatpush1.msra.mxu0 %v1876
  %1878 = vmatprep.subr.mxu0 0.0
  %v1879 = vand.u32 %v1686, 4294901760
  %v1880 = vsub.f32 %v1686, %v1879
  %v1881 = vand.u32 %v1880, 4294901760
  %v1882 = vsub.f32 %v1880, %v1881
  %v1883 = vand.u32 %v1882, 4294901760
  %1884 = vmatpush1.msra.mxu0 %v1883
  %1885 = vmatprep.subr.mxu0 0.0
  %v1886 = vand.u32 %v1687, 4294901760
  %v1887 = vsub.f32 %v1687, %v1886
  %v1888 = vand.u32 %v1887, 4294901760
  %v1889 = vsub.f32 %v1887, %v1888
  %v1890 = vand.u32 %v1889, 4294901760
  %1891 = vmatpush1.msra.mxu0 %v1890
  %1892 = vmatprep.subr.mxu0 0.0
  %v1893 = vand.u32 %v1688, 4294901760
  %v1894 = vsub.f32 %v1688, %v1893
  %v1895 = vand.u32 %v1894, 4294901760
  %v1896 = vsub.f32 %v1894, %v1895
  %v1897 = vand.u32 %v1896, 4294901760
  %1898 = vmatpush1.msra.mxu0 %v1897
  %1899 = vmatprep.subr.mxu0 0.0
  %v1900 = vand.u32 %v1689, 4294901760
  %v1901 = vsub.f32 %v1689, %v1900
  %v1902 = vand.u32 %v1901, 4294901760
  %v1903 = vsub.f32 %v1901, %v1902
  %v1904 = vand.u32 %v1903, 4294901760
  %1905 = vmatpush1.msra.mxu0 %v1904
  %1906 = vmatprep.subr.mxu0 0.0
  %v1907 = vand.u32 %v1690, 4294901760
  %v1908 = vsub.f32 %v1690, %v1907
  %v1909 = vand.u32 %v1908, 4294901760
  %v1910 = vsub.f32 %v1908, %v1909
  %v1911 = vand.u32 %v1910, 4294901760
  %1912 = vmatpush1.msra.mxu0 %v1911
  %1913 = vmatprep.subr.mxu0 0.0
  %v1914 = vand.u32 %v1691, 4294901760
  %v1915 = vsub.f32 %v1691, %v1914
  %v1916 = vand.u32 %v1915, 4294901760
  %v1917 = vsub.f32 %v1915, %v1916
  %v1918 = vand.u32 %v1917, 4294901760
  %1919 = vmatpush1.msra.mxu0 %v1918
  %1920 = vmatprep.subr.mxu0 0.0
  %v1921 = vand.u32 %v1692, 4294901760
  %v1922 = vsub.f32 %v1692, %v1921
  %v1923 = vand.u32 %v1922, 4294901760
  %v1924 = vsub.f32 %v1922, %v1923
  %v1925 = vand.u32 %v1924, 4294901760
  %1926 = vmatpush1.msra.mxu0 %v1925
  %1927 = vmatprep.subr.mxu0 0.0
  %v1928 = vand.u32 %v1693, 4294901760
  %v1929 = vsub.f32 %v1693, %v1928
  %v1930 = vand.u32 %v1929, 4294901760
  %v1931 = vsub.f32 %v1929, %v1930
  %v1932 = vand.u32 %v1931, 4294901760
  %1933 = vmatpush1.msra.mxu0 %v1932
  %1934 = vmatprep.subr.mxu0 0.0
  %1935 = vmatpush1.msra.mxu0 0.0
  %1936 = vmatprep.subr.mxu0 0.0
  %1937 = vmatpush1.msra.mxu0 0.0
  %1938 = vmatprep.subr.mxu0 0.0
  %1939 = vmatpush1.msra.mxu0 0.0
  %1940 = vmatprep.subr.mxu0 0.0
  %1941 = vmatpush1.msra.mxu0 0.0
  %1942 = vmatprep.subr.mxu0 0.0
  %1943 = vmatpush1.msra.mxu0 0.0
  %1944 = vmatprep.subr.mxu0 0.0
  %1945 = vmatpush1.msra.mxu0 0.0
  %1946 = vmatprep.subr.mxu0 0.0
  %1947 = vmatpush1.msra.mxu0 0.0
  %1948 = vmatprep.subr.mxu0 0.0
  %1949 = vmatpush1.msra.mxu0 0.0
  %1950 = vmatprep.subr.mxu0 0.0
  %1951 = vmatpush1.msra.mxu0 0.0
  %1952 = vmatprep.subr.mxu0 0.0
  %1953 = vmatpush1.msra.mxu0 0.0
  %1954 = vmatprep.subr.mxu0 0.0
  %1955 = vmatpush1.msra.mxu0 0.0
  %1956 = vmatprep.subr.mxu0 0.0
  %1957 = vmatpush1.msra.mxu0 0.0
  %1958 = vmatprep.subr.mxu0 0.0
  %1959 = vmatpush1.msra.mxu0 0.0
  %1960 = vmatprep.subr.mxu0 0.0
  %1961 = vmatpush1.msra.mxu0 0.0
  %1962 = vmatprep.subr.mxu0 0.0
  %1963 = vmatpush1.msra.mxu0 0.0
  %1964 = vmatprep.subr.mxu0 0.0
  %1965 = vmatpush1.msra.mxu0 0.0
  %1966 = vmatprep.subr.mxu0 0.0
  %1967 = vmatpush1.msra.mxu0 0.0
  %1968 = vmatprep.subr.mxu0 0.0
  %1969 = vmatpush1.msra.mxu0 0.0
  %1970 = vmatprep.subr.mxu0 0.0
  %1971 = vmatpush1.msra.mxu0 0.0
  %1972 = vmatprep.subr.mxu0 0.0
  %1973 = vmatpush1.msra.mxu0 0.0
  %1974 = vmatprep.mubr.f32.mxu0 0.0
  %v1975 = vand.u32 %v1696, 4294901760
  %1976 = vmatmul.mubr.f32.gmra.mrb[0].mxu0 %v1975
  %v1977 = vpop.f32.mrb[0].mxu0
  %v1978 = vadd.f32 %v1797, %v1977
  %v1979 = vpop.f32.mrb[0].mxu0
  %1980 = vmatprep.mubr.f32.mxu0 0.0
  %v1981 = vand.u32 %v1699, 4294901760
  %1982 = vmatmul.mubr.f32.gmra.mrb[0].mxu0 %v1981
  %v1983 = vpop.f32.mrb[0].mxu0
  %v1984 = vadd.f32 %v1807, %v1983
  %v1985 = vpop.f32.mrb[0].mxu0
  %1986 = vmatprep.mubr.f32.mxu0 0.0
  %v1987 = vand.u32 %v1702, 4294901760
  %1988 = vmatmul.mubr.f32.gmra.mrb[0].mxu0 %v1987
  %v1989 = vpop.f32.mrb[0].mxu0
  %v1990 = vadd.f32 %v1817, %v1989
  %v1991 = vpop.f32.mrb[0].mxu0
  %1992 = vmatprep.mubr.f32.mxu0 0.0
  %v1993 = vand.u32 %v1705, 4294901760
  %1994 = vmatmul.mubr.f32.gmra.mrb[0].mxu0 %v1993
  %v1995 = vpop.f32.mrb[0].mxu0
  %v1996 = vadd.f32 %v1827, %v1995
  %v1997 = vpop.f32.mrb[0].mxu0
  %1998 = vmatprep.mubr.f32.mxu0 0.0
  %v1999 = vand.u32 %v1708, 4294901760
  %2000 = vmatmul.mubr.f32.gmra.mrb[0].mxu0 %v1999
  %v2001 = vpop.f32.mrb[0].mxu0
  %v2002 = vadd.f32 %v1837, %v2001
  %v2003 = vpop.f32.mrb[0].mxu0
  %2004 = vmatprep.mubr.f32.mxu0 0.0
  %v2005 = vand.u32 %v1711, 4294901760
  %2006 = vmatmul.mubr.f32.gmra.mrb[0].mxu0 %v2005
  %v2007 = vpop.f32.mrb[0].mxu0
  %v2008 = vadd.f32 %v1847, %v2007
  %v2009 = vpop.f32.mrb[0].mxu0
  %2010 = vdwg.mxu0
  %2011 = vmatprep.subr.mxu0 0.0
  %v2012 = vand.u32 %v1682, 4294901760
  %v2013 = vsub.f32 %v1682, %v2012
  %2014 = vmatpush1.msra.mxu0 %v2013
  %2015 = vmatprep.subr.mxu0 0.0
  %v2016 = vand.u32 %v1683, 4294901760
  %v2017 = vsub.f32 %v1683, %v2016
  %2018 = vmatpush1.msra.mxu0 %v2017
  %2019 = vmatprep.subr.mxu0 0.0
  %v2020 = vand.u32 %v1684, 4294901760
  %v2021 = vsub.f32 %v1684, %v2020
  %2022 = vmatpush1.msra.mxu0 %v2021
  %2023 = vmatprep.subr.mxu0 0.0
  %v2024 = vand.u32 %v1685, 4294901760
  %v2025 = vsub.f32 %v1685, %v2024
  %2026 = vmatpush1.msra.mxu0 %v2025
  %2027 = vmatprep.subr.mxu0 0.0
  %v2028 = vand.u32 %v1686, 4294901760
  %v2029 = vsub.f32 %v1686, %v2028
  %2030 = vmatpush1.msra.mxu0 %v2029
  %2031 = vmatprep.subr.mxu0 0.0
  %v2032 = vand.u32 %v1687, 4294901760
  %v2033 = vsub.f32 %v1687, %v2032
  %2034 = vmatpush1.msra.mxu0 %v2033
  %2035 = vmatprep.subr.mxu0 0.0
  %v2036 = vand.u32 %v1688, 4294901760
  %v2037 = vsub.f32 %v1688, %v2036
  %2038 = vmatpush1.msra.mxu0 %v2037
  %2039 = vmatprep.subr.mxu0 0.0
  %v2040 = vand.u32 %v1689, 4294901760
  %v2041 = vsub.f32 %v1689, %v2040
  %2042 = vmatpush1.msra.mxu0 %v2041
  %2043 = vmatprep.subr.mxu0 0.0
  %v2044 = vand.u32 %v1690, 4294901760
  %v2045 = vsub.f32 %v1690, %v2044
  %2046 = vmatpush1.msra.mxu0 %v2045
  %2047 = vmatprep.subr.mxu0 0.0
  %v2048 = vand.u32 %v1691, 4294901760
  %v2049 = vsub.f32 %v1691, %v2048
  %2050 = vmatpush1.msra.mxu0 %v2049
  %2051 = vmatprep.subr.mxu0 0.0
  %v2052 = vand.u32 %v1692, 4294901760
  %v2053 = vsub.f32 %v1692, %v2052
  %2054 = vmatpush1.msra.mxu0 %v2053
  %2055 = vmatprep.subr.mxu0 0.0
  %v2056 = vand.u32 %v1693, 4294901760
  %v2057 = vsub.f32 %v1693, %v2056
  %2058 = vmatpush1.msra.mxu0 %v2057
  %2059 = vmatprep.subr.mxu0 0.0
  %2060 = vmatpush1.msra.mxu0 0.0
  %2061 = vmatprep.subr.mxu0 0.0
  %2062 = vmatpush1.msra.mxu0 0.0
  %2063 = vmatprep.subr.mxu0 0.0
  %2064 = vmatpush1.msra.mxu0 0.0
  %2065 = vmatprep.subr.mxu0 0.0
  %2066 = vmatpush1.msra.mxu0 0.0
  %2067 = vmatprep.subr.mxu0 0.0
  %2068 = vmatpush1.msra.mxu0 0.0
  %2069 = vmatprep.subr.mxu0 0.0
  %2070 = vmatpush1.msra.mxu0 0.0
  %2071 = vmatprep.subr.mxu0 0.0
  %2072 = vmatpush1.msra.mxu0 0.0
  %2073 = vmatprep.subr.mxu0 0.0
  %2074 = vmatpush1.msra.mxu0 0.0
  %2075 = vmatprep.subr.mxu0 0.0
  %2076 = vmatpush1.msra.mxu0 0.0
  %2077 = vmatprep.subr.mxu0 0.0
  %2078 = vmatpush1.msra.mxu0 0.0
  %2079 = vmatprep.subr.mxu0 0.0
  %2080 = vmatpush1.msra.mxu0 0.0
  %2081 = vmatprep.subr.mxu0 0.0
  %2082 = vmatpush1.msra.mxu0 0.0
  %2083 = vmatprep.subr.mxu0 0.0
  %2084 = vmatpush1.msra.mxu0 0.0
  %2085 = vmatprep.subr.mxu0 0.0
  %2086 = vmatpush1.msra.mxu0 0.0
  %2087 = vmatprep.subr.mxu0 0.0
  %2088 = vmatpush1.msra.mxu0 0.0
  %2089 = vmatprep.subr.mxu0 0.0
  %2090 = vmatpush1.msra.mxu0 0.0
  %2091 = vmatprep.subr.mxu0 0.0
  %2092 = vmatpush1.msra.mxu0 0.0
  %2093 = vmatprep.subr.mxu0 0.0
  %2094 = vmatpush1.msra.mxu0 0.0
  %2095 = vmatprep.subr.mxu0 0.0
  %2096 = vmatpush1.msra.mxu0 0.0
  %2097 = vmatprep.subr.mxu0 0.0
  %2098 = vmatpush1.msra.mxu0 0.0
  %2099 = vmatprep.mubr.f32.mxu0 0.0
  %v2100 = vand.u32 %v1696, 4294901760
  %v2101 = vsub.f32 %v1696, %v2100
  %2102 = vmatmul.mubr.f32.gmra.mrb[0].mxu0 %v2101
  %v2103 = vpop.f32.mrb[0].mxu0
  %v2104 = vadd.f32 %v1978, %v2103
  %v2105 = vpop.f32.mrb[0].mxu0
  %2106 = vmatprep.mubr.f32.mxu0 0.0
  %v2107 = vand.u32 %v1699, 4294901760
  %v2108 = vsub.f32 %v1699, %v2107
  %2109 = vmatmul.mubr.f32.gmra.mrb[0].mxu0 %v2108
  %v2110 = vpop.f32.mrb[0].mxu0
  %v2111 = vadd.f32 %v1984, %v2110
  %v2112 = vpop.f32.mrb[0].mxu0
  %2113 = vmatprep.mubr.f32.mxu0 0.0
  %v2114 = vand.u32 %v1702, 4294901760
  %v2115 = vsub.f32 %v1702, %v2114
  %2116 = vmatmul.mubr.f32.gmra.mrb[0].mxu0 %v2115
  %v2117 = vpop.f32.mrb[0].mxu0
  %v2118 = vadd.f32 %v1990, %v2117
  %v2119 = vpop.f32.mrb[0].mxu0
  %2120 = vmatprep.mubr.f32.mxu0 0.0
  %v2121 = vand.u32 %v1705, 4294901760
  %v2122 = vsub.f32 %v1705, %v2121
  %2123 = vmatmul.mubr.f32.gmra.mrb[0].mxu0 %v2122
  %v2124 = vpop.f32.mrb[0].mxu0
  %v2125 = vadd.f32 %v1996, %v2124
  %v2126 = vpop.f32.mrb[0].mxu0
  %2127 = vmatprep.mubr.f32.mxu0 0.0
  %v2128 = vand.u32 %v1708, 4294901760
  %v2129 = vsub.f32 %v1708, %v2128
  %2130 = vmatmul.mubr.f32.gmra.mrb[0].mxu0 %v2129
  %v2131 = vpop.f32.mrb[0].mxu0
  %v2132 = vadd.f32 %v2002, %v2131
  %v2133 = vpop.f32.mrb[0].mxu0
  %2134 = vmatprep.mubr.f32.mxu0 0.0
  %v2135 = vand.u32 %v1711, 4294901760
  %v2136 = vsub.f32 %v1711, %v2135
  %2137 = vmatmul.mubr.f32.gmra.mrb[0].mxu0 %v2136
  %v2138 = vpop.f32.mrb[0].mxu0
  %v2139 = vadd.f32 %v2008, %v2138
  %v2140 = vpop.f32.mrb[0].mxu0
  %2141 = vdwg.mxu0
  %2142 = vmatprep.subr.mxu0 0.0
  %v2143 = vand.u32 %v1682, 4294901760
  %2144 = vmatpush1.msra.mxu0 %v2143
  %2145 = vmatprep.subr.mxu0 0.0
  %v2146 = vand.u32 %v1683, 4294901760
  %2147 = vmatpush1.msra.mxu0 %v2146
  %2148 = vmatprep.subr.mxu0 0.0
  %v2149 = vand.u32 %v1684, 4294901760
  %2150 = vmatpush1.msra.mxu0 %v2149
  %2151 = vmatprep.subr.mxu0 0.0
  %v2152 = vand.u32 %v1685, 4294901760
  %2153 = vmatpush1.msra.mxu0 %v2152
  %2154 = vmatprep.subr.mxu0 0.0
  %v2155 = vand.u32 %v1686, 4294901760
  %2156 = vmatpush1.msra.mxu0 %v2155
  %2157 = vmatprep.subr.mxu0 0.0
  %v2158 = vand.u32 %v1687, 4294901760
  %2159 = vmatpush1.msra.mxu0 %v2158
  %2160 = vmatprep.subr.mxu0 0.0
  %v2161 = vand.u32 %v1688, 4294901760
  %2162 = vmatpush1.msra.mxu0 %v2161
  %2163 = vmatprep.subr.mxu0 0.0
  %v2164 = vand.u32 %v1689, 4294901760
  %2165 = vmatpush1.msra.mxu0 %v2164
  %2166 = vmatprep.subr.mxu0 0.0
  %v2167 = vand.u32 %v1690, 4294901760
  %2168 = vmatpush1.msra.mxu0 %v2167
  %2169 = vmatprep.subr.mxu0 0.0
  %v2170 = vand.u32 %v1691, 4294901760
  %2171 = vmatpush1.msra.mxu0 %v2170
  %2172 = vmatprep.subr.mxu0 0.0
  %v2173 = vand.u32 %v1692, 4294901760
  %2174 = vmatpush1.msra.mxu0 %v2173
  %2175 = vmatprep.subr.mxu0 0.0
  %v2176 = vand.u32 %v1693, 4294901760
  %2177 = vmatpush1.msra.mxu0 %v2176
  %2178 = vmatprep.subr.mxu0 0.0
  %2179 = vmatpush1.msra.mxu0 0.0
  %2180 = vmatprep.subr.mxu0 0.0
  %2181 = vmatpush1.msra.mxu0 0.0
  %2182 = vmatprep.subr.mxu0 0.0
  %2183 = vmatpush1.msra.mxu0 0.0
  %2184 = vmatprep.subr.mxu0 0.0
  %2185 = vmatpush1.msra.mxu0 0.0
  %2186 = vmatprep.subr.mxu0 0.0
  %2187 = vmatpush1.msra.mxu0 0.0
  %2188 = vmatprep.subr.mxu0 0.0
  %2189 = vmatpush1.msra.mxu0 0.0
  %2190 = vmatprep.subr.mxu0 0.0
  %2191 = vmatpush1.msra.mxu0 0.0
  %2192 = vmatprep.subr.mxu0 0.0
  %2193 = vmatpush1.msra.mxu0 0.0
  %2194 = vmatprep.subr.mxu0 0.0
  %2195 = vmatpush1.msra.mxu0 0.0
  %2196 = vmatprep.subr.mxu0 0.0
  %2197 = vmatpush1.msra.mxu0 0.0
  %2198 = vmatprep.subr.mxu0 0.0
  %2199 = vmatpush1.msra.mxu0 0.0
  %2200 = vmatprep.subr.mxu0 0.0
  %2201 = vmatpush1.msra.mxu0 0.0
  %2202 = vmatprep.subr.mxu0 0.0
  %2203 = vmatpush1.msra.mxu0 0.0
  %2204 = vmatprep.subr.mxu0 0.0
  %2205 = vmatpush1.msra.mxu0 0.0
  %2206 = vmatprep.subr.mxu0 0.0
  %2207 = vmatpush1.msra.mxu0 0.0
  %2208 = vmatprep.subr.mxu0 0.0
  %2209 = vmatpush1.msra.mxu0 0.0
  %2210 = vmatprep.subr.mxu0 0.0
  %2211 = vmatpush1.msra.mxu0 0.0
  %2212 = vmatprep.subr.mxu0 0.0
  %2213 = vmatpush1.msra.mxu0 0.0
  %2214 = vmatprep.subr.mxu0 0.0
  %2215 = vmatpush1.msra.mxu0 0.0
  %2216 = vmatprep.subr.mxu0 0.0
  %2217 = vmatpush1.msra.mxu0 0.0
  %2218 = vmatprep.mubr.f32.mxu0 0.0
  %v2219 = vand.u32 %v1696, 4294901760
  %v2220 = vsub.f32 %v1696, %v2219
  %v2221 = vand.u32 %v2220, 4294901760
  %2222 = vmatmul.mubr.f32.gmra.mrb[0].mxu0 %v2221
  %v2223 = vpop.f32.mrb[0].mxu0
  %v2224 = vadd.f32 %v2104, %v2223
  %v2225 = vpop.f32.mrb[0].mxu0
  %2226 = vmatprep.mubr.f32.mxu0 0.0
  %v2227 = vand.u32 %v1699, 4294901760
  %v2228 = vsub.f32 %v1699, %v2227
  %v2229 = vand.u32 %v2228, 4294901760
  %2230 = vmatmul.mubr.f32.gmra.mrb[0].mxu0 %v2229
  %v2231 = vpop.f32.mrb[0].mxu0
  %v2232 = vadd.f32 %v2111, %v2231
  %v2233 = vpop.f32.mrb[0].mxu0
  %2234 = vmatprep.mubr.f32.mxu0 0.0
  %v2235 = vand.u32 %v1702, 4294901760
  %v2236 = vsub.f32 %v1702, %v2235
  %v2237 = vand.u32 %v2236, 4294901760
  %2238 = vmatmul.mubr.f32.gmra.mrb[0].mxu0 %v2237
  %v2239 = vpop.f32.mrb[0].mxu0
  %v2240 = vadd.f32 %v2118, %v2239
  %v2241 = vpop.f32.mrb[0].mxu0
  %2242 = vmatprep.mubr.f32.mxu0 0.0
  %v2243 = vand.u32 %v1705, 4294901760
  %v2244 = vsub.f32 %v1705, %v2243
  %v2245 = vand.u32 %v2244, 4294901760
  %2246 = vmatmul.mubr.f32.gmra.mrb[0].mxu0 %v2245
  %v2247 = vpop.f32.mrb[0].mxu0
  %v2248 = vadd.f32 %v2125, %v2247
  %v2249 = vpop.f32.mrb[0].mxu0
  %2250 = vmatprep.mubr.f32.mxu0 0.0
  %v2251 = vand.u32 %v1708, 4294901760
  %v2252 = vsub.f32 %v1708, %v2251
  %v2253 = vand.u32 %v2252, 4294901760
  %2254 = vmatmul.mubr.f32.gmra.mrb[0].mxu0 %v2253
  %v2255 = vpop.f32.mrb[0].mxu0
  %v2256 = vadd.f32 %v2132, %v2255
  %v2257 = vpop.f32.mrb[0].mxu0
  %2258 = vmatprep.mubr.f32.mxu0 0.0
  %v2259 = vand.u32 %v1711, 4294901760
  %v2260 = vsub.f32 %v1711, %v2259
  %v2261 = vand.u32 %v2260, 4294901760
  %2262 = vmatmul.mubr.f32.gmra.mrb[0].mxu0 %v2261
  %v2263 = vpop.f32.mrb[0].mxu0
  %v2264 = vadd.f32 %v2139, %v2263
  %v2265 = vpop.f32.mrb[0].mxu0
  %2266 = vdwg.mxu0
  %2267 = vmatprep.subr.mxu0 0.0
  %v2268 = vand.u32 %v1682, 4294901760
  %v2269 = vsub.f32 %v1682, %v2268
  %v2270 = vand.u32 %v2269, 4294901760
  %2271 = vmatpush1.msra.mxu0 %v2270
  %2272 = vmatprep.subr.mxu0 0.0
  %v2273 = vand.u32 %v1683, 4294901760
  %v2274 = vsub.f32 %v1683, %v2273
  %v2275 = vand.u32 %v2274, 4294901760
  %2276 = vmatpush1.msra.mxu0 %v2275
  %2277 = vmatprep.subr.mxu0 0.0
  %v2278 = vand.u32 %v1684, 4294901760
  %v2279 = vsub.f32 %v1684, %v2278
  %v2280 = vand.u32 %v2279, 4294901760
  %2281 = vmatpush1.msra.mxu0 %v2280
  %2282 = vmatprep.subr.mxu0 0.0
  %v2283 = vand.u32 %v1685, 4294901760
  %v2284 = vsub.f32 %v1685, %v2283
  %v2285 = vand.u32 %v2284, 4294901760
  %2286 = vmatpush1.msra.mxu0 %v2285
  %2287 = vmatprep.subr.mxu0 0.0
  %v2288 = vand.u32 %v1686, 4294901760
  %v2289 = vsub.f32 %v1686, %v2288
  %v2290 = vand.u32 %v2289, 4294901760
  %2291 = vmatpush1.msra.mxu0 %v2290
  %2292 = vmatprep.subr.mxu0 0.0
  %v2293 = vand.u32 %v1687, 4294901760
  %v2294 = vsub.f32 %v1687, %v2293
  %v2295 = vand.u32 %v2294, 4294901760
  %2296 = vmatpush1.msra.mxu0 %v2295
  %2297 = vmatprep.subr.mxu0 0.0
  %v2298 = vand.u32 %v1688, 4294901760
  %v2299 = vsub.f32 %v1688, %v2298
  %v2300 = vand.u32 %v2299, 4294901760
  %2301 = vmatpush1.msra.mxu0 %v2300
  %2302 = vmatprep.subr.mxu0 0.0
  %v2303 = vand.u32 %v1689, 4294901760
  %v2304 = vsub.f32 %v1689, %v2303
  %v2305 = vand.u32 %v2304, 4294901760
  %2306 = vmatpush1.msra.mxu0 %v2305
  %2307 = vmatprep.subr.mxu0 0.0
  %v2308 = vand.u32 %v1690, 4294901760
  %v2309 = vsub.f32 %v1690, %v2308
  %v2310 = vand.u32 %v2309, 4294901760
  %2311 = vmatpush1.msra.mxu0 %v2310
  %2312 = vmatprep.subr.mxu0 0.0
  %v2313 = vand.u32 %v1691, 4294901760
  %v2314 = vsub.f32 %v1691, %v2313
  %v2315 = vand.u32 %v2314, 4294901760
  %2316 = vmatpush1.msra.mxu0 %v2315
  %2317 = vmatprep.subr.mxu0 0.0
  %v2318 = vand.u32 %v1692, 4294901760
  %v2319 = vsub.f32 %v1692, %v2318
  %v2320 = vand.u32 %v2319, 4294901760
  %2321 = vmatpush1.msra.mxu0 %v2320
  %2322 = vmatprep.subr.mxu0 0.0
  %v2323 = vand.u32 %v1693, 4294901760
  %v2324 = vsub.f32 %v1693, %v2323
  %v2325 = vand.u32 %v2324, 4294901760
  %2326 = vmatpush1.msra.mxu0 %v2325
  %2327 = vmatprep.subr.mxu0 0.0
  %2328 = vmatpush1.msra.mxu0 0.0
  %2329 = vmatprep.subr.mxu0 0.0
  %2330 = vmatpush1.msra.mxu0 0.0
  %2331 = vmatprep.subr.mxu0 0.0
  %2332 = vmatpush1.msra.mxu0 0.0
  %2333 = vmatprep.subr.mxu0 0.0
  %2334 = vmatpush1.msra.mxu0 0.0
  %2335 = vmatprep.subr.mxu0 0.0
  %2336 = vmatpush1.msra.mxu0 0.0
  %2337 = vmatprep.subr.mxu0 0.0
  %2338 = vmatpush1.msra.mxu0 0.0
  %2339 = vmatprep.subr.mxu0 0.0
  %2340 = vmatpush1.msra.mxu0 0.0
  %2341 = vmatprep.subr.mxu0 0.0
  %2342 = vmatpush1.msra.mxu0 0.0
  %2343 = vmatprep.subr.mxu0 0.0
  %2344 = vmatpush1.msra.mxu0 0.0
  %2345 = vmatprep.subr.mxu0 0.0
  %2346 = vmatpush1.msra.mxu0 0.0
  %2347 = vmatprep.subr.mxu0 0.0
  %2348 = vmatpush1.msra.mxu0 0.0
  %2349 = vmatprep.subr.mxu0 0.0
  %2350 = vmatpush1.msra.mxu0 0.0
  %2351 = vmatprep.subr.mxu0 0.0
  %2352 = vmatpush1.msra.mxu0 0.0
  %2353 = vmatprep.subr.mxu0 0.0
  %2354 = vmatpush1.msra.mxu0 0.0
  %2355 = vmatprep.subr.mxu0 0.0
  %2356 = vmatpush1.msra.mxu0 0.0
  %2357 = vmatprep.subr.mxu0 0.0
  %2358 = vmatpush1.msra.mxu0 0.0
  %2359 = vmatprep.subr.mxu0 0.0
  %2360 = vmatpush1.msra.mxu0 0.0
  %2361 = vmatprep.subr.mxu0 0.0
  %2362 = vmatpush1.msra.mxu0 0.0
  %2363 = vmatprep.subr.mxu0 0.0
  %2364 = vmatpush1.msra.mxu0 0.0
  %2365 = vmatprep.subr.mxu0 0.0
  %2366 = vmatpush1.msra.mxu0 0.0
  %2367 = vmatprep.mubr.f32.mxu0 0.0
  %v2368 = vand.u32 %v1696, 4294901760
  %2369 = vmatmul.mubr.f32.gmra.mrb[0].mxu0 %v2368
  %v2370 = vpop.f32.mrb[0].mxu0
  %v2371 = vadd.f32 %v2224, %v2370
  %v2372 = vpop.f32.mrb[0].mxu0
  %2373 = vmatprep.mubr.f32.mxu0 0.0
  %v2374 = vand.u32 %v1699, 4294901760
  %2375 = vmatmul.mubr.f32.gmra.mrb[0].mxu0 %v2374
  %v2376 = vpop.f32.mrb[0].mxu0
  %v2377 = vadd.f32 %v2232, %v2376
  %v2378 = vpop.f32.mrb[0].mxu0
  %2379 = vmatprep.mubr.f32.mxu0 0.0
  %v2380 = vand.u32 %v1702, 4294901760
  %2381 = vmatmul.mubr.f32.gmra.mrb[0].mxu0 %v2380
  %v2382 = vpop.f32.mrb[0].mxu0
  %v2383 = vadd.f32 %v2240, %v2382
  %v2384 = vpop.f32.mrb[0].mxu0
  %2385 = vmatprep.mubr.f32.mxu0 0.0
  %v2386 = vand.u32 %v1705, 4294901760
  %2387 = vmatmul.mubr.f32.gmra.mrb[0].mxu0 %v2386
  %v2388 = vpop.f32.mrb[0].mxu0
  %v2389 = vadd.f32 %v2248, %v2388
  %v2390 = vpop.f32.mrb[0].mxu0
  %2391 = vmatprep.mubr.f32.mxu0 0.0
  %v2392 = vand.u32 %v1708, 4294901760
  %2393 = vmatmul.mubr.f32.gmra.mrb[0].mxu0 %v2392
  %v2394 = vpop.f32.mrb[0].mxu0
  %v2395 = vadd.f32 %v2256, %v2394
  %v2396 = vpop.f32.mrb[0].mxu0
  %2397 = vmatprep.mubr.f32.mxu0 0.0
  %v2398 = vand.u32 %v1711, 4294901760
  %2399 = vmatmul.mubr.f32.gmra.mrb[0].mxu0 %v2398
  %v2400 = vpop.f32.mrb[0].mxu0
  %v2401 = vadd.f32 %v2264, %v2400
  %v2402 = vpop.f32.mrb[0].mxu0
  %2403 = vdwg.mxu0
  %2404 = vmatprep.subr.mxu0 0.0
  %v2405 = vand.u32 %v1682, 4294901760
  %2406 = vmatpush1.msra.mxu0 %v2405
  %2407 = vmatprep.subr.mxu0 0.0
  %v2408 = vand.u32 %v1683, 4294901760
  %2409 = vmatpush1.msra.mxu0 %v2408
  %2410 = vmatprep.subr.mxu0 0.0
  %v2411 = vand.u32 %v1684, 4294901760
  %2412 = vmatpush1.msra.mxu0 %v2411
  %2413 = vmatprep.subr.mxu0 0.0
  %v2414 = vand.u32 %v1685, 4294901760
  %2415 = vmatpush1.msra.mxu0 %v2414
  %2416 = vmatprep.subr.mxu0 0.0
  %v2417 = vand.u32 %v1686, 4294901760
  %2418 = vmatpush1.msra.mxu0 %v2417
  %2419 = vmatprep.subr.mxu0 0.0
  %v2420 = vand.u32 %v1687, 4294901760
  %2421 = vmatpush1.msra.mxu0 %v2420
  %2422 = vmatprep.subr.mxu0 0.0
  %v2423 = vand.u32 %v1688, 4294901760
  %2424 = vmatpush1.msra.mxu0 %v2423
  %2425 = vmatprep.subr.mxu0 0.0
  %v2426 = vand.u32 %v1689, 4294901760
  %2427 = vmatpush1.msra.mxu0 %v2426
  %2428 = vmatprep.subr.mxu0 0.0
  %v2429 = vand.u32 %v1690, 4294901760
  %2430 = vmatpush1.msra.mxu0 %v2429
  %2431 = vmatprep.subr.mxu0 0.0
  %v2432 = vand.u32 %v1691, 4294901760
  %2433 = vmatpush1.msra.mxu0 %v2432
  %2434 = vmatprep.subr.mxu0 0.0
  %v2435 = vand.u32 %v1692, 4294901760
  %2436 = vmatpush1.msra.mxu0 %v2435
  %2437 = vmatprep.subr.mxu0 0.0
  %v2438 = vand.u32 %v1693, 4294901760
  %2439 = vmatpush1.msra.mxu0 %v2438
  %2440 = vmatprep.subr.mxu0 0.0
  %2441 = vmatpush1.msra.mxu0 0.0
  %2442 = vmatprep.subr.mxu0 0.0
  %2443 = vmatpush1.msra.mxu0 0.0
  %2444 = vmatprep.subr.mxu0 0.0
  %2445 = vmatpush1.msra.mxu0 0.0
  %2446 = vmatprep.subr.mxu0 0.0
  %2447 = vmatpush1.msra.mxu0 0.0
  %2448 = vmatprep.subr.mxu0 0.0
  %2449 = vmatpush1.msra.mxu0 0.0
  %2450 = vmatprep.subr.mxu0 0.0
  %2451 = vmatpush1.msra.mxu0 0.0
  %2452 = vmatprep.subr.mxu0 0.0
  %2453 = vmatpush1.msra.mxu0 0.0
  %2454 = vmatprep.subr.mxu0 0.0
  %2455 = vmatpush1.msra.mxu0 0.0
  %2456 = vmatprep.subr.mxu0 0.0
  %2457 = vmatpush1.msra.mxu0 0.0
  %2458 = vmatprep.subr.mxu0 0.0
  %2459 = vmatpush1.msra.mxu0 0.0
  %2460 = vmatprep.subr.mxu0 0.0
  %2461 = vmatpush1.msra.mxu0 0.0
  %2462 = vmatprep.subr.mxu0 0.0
  %2463 = vmatpush1.msra.mxu0 0.0
  %2464 = vmatprep.subr.mxu0 0.0
  %2465 = vmatpush1.msra.mxu0 0.0
  %2466 = vmatprep.subr.mxu0 0.0
  %2467 = vmatpush1.msra.mxu0 0.0
  %2468 = vmatprep.subr.mxu0 0.0
  %2469 = vmatpush1.msra.mxu0 0.0
  %2470 = vmatprep.subr.mxu0 0.0
  %2471 = vmatpush1.msra.mxu0 0.0
  %2472 = vmatprep.subr.mxu0 0.0
  %2473 = vmatpush1.msra.mxu0 0.0
  %2474 = vmatprep.subr.mxu0 0.0
  %2475 = vmatpush1.msra.mxu0 0.0
  %2476 = vmatprep.subr.mxu0 0.0
  %2477 = vmatpush1.msra.mxu0 0.0
  %2478 = vmatprep.subr.mxu0 0.0
  %2479 = vmatpush1.msra.mxu0 0.0
  %2480 = vmatprep.mubr.f32.mxu0 0.0
  %v2481 = vand.u32 %v1696, 4294901760
  %2482 = vmatmul.mubr.f32.gmra.mrb[0].mxu0 %v2481
  %v2483 = vpop.f32.mrb[0].mxu0
  %v2484 = vadd.f32 %v2371, %v2483
  %v2485 = vpop.f32.mrb[0].mxu0
  %2486 = vmatprep.mubr.f32.mxu0 0.0
  %v2487 = vand.u32 %v1699, 4294901760
  %2488 = vmatmul.mubr.f32.gmra.mrb[0].mxu0 %v2487
  %v2489 = vpop.f32.mrb[0].mxu0
  %v2490 = vadd.f32 %v2377, %v2489
  %v2491 = vpop.f32.mrb[0].mxu0
  %2492 = vmatprep.mubr.f32.mxu0 0.0
  %v2493 = vand.u32 %v1702, 4294901760
  %2494 = vmatmul.mubr.f32.gmra.mrb[0].mxu0 %v2493
  %v2495 = vpop.f32.mrb[0].mxu0
  %v2496 = vadd.f32 %v2383, %v2495
  %v2497 = vpop.f32.mrb[0].mxu0
  %2498 = vmatprep.mubr.f32.mxu0 0.0
  %v2499 = vand.u32 %v1705, 4294901760
  %2500 = vmatmul.mubr.f32.gmra.mrb[0].mxu0 %v2499
  %v2501 = vpop.f32.mrb[0].mxu0
  %v2502 = vadd.f32 %v2389, %v2501
  %v2503 = vpop.f32.mrb[0].mxu0
  %2504 = vmatprep.mubr.f32.mxu0 0.0
  %v2505 = vand.u32 %v1708, 4294901760
  %2506 = vmatmul.mubr.f32.gmra.mrb[0].mxu0 %v2505
  %v2507 = vpop.f32.mrb[0].mxu0
  %v2508 = vadd.f32 %v2395, %v2507
  %v2509 = vpop.f32.mrb[0].mxu0
  %2510 = vmatprep.mubr.f32.mxu0 0.0
  %v2511 = vand.u32 %v1711, 4294901760
  %2512 = vmatmul.mubr.f32.gmra.mrb[0].mxu0 %v2511
  %v2513 = vpop.f32.mrb[0].mxu0
  %v2514 = vadd.f32 %v2401, %v2513
  %v2515 = vpop.f32.mrb[0].mxu0
  %2516 = vdwg.mxu0
  %v2517 = vmax.f32 %v2484, %v2502
  %v2518 = vmax.f32 %v2490, %v2508
  %v2519 = vmax.f32 %v2496, %v2514
  %v2520 = vld [vmem:[%s4] sm:$0x1]
  %v2522 = vlaneseq
  %v2523 = vshrl.u32 %v2522, 7
  %v2524 = vsub.s32 0, %v2523
  %v2525 = vrot.slane %v2520, %v2524
  %v2527 = vadd.f32 %v2517, %v2525
  %v2528 = vadd.f32 %v2518, %v2525
  %v2529 = vadd.f32 %v2519, %v2525
  %v2530 = vsel %vm1620, 0.0, %v2529
  %2532 = vrot.lane.b32.xlu0 %v2527, 64
  %v2533 = vpop.permute.xlu0 %2532
  %v2536 = vrot.slane %v2527, 6
  %v2537 = vrot.slane %v2528, 6
  %v2538 = vsel %vm1620, %v2536, %v2537
  %v2540 = vsel %vm1651, %v2530, %v2533
  %v2542 = vrot.slane %v2529, 6
  %v2543 = vsel %vm1620, %v2537, %v2542
  %2544 = vrot.lane.b32.xlu0 %v2537, 64
  %v2545 = vpop.permute.xlu0 %2544
  %2546 = vrot.lane.b32.xlu0 %v2543, 64
  %v2547 = vpop.permute.xlu0 %2546
  %v2550 = vrot.slane %v2529, 4
  %v2552 = vsel %vm1651, %v2527, %v2545
  %v2553 = vsel %vm1651, %v2528, %v2547
  %v2554 = vsel %vm1611, %v2540, %v2552
  %v2555 = vsel %vm1611, %v2538, %v2550
  %v2556 = vld [vmem:[%s5] sm:$0xff]
  %v2557 = vld [vmem:[%s5 + $0x8] sm:$0xff]
  %v2558 = vld [vmem:[%s5 + $0x10] sm:$0xff]
  %v2559 = vld [vmem:[%s5 + $0x18] sm:$0xff]
  %v2560 = vld [vmem:[%s5 + $0x20] sm:$0xff]
  %v2561 = vld [vmem:[%s5 + $0x28] sm:$0xff]
  %v2562 = vld [vmem:[%s5 + $0x30] sm:$0xff]
  %v2563 = vld [vmem:[%s5 + $0x38] sm:$0xff]
  %v2564 = vld [vmem:[%s5 + $0x40] sm:$0xff]
  %v2565 = vld [vmem:[%s5 + $0x48] sm:$0xff]
  %v2566 = vld [vmem:[%s5 + $0x50] sm:$0xff]
  %v2567 = vld [vmem:[%s5 + $0x58] sm:$0xff]
  %v2568 = vld [vmem:[%s5 + $0x60] sm:$0xff]
  %v2569 = vld [vmem:[%s5 + $0x68] sm:$0xff]
  %v2570 = vld [vmem:[%s5 + $0x70] sm:$0xff]
  %v2571 = vld [vmem:[%s5 + $0x78] sm:$0xff]
  %v2572 = vld [vmem:[%s5 + $0x80] sm:$0xff]
  %v2573 = vld [vmem:[%s5 + $0x88] sm:$0xff]
  %v2574 = vld [vmem:[%s5 + $0x90] sm:$0xff]
  %v2575 = vld [vmem:[%s5 + $0x98] sm:$0xff]
  %v2576 = vld [vmem:[%s5 + $0xa0] sm:$0xff]
  %v2577 = vld [vmem:[%s5 + $0xa8] sm:$0xff]
  %v2578 = vld [vmem:[%s5 + $0xb0] sm:$0xff]
  %v2579 = vld [vmem:[%s5 + $0xb8] sm:$0xff]
  %v2581 = vsel %vm1651, %v2555, 0
  %v2583 = vsel %vm1651, %v2550, 0
  %2585 = vmatprep.subr.mxu0 0.0
  %v2586 = vand.u32 %v2556, 4294901760
  %2587 = vmatpush1.msra.mxu0 %v2586
  %2588 = vmatprep.subr.mxu0 0.0
  %v2589 = vand.u32 %v2557, 4294901760
  %2590 = vmatpush1.msra.mxu0 %v2589
  %2591 = vmatprep.subr.mxu0 0.0
  %v2592 = vand.u32 %v2558, 4294901760
  %2593 = vmatpush1.msra.mxu0 %v2592
  %2594 = vmatprep.subr.mxu0 0.0
  %v2595 = vand.u32 %v2559, 4294901760
  %2596 = vmatpush1.msra.mxu0 %v2595
  %2597 = vmatprep.subr.mxu0 0.0
  %v2598 = vand.u32 %v2560, 4294901760
  %2599 = vmatpush1.msra.mxu0 %v2598
  %2600 = vmatprep.subr.mxu0 0.0
  %v2601 = vand.u32 %v2561, 4294901760
  %2602 = vmatpush1.msra.mxu0 %v2601
  %2603 = vmatprep.subr.mxu0 0.0
  %v2604 = vand.u32 %v2562, 4294901760
  %2605 = vmatpush1.msra.mxu0 %v2604
  %2606 = vmatprep.subr.mxu0 0.0
  %v2607 = vand.u32 %v2563, 4294901760
  %2608 = vmatpush1.msra.mxu0 %v2607
  %2609 = vmatprep.subr.mxu0 0.0
  %v2610 = vand.u32 %v2564, 4294901760
  %2611 = vmatpush1.msra.mxu0 %v2610
  %2612 = vmatprep.subr.mxu0 0.0
  %v2613 = vand.u32 %v2565, 4294901760
  %2614 = vmatpush1.msra.mxu0 %v2613
  %2615 = vmatprep.subr.mxu0 0.0
  %v2616 = vand.u32 %v2566, 4294901760
  %2617 = vmatpush1.msra.mxu0 %v2616
  %2618 = vmatprep.subr.mxu0 0.0
  %v2619 = vand.u32 %v2567, 4294901760
  %2620 = vmatpush1.msra.mxu0 %v2619
  %2621 = vmatprep.subr.mxu0 0.0
  %v2622 = vand.u32 %v2568, 4294901760
  %2623 = vmatpush1.msra.mxu0 %v2622
  %2624 = vmatprep.subr.mxu0 0.0
  %v2625 = vand.u32 %v2569, 4294901760
  %2626 = vmatpush1.msra.mxu0 %v2625
  %2627 = vmatprep.subr.mxu0 0.0
  %v2628 = vand.u32 %v2570, 4294901760
  %2629 = vmatpush1.msra.mxu0 %v2628
  %2630 = vmatprep.subr.mxu0 0.0
  %v2631 = vand.u32 %v2571, 4294901760
  %2632 = vmatpush1.msra.mxu0 %v2631
  %2633 = vmatprep.subr.mxu0 0.0
  %v2634 = vand.u32 %v2572, 4294901760
  %2635 = vmatpush1.msra.mxu0 %v2634
  %2636 = vmatprep.subr.mxu0 0.0
  %v2637 = vand.u32 %v2573, 4294901760
  %2638 = vmatpush1.msra.mxu0 %v2637
  %2639 = vmatprep.subr.mxu0 0.0
  %v2640 = vand.u32 %v2574, 4294901760
  %2641 = vmatpush1.msra.mxu0 %v2640
  %2642 = vmatprep.subr.mxu0 0.0
  %v2643 = vand.u32 %v2575, 4294901760
  %2644 = vmatpush1.msra.mxu0 %v2643
  %2645 = vmatprep.subr.mxu0 0.0
  %v2646 = vand.u32 %v2576, 4294901760
  %2647 = vmatpush1.msra.mxu0 %v2646
  %2648 = vmatprep.subr.mxu0 0.0
  %v2649 = vand.u32 %v2577, 4294901760
  %2650 = vmatpush1.msra.mxu0 %v2649
  %2651 = vmatprep.subr.mxu0 0.0
  %v2652 = vand.u32 %v2578, 4294901760
  %2653 = vmatpush1.msra.mxu0 %v2652
  %2654 = vmatprep.subr.mxu0 0.0
  %v2655 = vand.u32 %v2579, 4294901760
  %2656 = vmatpush1.msra.mxu0 %v2655
  %2657 = vmatprep.subr.mxu0 0.0
  %2658 = vmatpush1.msra.mxu0 0.0
  %2659 = vmatprep.subr.mxu0 0.0
  %2660 = vmatpush1.msra.mxu0 0.0
  %2661 = vmatprep.subr.mxu0 0.0
  %2662 = vmatpush1.msra.mxu0 0.0
  %2663 = vmatprep.subr.mxu0 0.0
  %2664 = vmatpush1.msra.mxu0 0.0
  %2665 = vmatprep.subr.mxu0 0.0
  %2666 = vmatpush1.msra.mxu0 0.0
  %2667 = vmatprep.subr.mxu0 0.0
  %2668 = vmatpush1.msra.mxu0 0.0
  %2669 = vmatprep.subr.mxu0 0.0
  %2670 = vmatpush1.msra.mxu0 0.0
  %2671 = vmatprep.subr.mxu0 0.0
  %2672 = vmatpush1.msra.mxu0 0.0
  %v2673 = vand.u32 %v2581, 4294901760
  %v2674 = vsub.f32 %v2581, %v2673
  %v2675 = vand.u32 %v2674, 4294901760
  %v2676 = vsub.f32 %v2674, %v2675
  %v2677 = vand.u32 %v2676, 4294901760
  %2678 = vmatprep.mubr.f32.mxu0 %v2677
  %v2679 = vand.u32 %v2554, 4294901760
  %v2680 = vsub.f32 %v2554, %v2679
  %v2681 = vand.u32 %v2680, 4294901760
  %v2682 = vsub.f32 %v2680, %v2681
  %v2683 = vand.u32 %v2682, 4294901760
  %2684 = vmatmul.mubr.f32.gmra.mrb[0].mxu0 %v2683
  %v2685 = vpop.f32.mrb[0].mxu0
  %v2686 = vadd.f32 0.0, %v2685
  %v2687 = vpop.f32.mrb[0].mxu0
  %v2688 = vand.u32 %v2583, 4294901760
  %v2689 = vsub.f32 %v2583, %v2688
  %v2690 = vand.u32 %v2689, 4294901760
  %v2691 = vsub.f32 %v2689, %v2690
  %v2692 = vand.u32 %v2691, 4294901760
  %2693 = vmatprep.mubr.f32.mxu0 %v2692
  %v2694 = vand.u32 %v2553, 4294901760
  %v2695 = vsub.f32 %v2553, %v2694
  %v2696 = vand.u32 %v2695, 4294901760
  %v2697 = vsub.f32 %v2695, %v2696
  %v2698 = vand.u32 %v2697, 4294901760
  %2699 = vmatmul.mubr.f32.gmra.mrb[0].mxu0 %v2698
  %v2700 = vpop.f32.mrb[0].mxu0
  %v2701 = vadd.f32 0.0, %v2700
  %v2702 = vpop.f32.mrb[0].mxu0
  %2703 = vdwg.mxu0
  %2704 = vmatprep.subr.mxu0 0.0
  %v2705 = vand.u32 %v2556, 4294901760
  %v2706 = vsub.f32 %v2556, %v2705
  %v2707 = vand.u32 %v2706, 4294901760
  %v2708 = vsub.f32 %v2706, %v2707
  %v2709 = vand.u32 %v2708, 4294901760
  %2710 = vmatpush1.msra.mxu0 %v2709
  %2711 = vmatprep.subr.mxu0 0.0
  %v2712 = vand.u32 %v2557, 4294901760
  %v2713 = vsub.f32 %v2557, %v2712
  %v2714 = vand.u32 %v2713, 4294901760
  %v2715 = vsub.f32 %v2713, %v2714
  %v2716 = vand.u32 %v2715, 4294901760
  %2717 = vmatpush1.msra.mxu0 %v2716
  %2718 = vmatprep.subr.mxu0 0.0
  %v2719 = vand.u32 %v2558, 4294901760
  %v2720 = vsub.f32 %v2558, %v2719
  %v2721 = vand.u32 %v2720, 4294901760
  %v2722 = vsub.f32 %v2720, %v2721
  %v2723 = vand.u32 %v2722, 4294901760
  %2724 = vmatpush1.msra.mxu0 %v2723
  %2725 = vmatprep.subr.mxu0 0.0
  %v2726 = vand.u32 %v2559, 4294901760
  %v2727 = vsub.f32 %v2559, %v2726
  %v2728 = vand.u32 %v2727, 4294901760
  %v2729 = vsub.f32 %v2727, %v2728
  %v2730 = vand.u32 %v2729, 4294901760
  %2731 = vmatpush1.msra.mxu0 %v2730
  %2732 = vmatprep.subr.mxu0 0.0
  %v2733 = vand.u32 %v2560, 4294901760
  %v2734 = vsub.f32 %v2560, %v2733
  %v2735 = vand.u32 %v2734, 4294901760
  %v2736 = vsub.f32 %v2734, %v2735
  %v2737 = vand.u32 %v2736, 4294901760
  %2738 = vmatpush1.msra.mxu0 %v2737
  %2739 = vmatprep.subr.mxu0 0.0
  %v2740 = vand.u32 %v2561, 4294901760
  %v2741 = vsub.f32 %v2561, %v2740
  %v2742 = vand.u32 %v2741, 4294901760
  %v2743 = vsub.f32 %v2741, %v2742
  %v2744 = vand.u32 %v2743, 4294901760
  %2745 = vmatpush1.msra.mxu0 %v2744
  %2746 = vmatprep.subr.mxu0 0.0
  %v2747 = vand.u32 %v2562, 4294901760
  %v2748 = vsub.f32 %v2562, %v2747
  %v2749 = vand.u32 %v2748, 4294901760
  %v2750 = vsub.f32 %v2748, %v2749
  %v2751 = vand.u32 %v2750, 4294901760
  %2752 = vmatpush1.msra.mxu0 %v2751
  %2753 = vmatprep.subr.mxu0 0.0
  %v2754 = vand.u32 %v2563, 4294901760
  %v2755 = vsub.f32 %v2563, %v2754
  %v2756 = vand.u32 %v2755, 4294901760
  %v2757 = vsub.f32 %v2755, %v2756
  %v2758 = vand.u32 %v2757, 4294901760
  %2759 = vmatpush1.msra.mxu0 %v2758
  %2760 = vmatprep.subr.mxu0 0.0
  %v2761 = vand.u32 %v2564, 4294901760
  %v2762 = vsub.f32 %v2564, %v2761
  %v2763 = vand.u32 %v2762, 4294901760
  %v2764 = vsub.f32 %v2762, %v2763
  %v2765 = vand.u32 %v2764, 4294901760
  %2766 = vmatpush1.msra.mxu0 %v2765
  %2767 = vmatprep.subr.mxu0 0.0
  %v2768 = vand.u32 %v2565, 4294901760
  %v2769 = vsub.f32 %v2565, %v2768
  %v2770 = vand.u32 %v2769, 4294901760
  %v2771 = vsub.f32 %v2769, %v2770
  %v2772 = vand.u32 %v2771, 4294901760
  %2773 = vmatpush1.msra.mxu0 %v2772
  %2774 = vmatprep.subr.mxu0 0.0
  %v2775 = vand.u32 %v2566, 4294901760
  %v2776 = vsub.f32 %v2566, %v2775
  %v2777 = vand.u32 %v2776, 4294901760
  %v2778 = vsub.f32 %v2776, %v2777
  %v2779 = vand.u32 %v2778, 4294901760
  %2780 = vmatpush1.msra.mxu0 %v2779
  %2781 = vmatprep.subr.mxu0 0.0
  %v2782 = vand.u32 %v2567, 4294901760
  %v2783 = vsub.f32 %v2567, %v2782
  %v2784 = vand.u32 %v2783, 4294901760
  %v2785 = vsub.f32 %v2783, %v2784
  %v2786 = vand.u32 %v2785, 4294901760
  %2787 = vmatpush1.msra.mxu0 %v2786
  %2788 = vmatprep.subr.mxu0 0.0
  %v2789 = vand.u32 %v2568, 4294901760
  %v2790 = vsub.f32 %v2568, %v2789
  %v2791 = vand.u32 %v2790, 4294901760
  %v2792 = vsub.f32 %v2790, %v2791
  %v2793 = vand.u32 %v2792, 4294901760
  %2794 = vmatpush1.msra.mxu0 %v2793
  %2795 = vmatprep.subr.mxu0 0.0
  %v2796 = vand.u32 %v2569, 4294901760
  %v2797 = vsub.f32 %v2569, %v2796
  %v2798 = vand.u32 %v2797, 4294901760
  %v2799 = vsub.f32 %v2797, %v2798
  %v2800 = vand.u32 %v2799, 4294901760
  %2801 = vmatpush1.msra.mxu0 %v2800
  %2802 = vmatprep.subr.mxu0 0.0
  %v2803 = vand.u32 %v2570, 4294901760
  %v2804 = vsub.f32 %v2570, %v2803
  %v2805 = vand.u32 %v2804, 4294901760
  %v2806 = vsub.f32 %v2804, %v2805
  %v2807 = vand.u32 %v2806, 4294901760
  %2808 = vmatpush1.msra.mxu0 %v2807
  %2809 = vmatprep.subr.mxu0 0.0
  %v2810 = vand.u32 %v2571, 4294901760
  %v2811 = vsub.f32 %v2571, %v2810
  %v2812 = vand.u32 %v2811, 4294901760
  %v2813 = vsub.f32 %v2811, %v2812
  %v2814 = vand.u32 %v2813, 4294901760
  %2815 = vmatpush1.msra.mxu0 %v2814
  %2816 = vmatprep.subr.mxu0 0.0
  %v2817 = vand.u32 %v2572, 4294901760
  %v2818 = vsub.f32 %v2572, %v2817
  %v2819 = vand.u32 %v2818, 4294901760
  %v2820 = vsub.f32 %v2818, %v2819
  %v2821 = vand.u32 %v2820, 4294901760
  %2822 = vmatpush1.msra.mxu0 %v2821
  %2823 = vmatprep.subr.mxu0 0.0
  %v2824 = vand.u32 %v2573, 4294901760
  %v2825 = vsub.f32 %v2573, %v2824
  %v2826 = vand.u32 %v2825, 4294901760
  %v2827 = vsub.f32 %v2825, %v2826
  %v2828 = vand.u32 %v2827, 4294901760
  %2829 = vmatpush1.msra.mxu0 %v2828
  %2830 = vmatprep.subr.mxu0 0.0
  %v2831 = vand.u32 %v2574, 4294901760
  %v2832 = vsub.f32 %v2574, %v2831
  %v2833 = vand.u32 %v2832, 4294901760
  %v2834 = vsub.f32 %v2832, %v2833
  %v2835 = vand.u32 %v2834, 4294901760
  %2836 = vmatpush1.msra.mxu0 %v2835
  %2837 = vmatprep.subr.mxu0 0.0
  %v2838 = vand.u32 %v2575, 4294901760
  %v2839 = vsub.f32 %v2575, %v2838
  %v2840 = vand.u32 %v2839, 4294901760
  %v2841 = vsub.f32 %v2839, %v2840
  %v2842 = vand.u32 %v2841, 4294901760
  %2843 = vmatpush1.msra.mxu0 %v2842
  %2844 = vmatprep.subr.mxu0 0.0
  %v2845 = vand.u32 %v2576, 4294901760
  %v2846 = vsub.f32 %v2576, %v2845
  %v2847 = vand.u32 %v2846, 4294901760
  %v2848 = vsub.f32 %v2846, %v2847
  %v2849 = vand.u32 %v2848, 4294901760
  %2850 = vmatpush1.msra.mxu0 %v2849
  %2851 = vmatprep.subr.mxu0 0.0
  %v2852 = vand.u32 %v2577, 4294901760
  %v2853 = vsub.f32 %v2577, %v2852
  %v2854 = vand.u32 %v2853, 4294901760
  %v2855 = vsub.f32 %v2853, %v2854
  %v2856 = vand.u32 %v2855, 4294901760
  %2857 = vmatpush1.msra.mxu0 %v2856
  %2858 = vmatprep.subr.mxu0 0.0
  %v2859 = vand.u32 %v2578, 4294901760
  %v2860 = vsub.f32 %v2578, %v2859
  %v2861 = vand.u32 %v2860, 4294901760
  %v2862 = vsub.f32 %v2860, %v2861
  %v2863 = vand.u32 %v2862, 4294901760
  %2864 = vmatpush1.msra.mxu0 %v2863
  %2865 = vmatprep.subr.mxu0 0.0
  %v2866 = vand.u32 %v2579, 4294901760
  %v2867 = vsub.f32 %v2579, %v2866
  %v2868 = vand.u32 %v2867, 4294901760
  %v2869 = vsub.f32 %v2867, %v2868
  %v2870 = vand.u32 %v2869, 4294901760
  %2871 = vmatpush1.msra.mxu0 %v2870
  %2872 = vmatprep.subr.mxu0 0.0
  %2873 = vmatpush1.msra.mxu0 0.0
  %2874 = vmatprep.subr.mxu0 0.0
  %2875 = vmatpush1.msra.mxu0 0.0
  %2876 = vmatprep.subr.mxu0 0.0
  %2877 = vmatpush1.msra.mxu0 0.0
  %2878 = vmatprep.subr.mxu0 0.0
  %2879 = vmatpush1.msra.mxu0 0.0
  %2880 = vmatprep.subr.mxu0 0.0
  %2881 = vmatpush1.msra.mxu0 0.0
  %2882 = vmatprep.subr.mxu0 0.0
  %2883 = vmatpush1.msra.mxu0 0.0
  %2884 = vmatprep.subr.mxu0 0.0
  %2885 = vmatpush1.msra.mxu0 0.0
  %2886 = vmatprep.subr.mxu0 0.0
  %2887 = vmatpush1.msra.mxu0 0.0
  %v2888 = vand.u32 %v2581, 4294901760
  %2889 = vmatprep.mubr.f32.mxu0 %v2888
  %v2890 = vand.u32 %v2554, 4294901760
  %2891 = vmatmul.mubr.f32.gmra.mrb[0].mxu0 %v2890
  %v2892 = vpop.f32.mrb[0].mxu0
  %v2893 = vadd.f32 %v2686, %v2892
  %v2894 = vpop.f32.mrb[0].mxu0
  %v2895 = vand.u32 %v2583, 4294901760
  %2896 = vmatprep.mubr.f32.mxu0 %v2895
  %v2897 = vand.u32 %v2553, 4294901760
  %2898 = vmatmul.mubr.f32.gmra.mrb[0].mxu0 %v2897
  %v2899 = vpop.f32.mrb[0].mxu0
  %v2900 = vadd.f32 %v2701, %v2899
  %v2901 = vpop.f32.mrb[0].mxu0
  %2902 = vdwg.mxu0
  %2903 = vmatprep.subr.mxu0 0.0
  %v2904 = vand.u32 %v2556, 4294901760
  %v2905 = vsub.f32 %v2556, %v2904
  %2906 = vmatpush1.msra.mxu0 %v2905
  %2907 = vmatprep.subr.mxu0 0.0
  %v2908 = vand.u32 %v2557, 4294901760
  %v2909 = vsub.f32 %v2557, %v2908
  %2910 = vmatpush1.msra.mxu0 %v2909
  %2911 = vmatprep.subr.mxu0 0.0
  %v2912 = vand.u32 %v2558, 4294901760
  %v2913 = vsub.f32 %v2558, %v2912
  %2914 = vmatpush1.msra.mxu0 %v2913
  %2915 = vmatprep.subr.mxu0 0.0
  %v2916 = vand.u32 %v2559, 4294901760
  %v2917 = vsub.f32 %v2559, %v2916
  %2918 = vmatpush1.msra.mxu0 %v2917
  %2919 = vmatprep.subr.mxu0 0.0
  %v2920 = vand.u32 %v2560, 4294901760
  %v2921 = vsub.f32 %v2560, %v2920
  %2922 = vmatpush1.msra.mxu0 %v2921
  %2923 = vmatprep.subr.mxu0 0.0
  %v2924 = vand.u32 %v2561, 4294901760
  %v2925 = vsub.f32 %v2561, %v2924
  %2926 = vmatpush1.msra.mxu0 %v2925
  %2927 = vmatprep.subr.mxu0 0.0
  %v2928 = vand.u32 %v2562, 4294901760
  %v2929 = vsub.f32 %v2562, %v2928
  %2930 = vmatpush1.msra.mxu0 %v2929
  %2931 = vmatprep.subr.mxu0 0.0
  %v2932 = vand.u32 %v2563, 4294901760
  %v2933 = vsub.f32 %v2563, %v2932
  %2934 = vmatpush1.msra.mxu0 %v2933
  %2935 = vmatprep.subr.mxu0 0.0
  %v2936 = vand.u32 %v2564, 4294901760
  %v2937 = vsub.f32 %v2564, %v2936
  %2938 = vmatpush1.msra.mxu0 %v2937
  %2939 = vmatprep.subr.mxu0 0.0
  %v2940 = vand.u32 %v2565, 4294901760
  %v2941 = vsub.f32 %v2565, %v2940
  %2942 = vmatpush1.msra.mxu0 %v2941
  %2943 = vmatprep.subr.mxu0 0.0
  %v2944 = vand.u32 %v2566, 4294901760
  %v2945 = vsub.f32 %v2566, %v2944
  %2946 = vmatpush1.msra.mxu0 %v2945
  %2947 = vmatprep.subr.mxu0 0.0
  %v2948 = vand.u32 %v2567, 4294901760
  %v2949 = vsub.f32 %v2567, %v2948
  %2950 = vmatpush1.msra.mxu0 %v2949
  %2951 = vmatprep.subr.mxu0 0.0
  %v2952 = vand.u32 %v2568, 4294901760
  %v2953 = vsub.f32 %v2568, %v2952
  %2954 = vmatpush1.msra.mxu0 %v2953
  %2955 = vmatprep.subr.mxu0 0.0
  %v2956 = vand.u32 %v2569, 4294901760
  %v2957 = vsub.f32 %v2569, %v2956
  %2958 = vmatpush1.msra.mxu0 %v2957
  %2959 = vmatprep.subr.mxu0 0.0
  %v2960 = vand.u32 %v2570, 4294901760
  %v2961 = vsub.f32 %v2570, %v2960
  %2962 = vmatpush1.msra.mxu0 %v2961
  %2963 = vmatprep.subr.mxu0 0.0
  %v2964 = vand.u32 %v2571, 4294901760
  %v2965 = vsub.f32 %v2571, %v2964
  %2966 = vmatpush1.msra.mxu0 %v2965
  %2967 = vmatprep.subr.mxu0 0.0
  %v2968 = vand.u32 %v2572, 4294901760
  %v2969 = vsub.f32 %v2572, %v2968
  %2970 = vmatpush1.msra.mxu0 %v2969
  %2971 = vmatprep.subr.mxu0 0.0
  %v2972 = vand.u32 %v2573, 4294901760
  %v2973 = vsub.f32 %v2573, %v2972
  %2974 = vmatpush1.msra.mxu0 %v2973
  %2975 = vmatprep.subr.mxu0 0.0
  %v2976 = vand.u32 %v2574, 4294901760
  %v2977 = vsub.f32 %v2574, %v2976
  %2978 = vmatpush1.msra.mxu0 %v2977
  %2979 = vmatprep.subr.mxu0 0.0
  %v2980 = vand.u32 %v2575, 4294901760
  %v2981 = vsub.f32 %v2575, %v2980
  %2982 = vmatpush1.msra.mxu0 %v2981
  %2983 = vmatprep.subr.mxu0 0.0
  %v2984 = vand.u32 %v2576, 4294901760
  %v2985 = vsub.f32 %v2576, %v2984
  %2986 = vmatpush1.msra.mxu0 %v2985
  %2987 = vmatprep.subr.mxu0 0.0
  %v2988 = vand.u32 %v2577, 4294901760
  %v2989 = vsub.f32 %v2577, %v2988
  %2990 = vmatpush1.msra.mxu0 %v2989
  %2991 = vmatprep.subr.mxu0 0.0
  %v2992 = vand.u32 %v2578, 4294901760
  %v2993 = vsub.f32 %v2578, %v2992
  %2994 = vmatpush1.msra.mxu0 %v2993
  %2995 = vmatprep.subr.mxu0 0.0
  %v2996 = vand.u32 %v2579, 4294901760
  %v2997 = vsub.f32 %v2579, %v2996
  %2998 = vmatpush1.msra.mxu0 %v2997
  %2999 = vmatprep.subr.mxu0 0.0
  %3000 = vmatpush1.msra.mxu0 0.0
  %3001 = vmatprep.subr.mxu0 0.0
  %3002 = vmatpush1.msra.mxu0 0.0
  %3003 = vmatprep.subr.mxu0 0.0
  %3004 = vmatpush1.msra.mxu0 0.0
  %3005 = vmatprep.subr.mxu0 0.0
  %3006 = vmatpush1.msra.mxu0 0.0
  %3007 = vmatprep.subr.mxu0 0.0
  %3008 = vmatpush1.msra.mxu0 0.0
  %3009 = vmatprep.subr.mxu0 0.0
  %3010 = vmatpush1.msra.mxu0 0.0
  %3011 = vmatprep.subr.mxu0 0.0
  %3012 = vmatpush1.msra.mxu0 0.0
  %3013 = vmatprep.subr.mxu0 0.0
  %3014 = vmatpush1.msra.mxu0 0.0
  %v3015 = vand.u32 %v2581, 4294901760
  %v3016 = vsub.f32 %v2581, %v3015
  %3017 = vmatprep.mubr.f32.mxu0 %v3016
  %v3018 = vand.u32 %v2554, 4294901760
  %v3019 = vsub.f32 %v2554, %v3018
  %3020 = vmatmul.mubr.f32.gmra.mrb[0].mxu0 %v3019
  %v3021 = vpop.f32.mrb[0].mxu0
  %v3022 = vadd.f32 %v2893, %v3021
  %v3023 = vpop.f32.mrb[0].mxu0
  %v3024 = vand.u32 %v2583, 4294901760
  %v3025 = vsub.f32 %v2583, %v3024
  %3026 = vmatprep.mubr.f32.mxu0 %v3025
  %v3027 = vand.u32 %v2553, 4294901760
  %v3028 = vsub.f32 %v2553, %v3027
  %3029 = vmatmul.mubr.f32.gmra.mrb[0].mxu0 %v3028
  %v3030 = vpop.f32.mrb[0].mxu0
  %v3031 = vadd.f32 %v2900, %v3030
  %v3032 = vpop.f32.mrb[0].mxu0
  %3033 = vdwg.mxu0
  %3034 = vmatprep.subr.mxu0 0.0
  %v3035 = vand.u32 %v2556, 4294901760
  %3036 = vmatpush1.msra.mxu0 %v3035
  %3037 = vmatprep.subr.mxu0 0.0
  %v3038 = vand.u32 %v2557, 4294901760
  %3039 = vmatpush1.msra.mxu0 %v3038
  %3040 = vmatprep.subr.mxu0 0.0
  %v3041 = vand.u32 %v2558, 4294901760
  %3042 = vmatpush1.msra.mxu0 %v3041
  %3043 = vmatprep.subr.mxu0 0.0
  %v3044 = vand.u32 %v2559, 4294901760
  %3045 = vmatpush1.msra.mxu0 %v3044
  %3046 = vmatprep.subr.mxu0 0.0
  %v3047 = vand.u32 %v2560, 4294901760
  %3048 = vmatpush1.msra.mxu0 %v3047
  %3049 = vmatprep.subr.mxu0 0.0
  %v3050 = vand.u32 %v2561, 4294901760
  %3051 = vmatpush1.msra.mxu0 %v3050
  %3052 = vmatprep.subr.mxu0 0.0
  %v3053 = vand.u32 %v2562, 4294901760
  %3054 = vmatpush1.msra.mxu0 %v3053
  %3055 = vmatprep.subr.mxu0 0.0
  %v3056 = vand.u32 %v2563, 4294901760
  %3057 = vmatpush1.msra.mxu0 %v3056
  %3058 = vmatprep.subr.mxu0 0.0
  %v3059 = vand.u32 %v2564, 4294901760
  %3060 = vmatpush1.msra.mxu0 %v3059
  %3061 = vmatprep.subr.mxu0 0.0
  %v3062 = vand.u32 %v2565, 4294901760
  %3063 = vmatpush1.msra.mxu0 %v3062
  %3064 = vmatprep.subr.mxu0 0.0
  %v3065 = vand.u32 %v2566, 4294901760
  %3066 = vmatpush1.msra.mxu0 %v3065
  %3067 = vmatprep.subr.mxu0 0.0
  %v3068 = vand.u32 %v2567, 4294901760
  %3069 = vmatpush1.msra.mxu0 %v3068
  %3070 = vmatprep.subr.mxu0 0.0
  %v3071 = vand.u32 %v2568, 4294901760
  %3072 = vmatpush1.msra.mxu0 %v3071
  %3073 = vmatprep.subr.mxu0 0.0
  %v3074 = vand.u32 %v2569, 4294901760
  %3075 = vmatpush1.msra.mxu0 %v3074
  %3076 = vmatprep.subr.mxu0 0.0
  %v3077 = vand.u32 %v2570, 4294901760
  %3078 = vmatpush1.msra.mxu0 %v3077
  %3079 = vmatprep.subr.mxu0 0.0
  %v3080 = vand.u32 %v2571, 4294901760
  %3081 = vmatpush1.msra.mxu0 %v3080
  %3082 = vmatprep.subr.mxu0 0.0
  %v3083 = vand.u32 %v2572, 4294901760
  %3084 = vmatpush1.msra.mxu0 %v3083
  %3085 = vmatprep.subr.mxu0 0.0
  %v3086 = vand.u32 %v2573, 4294901760
  %3087 = vmatpush1.msra.mxu0 %v3086
  %3088 = vmatprep.subr.mxu0 0.0
  %v3089 = vand.u32 %v2574, 4294901760
  %3090 = vmatpush1.msra.mxu0 %v3089
  %3091 = vmatprep.subr.mxu0 0.0
  %v3092 = vand.u32 %v2575, 4294901760
  %3093 = vmatpush1.msra.mxu0 %v3092
  %3094 = vmatprep.subr.mxu0 0.0
  %v3095 = vand.u32 %v2576, 4294901760
  %3096 = vmatpush1.msra.mxu0 %v3095
  %3097 = vmatprep.subr.mxu0 0.0
  %v3098 = vand.u32 %v2577, 4294901760
  %3099 = vmatpush1.msra.mxu0 %v3098
  %3100 = vmatprep.subr.mxu0 0.0
  %v3101 = vand.u32 %v2578, 4294901760
  %3102 = vmatpush1.msra.mxu0 %v3101
  %3103 = vmatprep.subr.mxu0 0.0
  %v3104 = vand.u32 %v2579, 4294901760
  %3105 = vmatpush1.msra.mxu0 %v3104
  %3106 = vmatprep.subr.mxu0 0.0
  %3107 = vmatpush1.msra.mxu0 0.0
  %3108 = vmatprep.subr.mxu0 0.0
  %3109 = vmatpush1.msra.mxu0 0.0
  %3110 = vmatprep.subr.mxu0 0.0
  %3111 = vmatpush1.msra.mxu0 0.0
  %3112 = vmatprep.subr.mxu0 0.0
  %3113 = vmatpush1.msra.mxu0 0.0
  %3114 = vmatprep.subr.mxu0 0.0
  %3115 = vmatpush1.msra.mxu0 0.0
  %3116 = vmatprep.subr.mxu0 0.0
  %3117 = vmatpush1.msra.mxu0 0.0
  %3118 = vmatprep.subr.mxu0 0.0
  %3119 = vmatpush1.msra.mxu0 0.0
  %3120 = vmatprep.subr.mxu0 0.0
  %3121 = vmatpush1.msra.mxu0 0.0
  %v3122 = vand.u32 %v2581, 4294901760
  %v3123 = vsub.f32 %v2581, %v3122
  %v3124 = vand.u32 %v3123, 4294901760
  %3125 = vmatprep.mubr.f32.mxu0 %v3124
  %v3126 = vand.u32 %v2554, 4294901760
  %v3127 = vsub.f32 %v2554, %v3126
  %v3128 = vand.u32 %v3127, 4294901760
  %3129 = vmatmul.mubr.f32.gmra.mrb[0].mxu0 %v3128
  %v3130 = vpop.f32.mrb[0].mxu0
  %v3131 = vadd.f32 %v3022, %v3130
  %v3132 = vpop.f32.mrb[0].mxu0
  %v3133 = vand.u32 %v2583, 4294901760
  %v3134 = vsub.f32 %v2583, %v3133
  %v3135 = vand.u32 %v3134, 4294901760
  %3136 = vmatprep.mubr.f32.mxu0 %v3135
  %v3137 = vand.u32 %v2553, 4294901760
  %v3138 = vsub.f32 %v2553, %v3137
  %v3139 = vand.u32 %v3138, 4294901760
  %3140 = vmatmul.mubr.f32.gmra.mrb[0].mxu0 %v3139
  %v3141 = vpop.f32.mrb[0].mxu0
  %v3142 = vadd.f32 %v3031, %v3141
  %v3143 = vpop.f32.mrb[0].mxu0
  %3144 = vdwg.mxu0
  %3145 = vmatprep.subr.mxu0 0.0
  %v3146 = vand.u32 %v2556, 4294901760
  %v3147 = vsub.f32 %v2556, %v3146
  %v3148 = vand.u32 %v3147, 4294901760
  %3149 = vmatpush1.msra.mxu0 %v3148
  %3150 = vmatprep.subr.mxu0 0.0
  %v3151 = vand.u32 %v2557, 4294901760
  %v3152 = vsub.f32 %v2557, %v3151
  %v3153 = vand.u32 %v3152, 4294901760
  %3154 = vmatpush1.msra.mxu0 %v3153
  %3155 = vmatprep.subr.mxu0 0.0
  %v3156 = vand.u32 %v2558, 4294901760
  %v3157 = vsub.f32 %v2558, %v3156
  %v3158 = vand.u32 %v3157, 4294901760
  %3159 = vmatpush1.msra.mxu0 %v3158
  %3160 = vmatprep.subr.mxu0 0.0
  %v3161 = vand.u32 %v2559, 4294901760
  %v3162 = vsub.f32 %v2559, %v3161
  %v3163 = vand.u32 %v3162, 4294901760
  %3164 = vmatpush1.msra.mxu0 %v3163
  %3165 = vmatprep.subr.mxu0 0.0
  %v3166 = vand.u32 %v2560, 4294901760
  %v3167 = vsub.f32 %v2560, %v3166
  %v3168 = vand.u32 %v3167, 4294901760
  %3169 = vmatpush1.msra.mxu0 %v3168
  %3170 = vmatprep.subr.mxu0 0.0
  %v3171 = vand.u32 %v2561, 4294901760
  %v3172 = vsub.f32 %v2561, %v3171
  %v3173 = vand.u32 %v3172, 4294901760
  %3174 = vmatpush1.msra.mxu0 %v3173
  %3175 = vmatprep.subr.mxu0 0.0
  %v3176 = vand.u32 %v2562, 4294901760
  %v3177 = vsub.f32 %v2562, %v3176
  %v3178 = vand.u32 %v3177, 4294901760
  %3179 = vmatpush1.msra.mxu0 %v3178
  %3180 = vmatprep.subr.mxu0 0.0
  %v3181 = vand.u32 %v2563, 4294901760
  %v3182 = vsub.f32 %v2563, %v3181
  %v3183 = vand.u32 %v3182, 4294901760
  %3184 = vmatpush1.msra.mxu0 %v3183
  %3185 = vmatprep.subr.mxu0 0.0
  %v3186 = vand.u32 %v2564, 4294901760
  %v3187 = vsub.f32 %v2564, %v3186
  %v3188 = vand.u32 %v3187, 4294901760
  %3189 = vmatpush1.msra.mxu0 %v3188
  %3190 = vmatprep.subr.mxu0 0.0
  %v3191 = vand.u32 %v2565, 4294901760
  %v3192 = vsub.f32 %v2565, %v3191
  %v3193 = vand.u32 %v3192, 4294901760
  %3194 = vmatpush1.msra.mxu0 %v3193
  %3195 = vmatprep.subr.mxu0 0.0
  %v3196 = vand.u32 %v2566, 4294901760
  %v3197 = vsub.f32 %v2566, %v3196
  %v3198 = vand.u32 %v3197, 4294901760
  %3199 = vmatpush1.msra.mxu0 %v3198
  %3200 = vmatprep.subr.mxu0 0.0
  %v3201 = vand.u32 %v2567, 4294901760
  %v3202 = vsub.f32 %v2567, %v3201
  %v3203 = vand.u32 %v3202, 4294901760
  %3204 = vmatpush1.msra.mxu0 %v3203
  %3205 = vmatprep.subr.mxu0 0.0
  %v3206 = vand.u32 %v2568, 4294901760
  %v3207 = vsub.f32 %v2568, %v3206
  %v3208 = vand.u32 %v3207, 4294901760
  %3209 = vmatpush1.msra.mxu0 %v3208
  %3210 = vmatprep.subr.mxu0 0.0
  %v3211 = vand.u32 %v2569, 4294901760
  %v3212 = vsub.f32 %v2569, %v3211
  %v3213 = vand.u32 %v3212, 4294901760
  %3214 = vmatpush1.msra.mxu0 %v3213
  %3215 = vmatprep.subr.mxu0 0.0
  %v3216 = vand.u32 %v2570, 4294901760
  %v3217 = vsub.f32 %v2570, %v3216
  %v3218 = vand.u32 %v3217, 4294901760
  %3219 = vmatpush1.msra.mxu0 %v3218
  %3220 = vmatprep.subr.mxu0 0.0
  %v3221 = vand.u32 %v2571, 4294901760
  %v3222 = vsub.f32 %v2571, %v3221
  %v3223 = vand.u32 %v3222, 4294901760
  %3224 = vmatpush1.msra.mxu0 %v3223
  %3225 = vmatprep.subr.mxu0 0.0
  %v3226 = vand.u32 %v2572, 4294901760
  %v3227 = vsub.f32 %v2572, %v3226
  %v3228 = vand.u32 %v3227, 4294901760
  %3229 = vmatpush1.msra.mxu0 %v3228
  %3230 = vmatprep.subr.mxu0 0.0
  %v3231 = vand.u32 %v2573, 4294901760
  %v3232 = vsub.f32 %v2573, %v3231
  %v3233 = vand.u32 %v3232, 4294901760
  %3234 = vmatpush1.msra.mxu0 %v3233
  %3235 = vmatprep.subr.mxu0 0.0
  %v3236 = vand.u32 %v2574, 4294901760
  %v3237 = vsub.f32 %v2574, %v3236
  %v3238 = vand.u32 %v3237, 4294901760
  %3239 = vmatpush1.msra.mxu0 %v3238
  %3240 = vmatprep.subr.mxu0 0.0
  %v3241 = vand.u32 %v2575, 4294901760
  %v3242 = vsub.f32 %v2575, %v3241
  %v3243 = vand.u32 %v3242, 4294901760
  %3244 = vmatpush1.msra.mxu0 %v3243
  %3245 = vmatprep.subr.mxu0 0.0
  %v3246 = vand.u32 %v2576, 4294901760
  %v3247 = vsub.f32 %v2576, %v3246
  %v3248 = vand.u32 %v3247, 4294901760
  %3249 = vmatpush1.msra.mxu0 %v3248
  %3250 = vmatprep.subr.mxu0 0.0
  %v3251 = vand.u32 %v2577, 4294901760
  %v3252 = vsub.f32 %v2577, %v3251
  %v3253 = vand.u32 %v3252, 4294901760
  %3254 = vmatpush1.msra.mxu0 %v3253
  %3255 = vmatprep.subr.mxu0 0.0
  %v3256 = vand.u32 %v2578, 4294901760
  %v3257 = vsub.f32 %v2578, %v3256
  %v3258 = vand.u32 %v3257, 4294901760
  %3259 = vmatpush1.msra.mxu0 %v3258
  %3260 = vmatprep.subr.mxu0 0.0
  %v3261 = vand.u32 %v2579, 4294901760
  %v3262 = vsub.f32 %v2579, %v3261
  %v3263 = vand.u32 %v3262, 4294901760
  %3264 = vmatpush1.msra.mxu0 %v3263
  %3265 = vmatprep.subr.mxu0 0.0
  %3266 = vmatpush1.msra.mxu0 0.0
  %3267 = vmatprep.subr.mxu0 0.0
  %3268 = vmatpush1.msra.mxu0 0.0
  %3269 = vmatprep.subr.mxu0 0.0
  %3270 = vmatpush1.msra.mxu0 0.0
  %3271 = vmatprep.subr.mxu0 0.0
  %3272 = vmatpush1.msra.mxu0 0.0
  %3273 = vmatprep.subr.mxu0 0.0
  %3274 = vmatpush1.msra.mxu0 0.0
  %3275 = vmatprep.subr.mxu0 0.0
  %3276 = vmatpush1.msra.mxu0 0.0
  %3277 = vmatprep.subr.mxu0 0.0
  %3278 = vmatpush1.msra.mxu0 0.0
  %3279 = vmatprep.subr.mxu0 0.0
  %3280 = vmatpush1.msra.mxu0 0.0
  %v3281 = vand.u32 %v2581, 4294901760
  %3282 = vmatprep.mubr.f32.mxu0 %v3281
  %v3283 = vand.u32 %v2554, 4294901760
  %3284 = vmatmul.mubr.f32.gmra.mrb[0].mxu0 %v3283
  %v3285 = vpop.f32.mrb[0].mxu0
  %v3286 = vadd.f32 %v3131, %v3285
  %v3287 = vpop.f32.mrb[0].mxu0
  %v3288 = vand.u32 %v2583, 4294901760
  %3289 = vmatprep.mubr.f32.mxu0 %v3288
  %v3290 = vand.u32 %v2553, 4294901760
  %3291 = vmatmul.mubr.f32.gmra.mrb[0].mxu0 %v3290
  %v3292 = vpop.f32.mrb[0].mxu0
  %v3293 = vadd.f32 %v3142, %v3292
  %v3294 = vpop.f32.mrb[0].mxu0
  %3295 = vdwg.mxu0
  %3296 = vmatprep.subr.mxu0 0.0
  %v3297 = vand.u32 %v2556, 4294901760
  %3298 = vmatpush1.msra.mxu0 %v3297
  %3299 = vmatprep.subr.mxu0 0.0
  %v3300 = vand.u32 %v2557, 4294901760
  %3301 = vmatpush1.msra.mxu0 %v3300
  %3302 = vmatprep.subr.mxu0 0.0
  %v3303 = vand.u32 %v2558, 4294901760
  %3304 = vmatpush1.msra.mxu0 %v3303
  %3305 = vmatprep.subr.mxu0 0.0
  %v3306 = vand.u32 %v2559, 4294901760
  %3307 = vmatpush1.msra.mxu0 %v3306
  %3308 = vmatprep.subr.mxu0 0.0
  %v3309 = vand.u32 %v2560, 4294901760
  %3310 = vmatpush1.msra.mxu0 %v3309
  %3311 = vmatprep.subr.mxu0 0.0
  %v3312 = vand.u32 %v2561, 4294901760
  %3313 = vmatpush1.msra.mxu0 %v3312
  %3314 = vmatprep.subr.mxu0 0.0
  %v3315 = vand.u32 %v2562, 4294901760
  %3316 = vmatpush1.msra.mxu0 %v3315
  %3317 = vmatprep.subr.mxu0 0.0
  %v3318 = vand.u32 %v2563, 4294901760
  %3319 = vmatpush1.msra.mxu0 %v3318
  %3320 = vmatprep.subr.mxu0 0.0
  %v3321 = vand.u32 %v2564, 4294901760
  %3322 = vmatpush1.msra.mxu0 %v3321
  %3323 = vmatprep.subr.mxu0 0.0
  %v3324 = vand.u32 %v2565, 4294901760
  %3325 = vmatpush1.msra.mxu0 %v3324
  %3326 = vmatprep.subr.mxu0 0.0
  %v3327 = vand.u32 %v2566, 4294901760
  %3328 = vmatpush1.msra.mxu0 %v3327
  %3329 = vmatprep.subr.mxu0 0.0
  %v3330 = vand.u32 %v2567, 4294901760
  %3331 = vmatpush1.msra.mxu0 %v3330
  %3332 = vmatprep.subr.mxu0 0.0
  %v3333 = vand.u32 %v2568, 4294901760
  %3334 = vmatpush1.msra.mxu0 %v3333
  %3335 = vmatprep.subr.mxu0 0.0
  %v3336 = vand.u32 %v2569, 4294901760
  %3337 = vmatpush1.msra.mxu0 %v3336
  %3338 = vmatprep.subr.mxu0 0.0
  %v3339 = vand.u32 %v2570, 4294901760
  %3340 = vmatpush1.msra.mxu0 %v3339
  %3341 = vmatprep.subr.mxu0 0.0
  %v3342 = vand.u32 %v2571, 4294901760
  %3343 = vmatpush1.msra.mxu0 %v3342
  %3344 = vmatprep.subr.mxu0 0.0
  %v3345 = vand.u32 %v2572, 4294901760
  %3346 = vmatpush1.msra.mxu0 %v3345
  %3347 = vmatprep.subr.mxu0 0.0
  %v3348 = vand.u32 %v2573, 4294901760
  %3349 = vmatpush1.msra.mxu0 %v3348
  %3350 = vmatprep.subr.mxu0 0.0
  %v3351 = vand.u32 %v2574, 4294901760
  %3352 = vmatpush1.msra.mxu0 %v3351
  %3353 = vmatprep.subr.mxu0 0.0
  %v3354 = vand.u32 %v2575, 4294901760
  %3355 = vmatpush1.msra.mxu0 %v3354
  %3356 = vmatprep.subr.mxu0 0.0
  %v3357 = vand.u32 %v2576, 4294901760
  %3358 = vmatpush1.msra.mxu0 %v3357
  %3359 = vmatprep.subr.mxu0 0.0
  %v3360 = vand.u32 %v2577, 4294901760
  %3361 = vmatpush1.msra.mxu0 %v3360
  %3362 = vmatprep.subr.mxu0 0.0
  %v3363 = vand.u32 %v2578, 4294901760
  %3364 = vmatpush1.msra.mxu0 %v3363
  %3365 = vmatprep.subr.mxu0 0.0
  %v3366 = vand.u32 %v2579, 4294901760
  %3367 = vmatpush1.msra.mxu0 %v3366
  %3368 = vmatprep.subr.mxu0 0.0
  %3369 = vmatpush1.msra.mxu0 0.0
  %3370 = vmatprep.subr.mxu0 0.0
  %3371 = vmatpush1.msra.mxu0 0.0
  %3372 = vmatprep.subr.mxu0 0.0
  %3373 = vmatpush1.msra.mxu0 0.0
  %3374 = vmatprep.subr.mxu0 0.0
  %3375 = vmatpush1.msra.mxu0 0.0
  %3376 = vmatprep.subr.mxu0 0.0
  %3377 = vmatpush1.msra.mxu0 0.0
  %3378 = vmatprep.subr.mxu0 0.0
  %3379 = vmatpush1.msra.mxu0 0.0
  %3380 = vmatprep.subr.mxu0 0.0
  %3381 = vmatpush1.msra.mxu0 0.0
  %3382 = vmatprep.subr.mxu0 0.0
  %3383 = vmatpush1.msra.mxu0 0.0
  %v3384 = vand.u32 %v2581, 4294901760
  %3385 = vmatprep.mubr.f32.mxu0 %v3384
  %v3386 = vand.u32 %v2554, 4294901760
  %3387 = vmatmul.mubr.f32.gmra.mrb[0].mxu0 %v3386
  %v3388 = vpop.f32.mrb[0].mxu0
  %v3389 = vadd.f32 %v3286, %v3388
  %v3390 = vpop.f32.mrb[0].mxu0
  %v3391 = vand.u32 %v2583, 4294901760
  %3392 = vmatprep.mubr.f32.mxu0 %v3391
  %v3393 = vand.u32 %v2553, 4294901760
  %3394 = vmatmul.mubr.f32.gmra.mrb[0].mxu0 %v3393
  %v3395 = vpop.f32.mrb[0].mxu0
  %v3396 = vadd.f32 %v3293, %v3395
  %v3397 = vpop.f32.mrb[0].mxu0
  %3398 = vdwg.mxu0
  %v3401 = vrot.slane %v3389, 6
  %v3402 = vrot.slane %v3396, 6
  %v3403 = vsel %vm1620, %v3401, %v3402
  %v3405 = vmax.f32 %v3389, %v3403
  %v3406 = vld [vmem:[%s6] sm:$0x1]
  %v3408 = vlaneseq
  %v3409 = vshrl.u32 %v3408, 7
  %v3410 = vsub.s32 0, %v3409
  %v3411 = vrot.slane %v3406, %v3410
  %v3413 = vadd.f32 %v3405, %v3411
  %v3415 = vrot.slane %v3413, 2
  %v3417 = vrot.slane %v3413, 4
  %v3419 = vld [vmem:[%s7] sm:$0xff]
  %v3420 = vld [vmem:[%s7 + $0x8] sm:$0xff]
  %v3421 = vld [vmem:[%s7 + $0x10] sm:$0xff]
  %v3422 = vld [vmem:[%s7 + $0x18] sm:$0xff]
  %v3423 = vld [vmem:[%s7 + $0x20] sm:$0xff]
  %v3424 = vld [vmem:[%s7 + $0x28] sm:$0xff]
  %v3425 = vld [vmem:[%s7 + $0x30] sm:$0xff]
  %v3426 = vld [vmem:[%s7 + $0x38] sm:$0xff]
  %v3427 = vld [vmem:[%s7 + $0x40] sm:$0xff]
  %v3428 = vld [vmem:[%s7 + $0x48] sm:$0xff]
  %v3429 = vld [vmem:[%s7 + $0x50] sm:$0xff]
  %v3430 = vld [vmem:[%s7 + $0x58] sm:$0xff]
  %v3431 = vld [vmem:[%s7 + $0x60] sm:$0xff]
  %v3432 = vld [vmem:[%s7 + $0x68] sm:$0xff]
  %v3433 = vld [vmem:[%s7 + $0x70] sm:$0xff]
  %v3434 = vld [vmem:[%s7 + $0x78] sm:$0xff]
  %v3435 = vld [vmem:[%s7 + $0x80] sm:$0xff]
  %v3436 = vld [vmem:[%s7 + $0x88] sm:$0xff]
  %v3437 = vld [vmem:[%s7 + $0x90] sm:$0xff]
  %v3438 = vld [vmem:[%s7 + $0x98] sm:$0xff]
  %v3439 = vld [vmem:[%s7 + $0xa0] sm:$0xff]
  %v3440 = vld [vmem:[%s7 + $0xa8] sm:$0xff]
  %v3441 = vld [vmem:[%s7 + $0xb0] sm:$0xff]
  %v3442 = vld [vmem:[%s7 + $0xb8] sm:$0xff]
  %v3443 = vld [vmem:[%s7 + $0xc0] sm:$0xff]
  %v3444 = vld [vmem:[%s7 + $0xc8] sm:$0xff]
  %v3445 = vld [vmem:[%s7 + $0xd0] sm:$0xff]
  %v3446 = vld [vmem:[%s7 + $0xd8] sm:$0xff]
  %v3447 = vld [vmem:[%s7 + $0xe0] sm:$0xff]
  %v3448 = vld [vmem:[%s7 + $0xe8] sm:$0xff]
  %v3449 = vld [vmem:[%s7 + $0xf0] sm:$0xff]
  %v3450 = vld [vmem:[%s7 + $0xf8] sm:$0xff]
  %v3451 = vld [vmem:[%s7 + $0x100] sm:$0xff]
  %v3452 = vld [vmem:[%s7 + $0x108] sm:$0xff]
  %v3453 = vld [vmem:[%s7 + $0x110] sm:$0xff]
  %v3454 = vld [vmem:[%s7 + $0x118] sm:$0xff]
  %v3455 = vld [vmem:[%s7 + $0x120] sm:$0xff]
  %v3456 = vld [vmem:[%s7 + $0x128] sm:$0xff]
  %v3457 = vld [vmem:[%s7 + $0x130] sm:$0xff]
  %v3458 = vld [vmem:[%s7 + $0x138] sm:$0xff]
  %v3459 = vld [vmem:[%s7 + $0x140] sm:$0xff]
  %v3460 = vld [vmem:[%s7 + $0x148] sm:$0xff]
  %v3461 = vld [vmem:[%s7 + $0x150] sm:$0xff]
  %v3462 = vld [vmem:[%s7 + $0x158] sm:$0xff]
  %v3463 = vld [vmem:[%s7 + $0x160] sm:$0xff]
  %v3464 = vld [vmem:[%s7 + $0x168] sm:$0xff]
  %v3465 = vld [vmem:[%s7 + $0x170] sm:$0xff]
  %v3466 = vld [vmem:[%s7 + $0x178] sm:$0xff]
  %v3467 = vld [vmem:[%s8] sm:$0x1]
  %v3469 = vlaneseq
  %v3470 = vshrl.u32 %v3469, 7
  %v3471 = vsub.s32 0, %v3470
  %v3472 = vrot.slane %v3467, %v3471
  %3474 = vmatprep.subr.mxu0 0.0
  %v3475 = vand.u32 %v3419, 4294901760
  %3476 = vmatpush1.msra.mxu0 %v3475
  %3477 = vmatprep.subr.mxu0 0.0
  %v3478 = vand.u32 %v3420, 4294901760
  %3479 = vmatpush1.msra.mxu0 %v3478
  %3480 = vmatprep.subr.mxu0 0.0
  %v3481 = vand.u32 %v3421, 4294901760
  %3482 = vmatpush1.msra.mxu0 %v3481
  %3483 = vmatprep.subr.mxu0 0.0
  %v3484 = vand.u32 %v3422, 4294901760
  %3485 = vmatpush1.msra.mxu0 %v3484
  %3486 = vmatprep.subr.mxu0 0.0
  %v3487 = vand.u32 %v3423, 4294901760
  %3488 = vmatpush1.msra.mxu0 %v3487
  %3489 = vmatprep.subr.mxu0 0.0
  %v3490 = vand.u32 %v3424, 4294901760
  %3491 = vmatpush1.msra.mxu0 %v3490
  %3492 = vmatprep.subr.mxu0 0.0
  %v3493 = vand.u32 %v3425, 4294901760
  %3494 = vmatpush1.msra.mxu0 %v3493
  %3495 = vmatprep.subr.mxu0 0.0
  %v3496 = vand.u32 %v3426, 4294901760
  %3497 = vmatpush1.msra.mxu0 %v3496
  %3498 = vmatprep.subr.mxu0 0.0
  %v3499 = vand.u32 %v3427, 4294901760
  %3500 = vmatpush1.msra.mxu0 %v3499
  %3501 = vmatprep.subr.mxu0 0.0
  %v3502 = vand.u32 %v3428, 4294901760
  %3503 = vmatpush1.msra.mxu0 %v3502
  %3504 = vmatprep.subr.mxu0 0.0
  %v3505 = vand.u32 %v3429, 4294901760
  %3506 = vmatpush1.msra.mxu0 %v3505
  %3507 = vmatprep.subr.mxu0 0.0
  %v3508 = vand.u32 %v3430, 4294901760
  %3509 = vmatpush1.msra.mxu0 %v3508
  %3510 = vmatprep.subr.mxu0 0.0
  %v3511 = vand.u32 %v3431, 4294901760
  %3512 = vmatpush1.msra.mxu0 %v3511
  %3513 = vmatprep.subr.mxu0 0.0
  %v3514 = vand.u32 %v3432, 4294901760
  %3515 = vmatpush1.msra.mxu0 %v3514
  %3516 = vmatprep.subr.mxu0 0.0
  %v3517 = vand.u32 %v3433, 4294901760
  %3518 = vmatpush1.msra.mxu0 %v3517
  %3519 = vmatprep.subr.mxu0 0.0
  %v3520 = vand.u32 %v3434, 4294901760
  %3521 = vmatpush1.msra.mxu0 %v3520
  %3522 = vmatprep.subr.mxu0 0.0
  %v3523 = vand.u32 %v3435, 4294901760
  %3524 = vmatpush1.msra.mxu0 %v3523
  %3525 = vmatprep.subr.mxu0 0.0
  %v3526 = vand.u32 %v3436, 4294901760
  %3527 = vmatpush1.msra.mxu0 %v3526
  %3528 = vmatprep.subr.mxu0 0.0
  %v3529 = vand.u32 %v3437, 4294901760
  %3530 = vmatpush1.msra.mxu0 %v3529
  %3531 = vmatprep.subr.mxu0 0.0
  %v3532 = vand.u32 %v3438, 4294901760
  %3533 = vmatpush1.msra.mxu0 %v3532
  %3534 = vmatprep.subr.mxu0 0.0
  %v3535 = vand.u32 %v3439, 4294901760
  %3536 = vmatpush1.msra.mxu0 %v3535
  %3537 = vmatprep.subr.mxu0 0.0
  %v3538 = vand.u32 %v3440, 4294901760
  %3539 = vmatpush1.msra.mxu0 %v3538
  %3540 = vmatprep.subr.mxu0 0.0
  %v3541 = vand.u32 %v3441, 4294901760
  %3542 = vmatpush1.msra.mxu0 %v3541
  %3543 = vmatprep.subr.mxu0 0.0
  %v3544 = vand.u32 %v3442, 4294901760
  %3545 = vmatpush1.msra.mxu0 %v3544
  %3546 = vmatprep.subr.mxu0 0.0
  %v3547 = vand.u32 %v3443, 4294901760
  %3548 = vmatpush1.msra.mxu0 %v3547
  %3549 = vmatprep.subr.mxu0 0.0
  %v3550 = vand.u32 %v3444, 4294901760
  %3551 = vmatpush1.msra.mxu0 %v3550
  %3552 = vmatprep.subr.mxu0 0.0
  %v3553 = vand.u32 %v3445, 4294901760
  %3554 = vmatpush1.msra.mxu0 %v3553
  %3555 = vmatprep.subr.mxu0 0.0
  %v3556 = vand.u32 %v3446, 4294901760
  %3557 = vmatpush1.msra.mxu0 %v3556
  %3558 = vmatprep.subr.mxu0 0.0
  %v3559 = vand.u32 %v3447, 4294901760
  %3560 = vmatpush1.msra.mxu0 %v3559
  %3561 = vmatprep.subr.mxu0 0.0
  %v3562 = vand.u32 %v3448, 4294901760
  %3563 = vmatpush1.msra.mxu0 %v3562
  %3564 = vmatprep.subr.mxu0 0.0
  %v3565 = vand.u32 %v3449, 4294901760
  %3566 = vmatpush1.msra.mxu0 %v3565
  %3567 = vmatprep.subr.mxu0 0.0
  %v3568 = vand.u32 %v3450, 4294901760
  %3569 = vmatpush1.msra.mxu0 %v3568
  %v3570 = vand.u32 %v3415, 4294901760
  %v3571 = vsub.f32 %v3415, %v3570
  %v3572 = vand.u32 %v3571, 4294901760
  %v3573 = vsub.f32 %v3571, %v3572
  %v3574 = vand.u32 %v3573, 4294901760
  %3575 = vmatprep.mubr.f32.mxu0 %v3574
  %v3576 = vand.u32 %v3413, 4294901760
  %v3577 = vsub.f32 %v3413, %v3576
  %v3578 = vand.u32 %v3577, 4294901760
  %v3579 = vsub.f32 %v3577, %v3578
  %v3580 = vand.u32 %v3579, 4294901760
  %3581 = vmatmul.mubr.f32.gmra.mrb[0].mxu0 %v3580
  %v3582 = vpop.f32.mrb[0].mxu0
  %v3583 = vadd.f32 %v3472, %v3582
  %v3584 = vpop.f32.mrb[0].mxu0
  %3585 = vdwg.mxu0
  %3586 = vmatprep.subr.mxu0 0.0
  %v3587 = vand.u32 %v3419, 4294901760
  %v3588 = vsub.f32 %v3419, %v3587
  %v3589 = vand.u32 %v3588, 4294901760
  %v3590 = vsub.f32 %v3588, %v3589
  %v3591 = vand.u32 %v3590, 4294901760
  %3592 = vmatpush1.msra.mxu0 %v3591
  %3593 = vmatprep.subr.mxu0 0.0
  %v3594 = vand.u32 %v3420, 4294901760
  %v3595 = vsub.f32 %v3420, %v3594
  %v3596 = vand.u32 %v3595, 4294901760
  %v3597 = vsub.f32 %v3595, %v3596
  %v3598 = vand.u32 %v3597, 4294901760
  %3599 = vmatpush1.msra.mxu0 %v3598
  %3600 = vmatprep.subr.mxu0 0.0
  %v3601 = vand.u32 %v3421, 4294901760
  %v3602 = vsub.f32 %v3421, %v3601
  %v3603 = vand.u32 %v3602, 4294901760
  %v3604 = vsub.f32 %v3602, %v3603
  %v3605 = vand.u32 %v3604, 4294901760
  %3606 = vmatpush1.msra.mxu0 %v3605
  %3607 = vmatprep.subr.mxu0 0.0
  %v3608 = vand.u32 %v3422, 4294901760
  %v3609 = vsub.f32 %v3422, %v3608
  %v3610 = vand.u32 %v3609, 4294901760
  %v3611 = vsub.f32 %v3609, %v3610
  %v3612 = vand.u32 %v3611, 4294901760
  %3613 = vmatpush1.msra.mxu0 %v3612
  %3614 = vmatprep.subr.mxu0 0.0
  %v3615 = vand.u32 %v3423, 4294901760
  %v3616 = vsub.f32 %v3423, %v3615
  %v3617 = vand.u32 %v3616, 4294901760
  %v3618 = vsub.f32 %v3616, %v3617
  %v3619 = vand.u32 %v3618, 4294901760
  %3620 = vmatpush1.msra.mxu0 %v3619
  %3621 = vmatprep.subr.mxu0 0.0
  %v3622 = vand.u32 %v3424, 4294901760
  %v3623 = vsub.f32 %v3424, %v3622
  %v3624 = vand.u32 %v3623, 4294901760
  %v3625 = vsub.f32 %v3623, %v3624
  %v3626 = vand.u32 %v3625, 4294901760
  %3627 = vmatpush1.msra.mxu0 %v3626
  %3628 = vmatprep.subr.mxu0 0.0
  %v3629 = vand.u32 %v3425, 4294901760
  %v3630 = vsub.f32 %v3425, %v3629
  %v3631 = vand.u32 %v3630, 4294901760
  %v3632 = vsub.f32 %v3630, %v3631
  %v3633 = vand.u32 %v3632, 4294901760
  %3634 = vmatpush1.msra.mxu0 %v3633
  %3635 = vmatprep.subr.mxu0 0.0
  %v3636 = vand.u32 %v3426, 4294901760
  %v3637 = vsub.f32 %v3426, %v3636
  %v3638 = vand.u32 %v3637, 4294901760
  %v3639 = vsub.f32 %v3637, %v3638
  %v3640 = vand.u32 %v3639, 4294901760
  %3641 = vmatpush1.msra.mxu0 %v3640
  %3642 = vmatprep.subr.mxu0 0.0
  %v3643 = vand.u32 %v3427, 4294901760
  %v3644 = vsub.f32 %v3427, %v3643
  %v3645 = vand.u32 %v3644, 4294901760
  %v3646 = vsub.f32 %v3644, %v3645
  %v3647 = vand.u32 %v3646, 4294901760
  %3648 = vmatpush1.msra.mxu0 %v3647
  %3649 = vmatprep.subr.mxu0 0.0
  %v3650 = vand.u32 %v3428, 4294901760
  %v3651 = vsub.f32 %v3428, %v3650
  %v3652 = vand.u32 %v3651, 4294901760
  %v3653 = vsub.f32 %v3651, %v3652
  %v3654 = vand.u32 %v3653, 4294901760
  %3655 = vmatpush1.msra.mxu0 %v3654
  %3656 = vmatprep.subr.mxu0 0.0
  %v3657 = vand.u32 %v3429, 4294901760
  %v3658 = vsub.f32 %v3429, %v3657
  %v3659 = vand.u32 %v3658, 4294901760
  %v3660 = vsub.f32 %v3658, %v3659
  %v3661 = vand.u32 %v3660, 4294901760
  %3662 = vmatpush1.msra.mxu0 %v3661
  %3663 = vmatprep.subr.mxu0 0.0
  %v3664 = vand.u32 %v3430, 4294901760
  %v3665 = vsub.f32 %v3430, %v3664
  %v3666 = vand.u32 %v3665, 4294901760
  %v3667 = vsub.f32 %v3665, %v3666
  %v3668 = vand.u32 %v3667, 4294901760
  %3669 = vmatpush1.msra.mxu0 %v3668
  %3670 = vmatprep.subr.mxu0 0.0
  %v3671 = vand.u32 %v3431, 4294901760
  %v3672 = vsub.f32 %v3431, %v3671
  %v3673 = vand.u32 %v3672, 4294901760
  %v3674 = vsub.f32 %v3672, %v3673
  %v3675 = vand.u32 %v3674, 4294901760
  %3676 = vmatpush1.msra.mxu0 %v3675
  %3677 = vmatprep.subr.mxu0 0.0
  %v3678 = vand.u32 %v3432, 4294901760
  %v3679 = vsub.f32 %v3432, %v3678
  %v3680 = vand.u32 %v3679, 4294901760
  %v3681 = vsub.f32 %v3679, %v3680
  %v3682 = vand.u32 %v3681, 4294901760
  %3683 = vmatpush1.msra.mxu0 %v3682
  %3684 = vmatprep.subr.mxu0 0.0
  %v3685 = vand.u32 %v3433, 4294901760
  %v3686 = vsub.f32 %v3433, %v3685
  %v3687 = vand.u32 %v3686, 4294901760
  %v3688 = vsub.f32 %v3686, %v3687
  %v3689 = vand.u32 %v3688, 4294901760
  %3690 = vmatpush1.msra.mxu0 %v3689
  %3691 = vmatprep.subr.mxu0 0.0
  %v3692 = vand.u32 %v3434, 4294901760
  %v3693 = vsub.f32 %v3434, %v3692
  %v3694 = vand.u32 %v3693, 4294901760
  %v3695 = vsub.f32 %v3693, %v3694
  %v3696 = vand.u32 %v3695, 4294901760
  %3697 = vmatpush1.msra.mxu0 %v3696
  %3698 = vmatprep.subr.mxu0 0.0
  %v3699 = vand.u32 %v3435, 4294901760
  %v3700 = vsub.f32 %v3435, %v3699
  %v3701 = vand.u32 %v3700, 4294901760
  %v3702 = vsub.f32 %v3700, %v3701
  %v3703 = vand.u32 %v3702, 4294901760
  %3704 = vmatpush1.msra.mxu0 %v3703
  %3705 = vmatprep.subr.mxu0 0.0
  %v3706 = vand.u32 %v3436, 4294901760
  %v3707 = vsub.f32 %v3436, %v3706
  %v3708 = vand.u32 %v3707, 4294901760
  %v3709 = vsub.f32 %v3707, %v3708
  %v3710 = vand.u32 %v3709, 4294901760
  %3711 = vmatpush1.msra.mxu0 %v3710
  %3712 = vmatprep.subr.mxu0 0.0
  %v3713 = vand.u32 %v3437, 4294901760
  %v3714 = vsub.f32 %v3437, %v3713
  %v3715 = vand.u32 %v3714, 4294901760
  %v3716 = vsub.f32 %v3714, %v3715
  %v3717 = vand.u32 %v3716, 4294901760
  %3718 = vmatpush1.msra.mxu0 %v3717
  %3719 = vmatprep.subr.mxu0 0.0
  %v3720 = vand.u32 %v3438, 4294901760
  %v3721 = vsub.f32 %v3438, %v3720
  %v3722 = vand.u32 %v3721, 4294901760
  %v3723 = vsub.f32 %v3721, %v3722
  %v3724 = vand.u32 %v3723, 4294901760
  %3725 = vmatpush1.msra.mxu0 %v3724
  %3726 = vmatprep.subr.mxu0 0.0
  %v3727 = vand.u32 %v3439, 4294901760
  %v3728 = vsub.f32 %v3439, %v3727
  %v3729 = vand.u32 %v3728, 4294901760
  %v3730 = vsub.f32 %v3728, %v3729
  %v3731 = vand.u32 %v3730, 4294901760
  %3732 = vmatpush1.msra.mxu0 %v3731
  %3733 = vmatprep.subr.mxu0 0.0
  %v3734 = vand.u32 %v3440, 4294901760
  %v3735 = vsub.f32 %v3440, %v3734
  %v3736 = vand.u32 %v3735, 4294901760
  %v3737 = vsub.f32 %v3735, %v3736
  %v3738 = vand.u32 %v3737, 4294901760
  %3739 = vmatpush1.msra.mxu0 %v3738
  %3740 = vmatprep.subr.mxu0 0.0
  %v3741 = vand.u32 %v3441, 4294901760
  %v3742 = vsub.f32 %v3441, %v3741
  %v3743 = vand.u32 %v3742, 4294901760
  %v3744 = vsub.f32 %v3742, %v3743
  %v3745 = vand.u32 %v3744, 4294901760
  %3746 = vmatpush1.msra.mxu0 %v3745
  %3747 = vmatprep.subr.mxu0 0.0
  %v3748 = vand.u32 %v3442, 4294901760
  %v3749 = vsub.f32 %v3442, %v3748
  %v3750 = vand.u32 %v3749, 4294901760
  %v3751 = vsub.f32 %v3749, %v3750
  %v3752 = vand.u32 %v3751, 4294901760
  %3753 = vmatpush1.msra.mxu0 %v3752
  %3754 = vmatprep.subr.mxu0 0.0
  %v3755 = vand.u32 %v3443, 4294901760
  %v3756 = vsub.f32 %v3443, %v3755
  %v3757 = vand.u32 %v3756, 4294901760
  %v3758 = vsub.f32 %v3756, %v3757
  %v3759 = vand.u32 %v3758, 4294901760
  %3760 = vmatpush1.msra.mxu0 %v3759
  %3761 = vmatprep.subr.mxu0 0.0
  %v3762 = vand.u32 %v3444, 4294901760
  %v3763 = vsub.f32 %v3444, %v3762
  %v3764 = vand.u32 %v3763, 4294901760
  %v3765 = vsub.f32 %v3763, %v3764
  %v3766 = vand.u32 %v3765, 4294901760
  %3767 = vmatpush1.msra.mxu0 %v3766
  %3768 = vmatprep.subr.mxu0 0.0
  %v3769 = vand.u32 %v3445, 4294901760
  %v3770 = vsub.f32 %v3445, %v3769
  %v3771 = vand.u32 %v3770, 4294901760
  %v3772 = vsub.f32 %v3770, %v3771
  %v3773 = vand.u32 %v3772, 4294901760
  %3774 = vmatpush1.msra.mxu0 %v3773
  %3775 = vmatprep.subr.mxu0 0.0
  %v3776 = vand.u32 %v3446, 4294901760
  %v3777 = vsub.f32 %v3446, %v3776
  %v3778 = vand.u32 %v3777, 4294901760
  %v3779 = vsub.f32 %v3777, %v3778
  %v3780 = vand.u32 %v3779, 4294901760
  %3781 = vmatpush1.msra.mxu0 %v3780
  %3782 = vmatprep.subr.mxu0 0.0
  %v3783 = vand.u32 %v3447, 4294901760
  %v3784 = vsub.f32 %v3447, %v3783
  %v3785 = vand.u32 %v3784, 4294901760
  %v3786 = vsub.f32 %v3784, %v3785
  %v3787 = vand.u32 %v3786, 4294901760
  %3788 = vmatpush1.msra.mxu0 %v3787
  %3789 = vmatprep.subr.mxu0 0.0
  %v3790 = vand.u32 %v3448, 4294901760
  %v3791 = vsub.f32 %v3448, %v3790
  %v3792 = vand.u32 %v3791, 4294901760
  %v3793 = vsub.f32 %v3791, %v3792
  %v3794 = vand.u32 %v3793, 4294901760
  %3795 = vmatpush1.msra.mxu0 %v3794
  %3796 = vmatprep.subr.mxu0 0.0
  %v3797 = vand.u32 %v3449, 4294901760
  %v3798 = vsub.f32 %v3449, %v3797
  %v3799 = vand.u32 %v3798, 4294901760
  %v3800 = vsub.f32 %v3798, %v3799
  %v3801 = vand.u32 %v3800, 4294901760
  %3802 = vmatpush1.msra.mxu0 %v3801
  %3803 = vmatprep.subr.mxu0 0.0
  %v3804 = vand.u32 %v3450, 4294901760
  %v3805 = vsub.f32 %v3450, %v3804
  %v3806 = vand.u32 %v3805, 4294901760
  %v3807 = vsub.f32 %v3805, %v3806
  %v3808 = vand.u32 %v3807, 4294901760
  %3809 = vmatpush1.msra.mxu0 %v3808
  %v3810 = vand.u32 %v3415, 4294901760
  %3811 = vmatprep.mubr.f32.mxu0 %v3810
  %v3812 = vand.u32 %v3413, 4294901760
  %3813 = vmatmul.mubr.f32.gmra.mrb[0].mxu0 %v3812
  %v3814 = vpop.f32.mrb[0].mxu0
  %v3815 = vadd.f32 %v3583, %v3814
  %v3816 = vpop.f32.mrb[0].mxu0
  %3817 = vdwg.mxu0
  %3818 = vmatprep.subr.mxu0 0.0
  %v3819 = vand.u32 %v3419, 4294901760
  %v3820 = vsub.f32 %v3419, %v3819
  %3821 = vmatpush1.msra.mxu0 %v3820
  %3822 = vmatprep.subr.mxu0 0.0
  %v3823 = vand.u32 %v3420, 4294901760
  %v3824 = vsub.f32 %v3420, %v3823
  %3825 = vmatpush1.msra.mxu0 %v3824
  %3826 = vmatprep.subr.mxu0 0.0
  %v3827 = vand.u32 %v3421, 4294901760
  %v3828 = vsub.f32 %v3421, %v3827
  %3829 = vmatpush1.msra.mxu0 %v3828
  %3830 = vmatprep.subr.mxu0 0.0
  %v3831 = vand.u32 %v3422, 4294901760
  %v3832 = vsub.f32 %v3422, %v3831
  %3833 = vmatpush1.msra.mxu0 %v3832
  %3834 = vmatprep.subr.mxu0 0.0
  %v3835 = vand.u32 %v3423, 4294901760
  %v3836 = vsub.f32 %v3423, %v3835
  %3837 = vmatpush1.msra.mxu0 %v3836
  %3838 = vmatprep.subr.mxu0 0.0
  %v3839 = vand.u32 %v3424, 4294901760
  %v3840 = vsub.f32 %v3424, %v3839
  %3841 = vmatpush1.msra.mxu0 %v3840
  %3842 = vmatprep.subr.mxu0 0.0
  %v3843 = vand.u32 %v3425, 4294901760
  %v3844 = vsub.f32 %v3425, %v3843
  %3845 = vmatpush1.msra.mxu0 %v3844
  %3846 = vmatprep.subr.mxu0 0.0
  %v3847 = vand.u32 %v3426, 4294901760
  %v3848 = vsub.f32 %v3426, %v3847
  %3849 = vmatpush1.msra.mxu0 %v3848
  %3850 = vmatprep.subr.mxu0 0.0
  %v3851 = vand.u32 %v3427, 4294901760
  %v3852 = vsub.f32 %v3427, %v3851
  %3853 = vmatpush1.msra.mxu0 %v3852
  %3854 = vmatprep.subr.mxu0 0.0
  %v3855 = vand.u32 %v3428, 4294901760
  %v3856 = vsub.f32 %v3428, %v3855
  %3857 = vmatpush1.msra.mxu0 %v3856
  %3858 = vmatprep.subr.mxu0 0.0
  %v3859 = vand.u32 %v3429, 4294901760
  %v3860 = vsub.f32 %v3429, %v3859
  %3861 = vmatpush1.msra.mxu0 %v3860
  %3862 = vmatprep.subr.mxu0 0.0
  %v3863 = vand.u32 %v3430, 4294901760
  %v3864 = vsub.f32 %v3430, %v3863
  %3865 = vmatpush1.msra.mxu0 %v3864
  %3866 = vmatprep.subr.mxu0 0.0
  %v3867 = vand.u32 %v3431, 4294901760
  %v3868 = vsub.f32 %v3431, %v3867
  %3869 = vmatpush1.msra.mxu0 %v3868
  %3870 = vmatprep.subr.mxu0 0.0
  %v3871 = vand.u32 %v3432, 4294901760
  %v3872 = vsub.f32 %v3432, %v3871
  %3873 = vmatpush1.msra.mxu0 %v3872
  %3874 = vmatprep.subr.mxu0 0.0
  %v3875 = vand.u32 %v3433, 4294901760
  %v3876 = vsub.f32 %v3433, %v3875
  %3877 = vmatpush1.msra.mxu0 %v3876
  %3878 = vmatprep.subr.mxu0 0.0
  %v3879 = vand.u32 %v3434, 4294901760
  %v3880 = vsub.f32 %v3434, %v3879
  %3881 = vmatpush1.msra.mxu0 %v3880
  %3882 = vmatprep.subr.mxu0 0.0
  %v3883 = vand.u32 %v3435, 4294901760
  %v3884 = vsub.f32 %v3435, %v3883
  %3885 = vmatpush1.msra.mxu0 %v3884
  %3886 = vmatprep.subr.mxu0 0.0
  %v3887 = vand.u32 %v3436, 4294901760
  %v3888 = vsub.f32 %v3436, %v3887
  %3889 = vmatpush1.msra.mxu0 %v3888
  %3890 = vmatprep.subr.mxu0 0.0
  %v3891 = vand.u32 %v3437, 4294901760
  %v3892 = vsub.f32 %v3437, %v3891
  %3893 = vmatpush1.msra.mxu0 %v3892
  %3894 = vmatprep.subr.mxu0 0.0
  %v3895 = vand.u32 %v3438, 4294901760
  %v3896 = vsub.f32 %v3438, %v3895
  %3897 = vmatpush1.msra.mxu0 %v3896
  %3898 = vmatprep.subr.mxu0 0.0
  %v3899 = vand.u32 %v3439, 4294901760
  %v3900 = vsub.f32 %v3439, %v3899
  %3901 = vmatpush1.msra.mxu0 %v3900
  %3902 = vmatprep.subr.mxu0 0.0
  %v3903 = vand.u32 %v3440, 4294901760
  %v3904 = vsub.f32 %v3440, %v3903
  %3905 = vmatpush1.msra.mxu0 %v3904
  %3906 = vmatprep.subr.mxu0 0.0
  %v3907 = vand.u32 %v3441, 4294901760
  %v3908 = vsub.f32 %v3441, %v3907
  %3909 = vmatpush1.msra.mxu0 %v3908
  %3910 = vmatprep.subr.mxu0 0.0
  %v3911 = vand.u32 %v3442, 4294901760
  %v3912 = vsub.f32 %v3442, %v3911
  %3913 = vmatpush1.msra.mxu0 %v3912
  %3914 = vmatprep.subr.mxu0 0.0
  %v3915 = vand.u32 %v3443, 4294901760
  %v3916 = vsub.f32 %v3443, %v3915
  %3917 = vmatpush1.msra.mxu0 %v3916
  %3918 = vmatprep.subr.mxu0 0.0
  %v3919 = vand.u32 %v3444, 4294901760
  %v3920 = vsub.f32 %v3444, %v3919
  %3921 = vmatpush1.msra.mxu0 %v3920
  %3922 = vmatprep.subr.mxu0 0.0
  %v3923 = vand.u32 %v3445, 4294901760
  %v3924 = vsub.f32 %v3445, %v3923
  %3925 = vmatpush1.msra.mxu0 %v3924
  %3926 = vmatprep.subr.mxu0 0.0
  %v3927 = vand.u32 %v3446, 4294901760
  %v3928 = vsub.f32 %v3446, %v3927
  %3929 = vmatpush1.msra.mxu0 %v3928
  %3930 = vmatprep.subr.mxu0 0.0
  %v3931 = vand.u32 %v3447, 4294901760
  %v3932 = vsub.f32 %v3447, %v3931
  %3933 = vmatpush1.msra.mxu0 %v3932
  %3934 = vmatprep.subr.mxu0 0.0
  %v3935 = vand.u32 %v3448, 4294901760
  %v3936 = vsub.f32 %v3448, %v3935
  %3937 = vmatpush1.msra.mxu0 %v3936
  %3938 = vmatprep.subr.mxu0 0.0
  %v3939 = vand.u32 %v3449, 4294901760
  %v3940 = vsub.f32 %v3449, %v3939
  %3941 = vmatpush1.msra.mxu0 %v3940
  %3942 = vmatprep.subr.mxu0 0.0
  %v3943 = vand.u32 %v3450, 4294901760
  %v3944 = vsub.f32 %v3450, %v3943
  %3945 = vmatpush1.msra.mxu0 %v3944
  %v3946 = vand.u32 %v3415, 4294901760
  %v3947 = vsub.f32 %v3415, %v3946
  %3948 = vmatprep.mubr.f32.mxu0 %v3947
  %v3949 = vand.u32 %v3413, 4294901760
  %v3950 = vsub.f32 %v3413, %v3949
  %3951 = vmatmul.mubr.f32.gmra.mrb[0].mxu0 %v3950
  %v3952 = vpop.f32.mrb[0].mxu0
  %v3953 = vadd.f32 %v3815, %v3952
  %v3954 = vpop.f32.mrb[0].mxu0
  %3955 = vdwg.mxu0
  %3956 = vmatprep.subr.mxu0 0.0
  %v3957 = vand.u32 %v3419, 4294901760
  %3958 = vmatpush1.msra.mxu0 %v3957
  %3959 = vmatprep.subr.mxu0 0.0
  %v3960 = vand.u32 %v3420, 4294901760
  %3961 = vmatpush1.msra.mxu0 %v3960
  %3962 = vmatprep.subr.mxu0 0.0
  %v3963 = vand.u32 %v3421, 4294901760
  %3964 = vmatpush1.msra.mxu0 %v3963
  %3965 = vmatprep.subr.mxu0 0.0
  %v3966 = vand.u32 %v3422, 4294901760
  %3967 = vmatpush1.msra.mxu0 %v3966
  %3968 = vmatprep.subr.mxu0 0.0
  %v3969 = vand.u32 %v3423, 4294901760
  %3970 = vmatpush1.msra.mxu0 %v3969
  %3971 = vmatprep.subr.mxu0 0.0
  %v3972 = vand.u32 %v3424, 4294901760
  %3973 = vmatpush1.msra.mxu0 %v3972
  %3974 = vmatprep.subr.mxu0 0.0
  %v3975 = vand.u32 %v3425, 4294901760
  %3976 = vmatpush1.msra.mxu0 %v3975
  %3977 = vmatprep.subr.mxu0 0.0
  %v3978 = vand.u32 %v3426, 4294901760
  %3979 = vmatpush1.msra.mxu0 %v3978
  %3980 = vmatprep.subr.mxu0 0.0
  %v3981 = vand.u32 %v3427, 4294901760
  %3982 = vmatpush1.msra.mxu0 %v3981
  %3983 = vmatprep.subr.mxu0 0.0
  %v3984 = vand.u32 %v3428, 4294901760
  %3985 = vmatpush1.msra.mxu0 %v3984
  %3986 = vmatprep.subr.mxu0 0.0
  %v3987 = vand.u32 %v3429, 4294901760
  %3988 = vmatpush1.msra.mxu0 %v3987
  %3989 = vmatprep.subr.mxu0 0.0
  %v3990 = vand.u32 %v3430, 4294901760
  %3991 = vmatpush1.msra.mxu0 %v3990
  %3992 = vmatprep.subr.mxu0 0.0
  %v3993 = vand.u32 %v3431, 4294901760
  %3994 = vmatpush1.msra.mxu0 %v3993
  %3995 = vmatprep.subr.mxu0 0.0
  %v3996 = vand.u32 %v3432, 4294901760
  %3997 = vmatpush1.msra.mxu0 %v3996
  %3998 = vmatprep.subr.mxu0 0.0
  %v3999 = vand.u32 %v3433, 4294901760
  %4000 = vmatpush1.msra.mxu0 %v3999
  %4001 = vmatprep.subr.mxu0 0.0
  %v4002 = vand.u32 %v3434, 4294901760
  %4003 = vmatpush1.msra.mxu0 %v4002
  %4004 = vmatprep.subr.mxu0 0.0
  %v4005 = vand.u32 %v3435, 4294901760
  %4006 = vmatpush1.msra.mxu0 %v4005
  %4007 = vmatprep.subr.mxu0 0.0
  %v4008 = vand.u32 %v3436, 4294901760
  %4009 = vmatpush1.msra.mxu0 %v4008
  %4010 = vmatprep.subr.mxu0 0.0
  %v4011 = vand.u32 %v3437, 4294901760
  %4012 = vmatpush1.msra.mxu0 %v4011
  %4013 = vmatprep.subr.mxu0 0.0
  %v4014 = vand.u32 %v3438, 4294901760
  %4015 = vmatpush1.msra.mxu0 %v4014
  %4016 = vmatprep.subr.mxu0 0.0
  %v4017 = vand.u32 %v3439, 4294901760
  %4018 = vmatpush1.msra.mxu0 %v4017
  %4019 = vmatprep.subr.mxu0 0.0
  %v4020 = vand.u32 %v3440, 4294901760
  %4021 = vmatpush1.msra.mxu0 %v4020
  %4022 = vmatprep.subr.mxu0 0.0
  %v4023 = vand.u32 %v3441, 4294901760
  %4024 = vmatpush1.msra.mxu0 %v4023
  %4025 = vmatprep.subr.mxu0 0.0
  %v4026 = vand.u32 %v3442, 4294901760
  %4027 = vmatpush1.msra.mxu0 %v4026
  %4028 = vmatprep.subr.mxu0 0.0
  %v4029 = vand.u32 %v3443, 4294901760
  %4030 = vmatpush1.msra.mxu0 %v4029
  %4031 = vmatprep.subr.mxu0 0.0
  %v4032 = vand.u32 %v3444, 4294901760
  %4033 = vmatpush1.msra.mxu0 %v4032
  %4034 = vmatprep.subr.mxu0 0.0
  %v4035 = vand.u32 %v3445, 4294901760
  %4036 = vmatpush1.msra.mxu0 %v4035
  %4037 = vmatprep.subr.mxu0 0.0
  %v4038 = vand.u32 %v3446, 4294901760
  %4039 = vmatpush1.msra.mxu0 %v4038
  %4040 = vmatprep.subr.mxu0 0.0
  %v4041 = vand.u32 %v3447, 4294901760
  %4042 = vmatpush1.msra.mxu0 %v4041
  %4043 = vmatprep.subr.mxu0 0.0
  %v4044 = vand.u32 %v3448, 4294901760
  %4045 = vmatpush1.msra.mxu0 %v4044
  %4046 = vmatprep.subr.mxu0 0.0
  %v4047 = vand.u32 %v3449, 4294901760
  %4048 = vmatpush1.msra.mxu0 %v4047
  %4049 = vmatprep.subr.mxu0 0.0
  %v4050 = vand.u32 %v3450, 4294901760
  %4051 = vmatpush1.msra.mxu0 %v4050
  %v4052 = vand.u32 %v3415, 4294901760
  %v4053 = vsub.f32 %v3415, %v4052
  %v4054 = vand.u32 %v4053, 4294901760
  %4055 = vmatprep.mubr.f32.mxu0 %v4054
  %v4056 = vand.u32 %v3413, 4294901760
  %v4057 = vsub.f32 %v3413, %v4056
  %v4058 = vand.u32 %v4057, 4294901760
  %4059 = vmatmul.mubr.f32.gmra.mrb[0].mxu0 %v4058
  %v4060 = vpop.f32.mrb[0].mxu0
  %v4061 = vadd.f32 %v3953, %v4060
  %v4062 = vpop.f32.mrb[0].mxu0
  %4063 = vdwg.mxu0
  %4064 = vmatprep.subr.mxu0 0.0
  %v4065 = vand.u32 %v3419, 4294901760
  %v4066 = vsub.f32 %v3419, %v4065
  %v4067 = vand.u32 %v4066, 4294901760
  %4068 = vmatpush1.msra.mxu0 %v4067
  %4069 = vmatprep.subr.mxu0 0.0
  %v4070 = vand.u32 %v3420, 4294901760
  %v4071 = vsub.f32 %v3420, %v4070
  %v4072 = vand.u32 %v4071, 4294901760
  %4073 = vmatpush1.msra.mxu0 %v4072
  %4074 = vmatprep.subr.mxu0 0.0
  %v4075 = vand.u32 %v3421, 4294901760
  %v4076 = vsub.f32 %v3421, %v4075
  %v4077 = vand.u32 %v4076, 4294901760
  %4078 = vmatpush1.msra.mxu0 %v4077
  %4079 = vmatprep.subr.mxu0 0.0
  %v4080 = vand.u32 %v3422, 4294901760
  %v4081 = vsub.f32 %v3422, %v4080
  %v4082 = vand.u32 %v4081, 4294901760
  %4083 = vmatpush1.msra.mxu0 %v4082
  %4084 = vmatprep.subr.mxu0 0.0
  %v4085 = vand.u32 %v3423, 4294901760
  %v4086 = vsub.f32 %v3423, %v4085
  %v4087 = vand.u32 %v4086, 4294901760
  %4088 = vmatpush1.msra.mxu0 %v4087
  %4089 = vmatprep.subr.mxu0 0.0
  %v4090 = vand.u32 %v3424, 4294901760
  %v4091 = vsub.f32 %v3424, %v4090
  %v4092 = vand.u32 %v4091, 4294901760
  %4093 = vmatpush1.msra.mxu0 %v4092
  %4094 = vmatprep.subr.mxu0 0.0
  %v4095 = vand.u32 %v3425, 4294901760
  %v4096 = vsub.f32 %v3425, %v4095
  %v4097 = vand.u32 %v4096, 4294901760
  %4098 = vmatpush1.msra.mxu0 %v4097
  %4099 = vmatprep.subr.mxu0 0.0
  %v4100 = vand.u32 %v3426, 4294901760
  %v4101 = vsub.f32 %v3426, %v4100
  %v4102 = vand.u32 %v4101, 4294901760
  %4103 = vmatpush1.msra.mxu0 %v4102
  %4104 = vmatprep.subr.mxu0 0.0
  %v4105 = vand.u32 %v3427, 4294901760
  %v4106 = vsub.f32 %v3427, %v4105
  %v4107 = vand.u32 %v4106, 4294901760
  %4108 = vmatpush1.msra.mxu0 %v4107
  %4109 = vmatprep.subr.mxu0 0.0
  %v4110 = vand.u32 %v3428, 4294901760
  %v4111 = vsub.f32 %v3428, %v4110
  %v4112 = vand.u32 %v4111, 4294901760
  %4113 = vmatpush1.msra.mxu0 %v4112
  %4114 = vmatprep.subr.mxu0 0.0
  %v4115 = vand.u32 %v3429, 4294901760
  %v4116 = vsub.f32 %v3429, %v4115
  %v4117 = vand.u32 %v4116, 4294901760
  %4118 = vmatpush1.msra.mxu0 %v4117
  %4119 = vmatprep.subr.mxu0 0.0
  %v4120 = vand.u32 %v3430, 4294901760
  %v4121 = vsub.f32 %v3430, %v4120
  %v4122 = vand.u32 %v4121, 4294901760
  %4123 = vmatpush1.msra.mxu0 %v4122
  %4124 = vmatprep.subr.mxu0 0.0
  %v4125 = vand.u32 %v3431, 4294901760
  %v4126 = vsub.f32 %v3431, %v4125
  %v4127 = vand.u32 %v4126, 4294901760
  %4128 = vmatpush1.msra.mxu0 %v4127
  %4129 = vmatprep.subr.mxu0 0.0
  %v4130 = vand.u32 %v3432, 4294901760
  %v4131 = vsub.f32 %v3432, %v4130
  %v4132 = vand.u32 %v4131, 4294901760
  %4133 = vmatpush1.msra.mxu0 %v4132
  %4134 = vmatprep.subr.mxu0 0.0
  %v4135 = vand.u32 %v3433, 4294901760
  %v4136 = vsub.f32 %v3433, %v4135
  %v4137 = vand.u32 %v4136, 4294901760
  %4138 = vmatpush1.msra.mxu0 %v4137
  %4139 = vmatprep.subr.mxu0 0.0
  %v4140 = vand.u32 %v3434, 4294901760
  %v4141 = vsub.f32 %v3434, %v4140
  %v4142 = vand.u32 %v4141, 4294901760
  %4143 = vmatpush1.msra.mxu0 %v4142
  %4144 = vmatprep.subr.mxu0 0.0
  %v4145 = vand.u32 %v3435, 4294901760
  %v4146 = vsub.f32 %v3435, %v4145
  %v4147 = vand.u32 %v4146, 4294901760
  %4148 = vmatpush1.msra.mxu0 %v4147
  %4149 = vmatprep.subr.mxu0 0.0
  %v4150 = vand.u32 %v3436, 4294901760
  %v4151 = vsub.f32 %v3436, %v4150
  %v4152 = vand.u32 %v4151, 4294901760
  %4153 = vmatpush1.msra.mxu0 %v4152
  %4154 = vmatprep.subr.mxu0 0.0
  %v4155 = vand.u32 %v3437, 4294901760
  %v4156 = vsub.f32 %v3437, %v4155
  %v4157 = vand.u32 %v4156, 4294901760
  %4158 = vmatpush1.msra.mxu0 %v4157
  %4159 = vmatprep.subr.mxu0 0.0
  %v4160 = vand.u32 %v3438, 4294901760
  %v4161 = vsub.f32 %v3438, %v4160
  %v4162 = vand.u32 %v4161, 4294901760
  %4163 = vmatpush1.msra.mxu0 %v4162
  %4164 = vmatprep.subr.mxu0 0.0
  %v4165 = vand.u32 %v3439, 4294901760
  %v4166 = vsub.f32 %v3439, %v4165
  %v4167 = vand.u32 %v4166, 4294901760
  %4168 = vmatpush1.msra.mxu0 %v4167
  %4169 = vmatprep.subr.mxu0 0.0
  %v4170 = vand.u32 %v3440, 4294901760
  %v4171 = vsub.f32 %v3440, %v4170
  %v4172 = vand.u32 %v4171, 4294901760
  %4173 = vmatpush1.msra.mxu0 %v4172
  %4174 = vmatprep.subr.mxu0 0.0
  %v4175 = vand.u32 %v3441, 4294901760
  %v4176 = vsub.f32 %v3441, %v4175
  %v4177 = vand.u32 %v4176, 4294901760
  %4178 = vmatpush1.msra.mxu0 %v4177
  %4179 = vmatprep.subr.mxu0 0.0
  %v4180 = vand.u32 %v3442, 4294901760
  %v4181 = vsub.f32 %v3442, %v4180
  %v4182 = vand.u32 %v4181, 4294901760
  %4183 = vmatpush1.msra.mxu0 %v4182
  %4184 = vmatprep.subr.mxu0 0.0
  %v4185 = vand.u32 %v3443, 4294901760
  %v4186 = vsub.f32 %v3443, %v4185
  %v4187 = vand.u32 %v4186, 4294901760
  %4188 = vmatpush1.msra.mxu0 %v4187
  %4189 = vmatprep.subr.mxu0 0.0
  %v4190 = vand.u32 %v3444, 4294901760
  %v4191 = vsub.f32 %v3444, %v4190
  %v4192 = vand.u32 %v4191, 4294901760
  %4193 = vmatpush1.msra.mxu0 %v4192
  %4194 = vmatprep.subr.mxu0 0.0
  %v4195 = vand.u32 %v3445, 4294901760
  %v4196 = vsub.f32 %v3445, %v4195
  %v4197 = vand.u32 %v4196, 4294901760
  %4198 = vmatpush1.msra.mxu0 %v4197
  %4199 = vmatprep.subr.mxu0 0.0
  %v4200 = vand.u32 %v3446, 4294901760
  %v4201 = vsub.f32 %v3446, %v4200
  %v4202 = vand.u32 %v4201, 4294901760
  %4203 = vmatpush1.msra.mxu0 %v4202
  %4204 = vmatprep.subr.mxu0 0.0
  %v4205 = vand.u32 %v3447, 4294901760
  %v4206 = vsub.f32 %v3447, %v4205
  %v4207 = vand.u32 %v4206, 4294901760
  %4208 = vmatpush1.msra.mxu0 %v4207
  %4209 = vmatprep.subr.mxu0 0.0
  %v4210 = vand.u32 %v3448, 4294901760
  %v4211 = vsub.f32 %v3448, %v4210
  %v4212 = vand.u32 %v4211, 4294901760
  %4213 = vmatpush1.msra.mxu0 %v4212
  %4214 = vmatprep.subr.mxu0 0.0
  %v4215 = vand.u32 %v3449, 4294901760
  %v4216 = vsub.f32 %v3449, %v4215
  %v4217 = vand.u32 %v4216, 4294901760
  %4218 = vmatpush1.msra.mxu0 %v4217
  %4219 = vmatprep.subr.mxu0 0.0
  %v4220 = vand.u32 %v3450, 4294901760
  %v4221 = vsub.f32 %v3450, %v4220
  %v4222 = vand.u32 %v4221, 4294901760
  %4223 = vmatpush1.msra.mxu0 %v4222
  %v4224 = vand.u32 %v3415, 4294901760
  %4225 = vmatprep.mubr.f32.mxu0 %v4224
  %v4226 = vand.u32 %v3413, 4294901760
  %4227 = vmatmul.mubr.f32.gmra.mrb[0].mxu0 %v4226
  %v4228 = vpop.f32.mrb[0].mxu0
  %v4229 = vadd.f32 %v4061, %v4228
  %v4230 = vpop.f32.mrb[0].mxu0
  %4231 = vdwg.mxu0
  %4232 = vmatprep.subr.mxu0 0.0
  %v4233 = vand.u32 %v3419, 4294901760
  %4234 = vmatpush1.msra.mxu0 %v4233
  %4235 = vmatprep.subr.mxu0 0.0
  %v4236 = vand.u32 %v3420, 4294901760
  %4237 = vmatpush1.msra.mxu0 %v4236
  %4238 = vmatprep.subr.mxu0 0.0
  %v4239 = vand.u32 %v3421, 4294901760
  %4240 = vmatpush1.msra.mxu0 %v4239
  %4241 = vmatprep.subr.mxu0 0.0
  %v4242 = vand.u32 %v3422, 4294901760
  %4243 = vmatpush1.msra.mxu0 %v4242
  %4244 = vmatprep.subr.mxu0 0.0
  %v4245 = vand.u32 %v3423, 4294901760
  %4246 = vmatpush1.msra.mxu0 %v4245
  %4247 = vmatprep.subr.mxu0 0.0
  %v4248 = vand.u32 %v3424, 4294901760
  %4249 = vmatpush1.msra.mxu0 %v4248
  %4250 = vmatprep.subr.mxu0 0.0
  %v4251 = vand.u32 %v3425, 4294901760
  %4252 = vmatpush1.msra.mxu0 %v4251
  %4253 = vmatprep.subr.mxu0 0.0
  %v4254 = vand.u32 %v3426, 4294901760
  %4255 = vmatpush1.msra.mxu0 %v4254
  %4256 = vmatprep.subr.mxu0 0.0
  %v4257 = vand.u32 %v3427, 4294901760
  %4258 = vmatpush1.msra.mxu0 %v4257
  %4259 = vmatprep.subr.mxu0 0.0
  %v4260 = vand.u32 %v3428, 4294901760
  %4261 = vmatpush1.msra.mxu0 %v4260
  %4262 = vmatprep.subr.mxu0 0.0
  %v4263 = vand.u32 %v3429, 4294901760
  %4264 = vmatpush1.msra.mxu0 %v4263
  %4265 = vmatprep.subr.mxu0 0.0
  %v4266 = vand.u32 %v3430, 4294901760
  %4267 = vmatpush1.msra.mxu0 %v4266
  %4268 = vmatprep.subr.mxu0 0.0
  %v4269 = vand.u32 %v3431, 4294901760
  %4270 = vmatpush1.msra.mxu0 %v4269
  %4271 = vmatprep.subr.mxu0 0.0
  %v4272 = vand.u32 %v3432, 4294901760
  %4273 = vmatpush1.msra.mxu0 %v4272
  %4274 = vmatprep.subr.mxu0 0.0
  %v4275 = vand.u32 %v3433, 4294901760
  %4276 = vmatpush1.msra.mxu0 %v4275
  %4277 = vmatprep.subr.mxu0 0.0
  %v4278 = vand.u32 %v3434, 4294901760
  %4279 = vmatpush1.msra.mxu0 %v4278
  %4280 = vmatprep.subr.mxu0 0.0
  %v4281 = vand.u32 %v3435, 4294901760
  %4282 = vmatpush1.msra.mxu0 %v4281
  %4283 = vmatprep.subr.mxu0 0.0
  %v4284 = vand.u32 %v3436, 4294901760
  %4285 = vmatpush1.msra.mxu0 %v4284
  %4286 = vmatprep.subr.mxu0 0.0
  %v4287 = vand.u32 %v3437, 4294901760
  %4288 = vmatpush1.msra.mxu0 %v4287
  %4289 = vmatprep.subr.mxu0 0.0
  %v4290 = vand.u32 %v3438, 4294901760
  %4291 = vmatpush1.msra.mxu0 %v4290
  %4292 = vmatprep.subr.mxu0 0.0
  %v4293 = vand.u32 %v3439, 4294901760
  %4294 = vmatpush1.msra.mxu0 %v4293
  %4295 = vmatprep.subr.mxu0 0.0
  %v4296 = vand.u32 %v3440, 4294901760
  %4297 = vmatpush1.msra.mxu0 %v4296
  %4298 = vmatprep.subr.mxu0 0.0
  %v4299 = vand.u32 %v3441, 4294901760
  %4300 = vmatpush1.msra.mxu0 %v4299
  %4301 = vmatprep.subr.mxu0 0.0
  %v4302 = vand.u32 %v3442, 4294901760
  %4303 = vmatpush1.msra.mxu0 %v4302
  %4304 = vmatprep.subr.mxu0 0.0
  %v4305 = vand.u32 %v3443, 4294901760
  %4306 = vmatpush1.msra.mxu0 %v4305
  %4307 = vmatprep.subr.mxu0 0.0
  %v4308 = vand.u32 %v3444, 4294901760
  %4309 = vmatpush1.msra.mxu0 %v4308
  %4310 = vmatprep.subr.mxu0 0.0
  %v4311 = vand.u32 %v3445, 4294901760
  %4312 = vmatpush1.msra.mxu0 %v4311
  %4313 = vmatprep.subr.mxu0 0.0
  %v4314 = vand.u32 %v3446, 4294901760
  %4315 = vmatpush1.msra.mxu0 %v4314
  %4316 = vmatprep.subr.mxu0 0.0
  %v4317 = vand.u32 %v3447, 4294901760
  %4318 = vmatpush1.msra.mxu0 %v4317
  %4319 = vmatprep.subr.mxu0 0.0
  %v4320 = vand.u32 %v3448, 4294901760
  %4321 = vmatpush1.msra.mxu0 %v4320
  %4322 = vmatprep.subr.mxu0 0.0
  %v4323 = vand.u32 %v3449, 4294901760
  %4324 = vmatpush1.msra.mxu0 %v4323
  %4325 = vmatprep.subr.mxu0 0.0
  %v4326 = vand.u32 %v3450, 4294901760
  %4327 = vmatpush1.msra.mxu0 %v4326
  %v4328 = vand.u32 %v3415, 4294901760
  %4329 = vmatprep.mubr.f32.mxu0 %v4328
  %v4330 = vand.u32 %v3413, 4294901760
  %4331 = vmatmul.mubr.f32.gmra.mrb[0].mxu0 %v4330
  %v4332 = vpop.f32.mrb[0].mxu0
  %v4333 = vadd.f32 %v4229, %v4332
  %v4334 = vpop.f32.mrb[0].mxu0
  %4335 = vdwg.mxu0
  %4336 = vmatprep.subr.mxu0 0.0
  %v4337 = vand.u32 %v3451, 4294901760
  %4338 = vmatpush1.msra.mxu0 %v4337
  %4339 = vmatprep.subr.mxu0 0.0
  %v4340 = vand.u32 %v3452, 4294901760
  %4341 = vmatpush1.msra.mxu0 %v4340
  %4342 = vmatprep.subr.mxu0 0.0
  %v4343 = vand.u32 %v3453, 4294901760
  %4344 = vmatpush1.msra.mxu0 %v4343
  %4345 = vmatprep.subr.mxu0 0.0
  %v4346 = vand.u32 %v3454, 4294901760
  %4347 = vmatpush1.msra.mxu0 %v4346
  %4348 = vmatprep.subr.mxu0 0.0
  %v4349 = vand.u32 %v3455, 4294901760
  %4350 = vmatpush1.msra.mxu0 %v4349
  %4351 = vmatprep.subr.mxu0 0.0
  %v4352 = vand.u32 %v3456, 4294901760
  %4353 = vmatpush1.msra.mxu0 %v4352
  %4354 = vmatprep.subr.mxu0 0.0
  %v4355 = vand.u32 %v3457, 4294901760
  %4356 = vmatpush1.msra.mxu0 %v4355
  %4357 = vmatprep.subr.mxu0 0.0
  %v4358 = vand.u32 %v3458, 4294901760
  %4359 = vmatpush1.msra.mxu0 %v4358
  %4360 = vmatprep.subr.mxu0 0.0
  %v4361 = vand.u32 %v3459, 4294901760
  %4362 = vmatpush1.msra.mxu0 %v4361
  %4363 = vmatprep.subr.mxu0 0.0
  %v4364 = vand.u32 %v3460, 4294901760
  %4365 = vmatpush1.msra.mxu0 %v4364
  %4366 = vmatprep.subr.mxu0 0.0
  %v4367 = vand.u32 %v3461, 4294901760
  %4368 = vmatpush1.msra.mxu0 %v4367
  %4369 = vmatprep.subr.mxu0 0.0
  %v4370 = vand.u32 %v3462, 4294901760
  %4371 = vmatpush1.msra.mxu0 %v4370
  %4372 = vmatprep.subr.mxu0 0.0
  %v4373 = vand.u32 %v3463, 4294901760
  %4374 = vmatpush1.msra.mxu0 %v4373
  %4375 = vmatprep.subr.mxu0 0.0
  %v4376 = vand.u32 %v3464, 4294901760
  %4377 = vmatpush1.msra.mxu0 %v4376
  %4378 = vmatprep.subr.mxu0 0.0
  %v4379 = vand.u32 %v3465, 4294901760
  %4380 = vmatpush1.msra.mxu0 %v4379
  %4381 = vmatprep.subr.mxu0 0.0
  %v4382 = vand.u32 %v3466, 4294901760
  %4383 = vmatpush1.msra.mxu0 %v4382
  %4384 = vmatprep.subr.mxu0 0.0
  %4385 = vmatpush1.msra.mxu0 0.0
  %4386 = vmatprep.subr.mxu0 0.0
  %4387 = vmatpush1.msra.mxu0 0.0
  %4388 = vmatprep.subr.mxu0 0.0
  %4389 = vmatpush1.msra.mxu0 0.0
  %4390 = vmatprep.subr.mxu0 0.0
  %4391 = vmatpush1.msra.mxu0 0.0
  %4392 = vmatprep.subr.mxu0 0.0
  %4393 = vmatpush1.msra.mxu0 0.0
  %4394 = vmatprep.subr.mxu0 0.0
  %4395 = vmatpush1.msra.mxu0 0.0
  %4396 = vmatprep.subr.mxu0 0.0
  %4397 = vmatpush1.msra.mxu0 0.0
  %4398 = vmatprep.subr.mxu0 0.0
  %4399 = vmatpush1.msra.mxu0 0.0
  %4400 = vmatprep.subr.mxu0 0.0
  %4401 = vmatpush1.msra.mxu0 0.0
  %4402 = vmatprep.subr.mxu0 0.0
  %4403 = vmatpush1.msra.mxu0 0.0
  %4404 = vmatprep.subr.mxu0 0.0
  %4405 = vmatpush1.msra.mxu0 0.0
  %4406 = vmatprep.subr.mxu0 0.0
  %4407 = vmatpush1.msra.mxu0 0.0
  %4408 = vmatprep.subr.mxu0 0.0
  %4409 = vmatpush1.msra.mxu0 0.0
  %4410 = vmatprep.subr.mxu0 0.0
  %4411 = vmatpush1.msra.mxu0 0.0
  %4412 = vmatprep.subr.mxu0 0.0
  %4413 = vmatpush1.msra.mxu0 0.0
  %4414 = vmatprep.subr.mxu0 0.0
  %4415 = vmatpush1.msra.mxu0 0.0
  %4416 = vmatprep.mubr.f32.mxu0 0.0
  %v4417 = vand.u32 %v3417, 4294901760
  %v4418 = vsub.f32 %v3417, %v4417
  %v4419 = vand.u32 %v4418, 4294901760
  %v4420 = vsub.f32 %v4418, %v4419
  %v4421 = vand.u32 %v4420, 4294901760
  %4422 = vmatmul.mubr.f32.gmra.mrb[0].mxu0 %v4421
  %v4423 = vpop.f32.mrb[0].mxu0
  %v4424 = vadd.f32 %v4333, %v4423
  %v4425 = vpop.f32.mrb[0].mxu0
  %4426 = vdwg.mxu0
  %4427 = vmatprep.subr.mxu0 0.0
  %v4428 = vand.u32 %v3451, 4294901760
  %v4429 = vsub.f32 %v3451, %v4428
  %v4430 = vand.u32 %v4429, 4294901760
  %v4431 = vsub.f32 %v4429, %v4430
  %v4432 = vand.u32 %v4431, 4294901760
  %4433 = vmatpush1.msra.mxu0 %v4432
  %4434 = vmatprep.subr.mxu0 0.0
  %v4435 = vand.u32 %v3452, 4294901760
  %v4436 = vsub.f32 %v3452, %v4435
  %v4437 = vand.u32 %v4436, 4294901760
  %v4438 = vsub.f32 %v4436, %v4437
  %v4439 = vand.u32 %v4438, 4294901760
  %4440 = vmatpush1.msra.mxu0 %v4439
  %4441 = vmatprep.subr.mxu0 0.0
  %v4442 = vand.u32 %v3453, 4294901760
  %v4443 = vsub.f32 %v3453, %v4442
  %v4444 = vand.u32 %v4443, 4294901760
  %v4445 = vsub.f32 %v4443, %v4444
  %v4446 = vand.u32 %v4445, 4294901760
  %4447 = vmatpush1.msra.mxu0 %v4446
  %4448 = vmatprep.subr.mxu0 0.0
  %v4449 = vand.u32 %v3454, 4294901760
  %v4450 = vsub.f32 %v3454, %v4449
  %v4451 = vand.u32 %v4450, 4294901760
  %v4452 = vsub.f32 %v4450, %v4451
  %v4453 = vand.u32 %v4452, 4294901760
  %4454 = vmatpush1.msra.mxu0 %v4453
  %4455 = vmatprep.subr.mxu0 0.0
  %v4456 = vand.u32 %v3455, 4294901760
  %v4457 = vsub.f32 %v3455, %v4456
  %v4458 = vand.u32 %v4457, 4294901760
  %v4459 = vsub.f32 %v4457, %v4458
  %v4460 = vand.u32 %v4459, 4294901760
  %4461 = vmatpush1.msra.mxu0 %v4460
  %4462 = vmatprep.subr.mxu0 0.0
  %v4463 = vand.u32 %v3456, 4294901760
  %v4464 = vsub.f32 %v3456, %v4463
  %v4465 = vand.u32 %v4464, 4294901760
  %v4466 = vsub.f32 %v4464, %v4465
  %v4467 = vand.u32 %v4466, 4294901760
  %4468 = vmatpush1.msra.mxu0 %v4467
  %4469 = vmatprep.subr.mxu0 0.0
  %v4470 = vand.u32 %v3457, 4294901760
  %v4471 = vsub.f32 %v3457, %v4470
  %v4472 = vand.u32 %v4471, 4294901760
  %v4473 = vsub.f32 %v4471, %v4472
  %v4474 = vand.u32 %v4473, 4294901760
  %4475 = vmatpush1.msra.mxu0 %v4474
  %4476 = vmatprep.subr.mxu0 0.0
  %v4477 = vand.u32 %v3458, 4294901760
  %v4478 = vsub.f32 %v3458, %v4477
  %v4479 = vand.u32 %v4478, 4294901760
  %v4480 = vsub.f32 %v4478, %v4479
  %v4481 = vand.u32 %v4480, 4294901760
  %4482 = vmatpush1.msra.mxu0 %v4481
  %4483 = vmatprep.subr.mxu0 0.0
  %v4484 = vand.u32 %v3459, 4294901760
  %v4485 = vsub.f32 %v3459, %v4484
  %v4486 = vand.u32 %v4485, 4294901760
  %v4487 = vsub.f32 %v4485, %v4486
  %v4488 = vand.u32 %v4487, 4294901760
  %4489 = vmatpush1.msra.mxu0 %v4488
  %4490 = vmatprep.subr.mxu0 0.0
  %v4491 = vand.u32 %v3460, 4294901760
  %v4492 = vsub.f32 %v3460, %v4491
  %v4493 = vand.u32 %v4492, 4294901760
  %v4494 = vsub.f32 %v4492, %v4493
  %v4495 = vand.u32 %v4494, 4294901760
  %4496 = vmatpush1.msra.mxu0 %v4495
  %4497 = vmatprep.subr.mxu0 0.0
  %v4498 = vand.u32 %v3461, 4294901760
  %v4499 = vsub.f32 %v3461, %v4498
  %v4500 = vand.u32 %v4499, 4294901760
  %v4501 = vsub.f32 %v4499, %v4500
  %v4502 = vand.u32 %v4501, 4294901760
  %4503 = vmatpush1.msra.mxu0 %v4502
  %4504 = vmatprep.subr.mxu0 0.0
  %v4505 = vand.u32 %v3462, 4294901760
  %v4506 = vsub.f32 %v3462, %v4505
  %v4507 = vand.u32 %v4506, 4294901760
  %v4508 = vsub.f32 %v4506, %v4507
  %v4509 = vand.u32 %v4508, 4294901760
  %4510 = vmatpush1.msra.mxu0 %v4509
  %4511 = vmatprep.subr.mxu0 0.0
  %v4512 = vand.u32 %v3463, 4294901760
  %v4513 = vsub.f32 %v3463, %v4512
  %v4514 = vand.u32 %v4513, 4294901760
  %v4515 = vsub.f32 %v4513, %v4514
  %v4516 = vand.u32 %v4515, 4294901760
  %4517 = vmatpush1.msra.mxu0 %v4516
  %4518 = vmatprep.subr.mxu0 0.0
  %v4519 = vand.u32 %v3464, 4294901760
  %v4520 = vsub.f32 %v3464, %v4519
  %v4521 = vand.u32 %v4520, 4294901760
  %v4522 = vsub.f32 %v4520, %v4521
  %v4523 = vand.u32 %v4522, 4294901760
  %4524 = vmatpush1.msra.mxu0 %v4523
  %4525 = vmatprep.subr.mxu0 0.0
  %v4526 = vand.u32 %v3465, 4294901760
  %v4527 = vsub.f32 %v3465, %v4526
  %v4528 = vand.u32 %v4527, 4294901760
  %v4529 = vsub.f32 %v4527, %v4528
  %v4530 = vand.u32 %v4529, 4294901760
  %4531 = vmatpush1.msra.mxu0 %v4530
  %4532 = vmatprep.subr.mxu0 0.0
  %v4533 = vand.u32 %v3466, 4294901760
  %v4534 = vsub.f32 %v3466, %v4533
  %v4535 = vand.u32 %v4534, 4294901760
  %v4536 = vsub.f32 %v4534, %v4535
  %v4537 = vand.u32 %v4536, 4294901760
  %4538 = vmatpush1.msra.mxu0 %v4537
  %4539 = vmatprep.subr.mxu0 0.0
  %4540 = vmatpush1.msra.mxu0 0.0
  %4541 = vmatprep.subr.mxu0 0.0
  %4542 = vmatpush1.msra.mxu0 0.0
  %4543 = vmatprep.subr.mxu0 0.0
  %4544 = vmatpush1.msra.mxu0 0.0
  %4545 = vmatprep.subr.mxu0 0.0
  %4546 = vmatpush1.msra.mxu0 0.0
  %4547 = vmatprep.subr.mxu0 0.0
  %4548 = vmatpush1.msra.mxu0 0.0
  %4549 = vmatprep.subr.mxu0 0.0
  %4550 = vmatpush1.msra.mxu0 0.0
  %4551 = vmatprep.subr.mxu0 0.0
  %4552 = vmatpush1.msra.mxu0 0.0
  %4553 = vmatprep.subr.mxu0 0.0
  %4554 = vmatpush1.msra.mxu0 0.0
  %4555 = vmatprep.subr.mxu0 0.0
  %4556 = vmatpush1.msra.mxu0 0.0
  %4557 = vmatprep.subr.mxu0 0.0
  %4558 = vmatpush1.msra.mxu0 0.0
  %4559 = vmatprep.subr.mxu0 0.0
  %4560 = vmatpush1.msra.mxu0 0.0
  %4561 = vmatprep.subr.mxu0 0.0
  %4562 = vmatpush1.msra.mxu0 0.0
  %4563 = vmatprep.subr.mxu0 0.0
  %4564 = vmatpush1.msra.mxu0 0.0
  %4565 = vmatprep.subr.mxu0 0.0
  %4566 = vmatpush1.msra.mxu0 0.0
  %4567 = vmatprep.subr.mxu0 0.0
  %4568 = vmatpush1.msra.mxu0 0.0
  %4569 = vmatprep.subr.mxu0 0.0
  %4570 = vmatpush1.msra.mxu0 0.0
  %4571 = vmatprep.mubr.f32.mxu0 0.0
  %v4572 = vand.u32 %v3417, 4294901760
  %4573 = vmatmul.mubr.f32.gmra.mrb[0].mxu0 %v4572
  %v4574 = vpop.f32.mrb[0].mxu0
  %v4575 = vadd.f32 %v4424, %v4574
  %v4576 = vpop.f32.mrb[0].mxu0
  %4577 = vdwg.mxu0
  %4578 = vmatprep.subr.mxu0 0.0
  %v4579 = vand.u32 %v3451, 4294901760
  %v4580 = vsub.f32 %v3451, %v4579
  %4581 = vmatpush1.msra.mxu0 %v4580
  %4582 = vmatprep.subr.mxu0 0.0
  %v4583 = vand.u32 %v3452, 4294901760
  %v4584 = vsub.f32 %v3452, %v4583
  %4585 = vmatpush1.msra.mxu0 %v4584
  %4586 = vmatprep.subr.mxu0 0.0
  %v4587 = vand.u32 %v3453, 4294901760
  %v4588 = vsub.f32 %v3453, %v4587
  %4589 = vmatpush1.msra.mxu0 %v4588
  %4590 = vmatprep.subr.mxu0 0.0
  %v4591 = vand.u32 %v3454, 4294901760
  %v4592 = vsub.f32 %v3454, %v4591
  %4593 = vmatpush1.msra.mxu0 %v4592
  %4594 = vmatprep.subr.mxu0 0.0
  %v4595 = vand.u32 %v3455, 4294901760
  %v4596 = vsub.f32 %v3455, %v4595
  %4597 = vmatpush1.msra.mxu0 %v4596
  %4598 = vmatprep.subr.mxu0 0.0
  %v4599 = vand.u32 %v3456, 4294901760
  %v4600 = vsub.f32 %v3456, %v4599
  %4601 = vmatpush1.msra.mxu0 %v4600
  %4602 = vmatprep.subr.mxu0 0.0
  %v4603 = vand.u32 %v3457, 4294901760
  %v4604 = vsub.f32 %v3457, %v4603
  %4605 = vmatpush1.msra.mxu0 %v4604
  %4606 = vmatprep.subr.mxu0 0.0
  %v4607 = vand.u32 %v3458, 4294901760
  %v4608 = vsub.f32 %v3458, %v4607
  %4609 = vmatpush1.msra.mxu0 %v4608
  %4610 = vmatprep.subr.mxu0 0.0
  %v4611 = vand.u32 %v3459, 4294901760
  %v4612 = vsub.f32 %v3459, %v4611
  %4613 = vmatpush1.msra.mxu0 %v4612
  %4614 = vmatprep.subr.mxu0 0.0
  %v4615 = vand.u32 %v3460, 4294901760
  %v4616 = vsub.f32 %v3460, %v4615
  %4617 = vmatpush1.msra.mxu0 %v4616
  %4618 = vmatprep.subr.mxu0 0.0
  %v4619 = vand.u32 %v3461, 4294901760
  %v4620 = vsub.f32 %v3461, %v4619
  %4621 = vmatpush1.msra.mxu0 %v4620
  %4622 = vmatprep.subr.mxu0 0.0
  %v4623 = vand.u32 %v3462, 4294901760
  %v4624 = vsub.f32 %v3462, %v4623
  %4625 = vmatpush1.msra.mxu0 %v4624
  %4626 = vmatprep.subr.mxu0 0.0
  %v4627 = vand.u32 %v3463, 4294901760
  %v4628 = vsub.f32 %v3463, %v4627
  %4629 = vmatpush1.msra.mxu0 %v4628
  %4630 = vmatprep.subr.mxu0 0.0
  %v4631 = vand.u32 %v3464, 4294901760
  %v4632 = vsub.f32 %v3464, %v4631
  %4633 = vmatpush1.msra.mxu0 %v4632
  %4634 = vmatprep.subr.mxu0 0.0
  %v4635 = vand.u32 %v3465, 4294901760
  %v4636 = vsub.f32 %v3465, %v4635
  %4637 = vmatpush1.msra.mxu0 %v4636
  %4638 = vmatprep.subr.mxu0 0.0
  %v4639 = vand.u32 %v3466, 4294901760
  %v4640 = vsub.f32 %v3466, %v4639
  %4641 = vmatpush1.msra.mxu0 %v4640
  %4642 = vmatprep.subr.mxu0 0.0
  %4643 = vmatpush1.msra.mxu0 0.0
  %4644 = vmatprep.subr.mxu0 0.0
  %4645 = vmatpush1.msra.mxu0 0.0
  %4646 = vmatprep.subr.mxu0 0.0
  %4647 = vmatpush1.msra.mxu0 0.0
  %4648 = vmatprep.subr.mxu0 0.0
  %4649 = vmatpush1.msra.mxu0 0.0
  %4650 = vmatprep.subr.mxu0 0.0
  %4651 = vmatpush1.msra.mxu0 0.0
  %4652 = vmatprep.subr.mxu0 0.0
  %4653 = vmatpush1.msra.mxu0 0.0
  %4654 = vmatprep.subr.mxu0 0.0
  %4655 = vmatpush1.msra.mxu0 0.0
  %4656 = vmatprep.subr.mxu0 0.0
  %4657 = vmatpush1.msra.mxu0 0.0
  %4658 = vmatprep.subr.mxu0 0.0
  %4659 = vmatpush1.msra.mxu0 0.0
  %4660 = vmatprep.subr.mxu0 0.0
  %4661 = vmatpush1.msra.mxu0 0.0
  %4662 = vmatprep.subr.mxu0 0.0
  %4663 = vmatpush1.msra.mxu0 0.0
  %4664 = vmatprep.subr.mxu0 0.0
  %4665 = vmatpush1.msra.mxu0 0.0
  %4666 = vmatprep.subr.mxu0 0.0
  %4667 = vmatpush1.msra.mxu0 0.0
  %4668 = vmatprep.subr.mxu0 0.0
  %4669 = vmatpush1.msra.mxu0 0.0
  %4670 = vmatprep.subr.mxu0 0.0
  %4671 = vmatpush1.msra.mxu0 0.0
  %4672 = vmatprep.subr.mxu0 0.0
  %4673 = vmatpush1.msra.mxu0 0.0
  %4674 = vmatprep.mubr.f32.mxu0 0.0
  %v4675 = vand.u32 %v3417, 4294901760
  %v4676 = vsub.f32 %v3417, %v4675
  %4677 = vmatmul.mubr.f32.gmra.mrb[0].mxu0 %v4676
  %v4678 = vpop.f32.mrb[0].mxu0
  %v4679 = vadd.f32 %v4575, %v4678
  %v4680 = vpop.f32.mrb[0].mxu0
  %4681 = vdwg.mxu0
  %4682 = vmatprep.subr.mxu0 0.0
  %v4683 = vand.u32 %v3451, 4294901760
  %4684 = vmatpush1.msra.mxu0 %v4683
  %4685 = vmatprep.subr.mxu0 0.0
  %v4686 = vand.u32 %v3452, 4294901760
  %4687 = vmatpush1.msra.mxu0 %v4686
  %4688 = vmatprep.subr.mxu0 0.0
  %v4689 = vand.u32 %v3453, 4294901760
  %4690 = vmatpush1.msra.mxu0 %v4689
  %4691 = vmatprep.subr.mxu0 0.0
  %v4692 = vand.u32 %v3454, 4294901760
  %4693 = vmatpush1.msra.mxu0 %v4692
  %4694 = vmatprep.subr.mxu0 0.0
  %v4695 = vand.u32 %v3455, 4294901760
  %4696 = vmatpush1.msra.mxu0 %v4695
  %4697 = vmatprep.subr.mxu0 0.0
  %v4698 = vand.u32 %v3456, 4294901760
  %4699 = vmatpush1.msra.mxu0 %v4698
  %4700 = vmatprep.subr.mxu0 0.0
  %v4701 = vand.u32 %v3457, 4294901760
  %4702 = vmatpush1.msra.mxu0 %v4701
  %4703 = vmatprep.subr.mxu0 0.0
  %v4704 = vand.u32 %v3458, 4294901760
  %4705 = vmatpush1.msra.mxu0 %v4704
  %4706 = vmatprep.subr.mxu0 0.0
  %v4707 = vand.u32 %v3459, 4294901760
  %4708 = vmatpush1.msra.mxu0 %v4707
  %4709 = vmatprep.subr.mxu0 0.0
  %v4710 = vand.u32 %v3460, 4294901760
  %4711 = vmatpush1.msra.mxu0 %v4710
  %4712 = vmatprep.subr.mxu0 0.0
  %v4713 = vand.u32 %v3461, 4294901760
  %4714 = vmatpush1.msra.mxu0 %v4713
  %4715 = vmatprep.subr.mxu0 0.0
  %v4716 = vand.u32 %v3462, 4294901760
  %4717 = vmatpush1.msra.mxu0 %v4716
  %4718 = vmatprep.subr.mxu0 0.0
  %v4719 = vand.u32 %v3463, 4294901760
  %4720 = vmatpush1.msra.mxu0 %v4719
  %4721 = vmatprep.subr.mxu0 0.0
  %v4722 = vand.u32 %v3464, 4294901760
  %4723 = vmatpush1.msra.mxu0 %v4722
  %4724 = vmatprep.subr.mxu0 0.0
  %v4725 = vand.u32 %v3465, 4294901760
  %4726 = vmatpush1.msra.mxu0 %v4725
  %4727 = vmatprep.subr.mxu0 0.0
  %v4728 = vand.u32 %v3466, 4294901760
  %4729 = vmatpush1.msra.mxu0 %v4728
  %4730 = vmatprep.subr.mxu0 0.0
  %4731 = vmatpush1.msra.mxu0 0.0
  %4732 = vmatprep.subr.mxu0 0.0
  %4733 = vmatpush1.msra.mxu0 0.0
  %4734 = vmatprep.subr.mxu0 0.0
  %4735 = vmatpush1.msra.mxu0 0.0
  %4736 = vmatprep.subr.mxu0 0.0
  %4737 = vmatpush1.msra.mxu0 0.0
  %4738 = vmatprep.subr.mxu0 0.0
  %4739 = vmatpush1.msra.mxu0 0.0
  %4740 = vmatprep.subr.mxu0 0.0
  %4741 = vmatpush1.msra.mxu0 0.0
  %4742 = vmatprep.subr.mxu0 0.0
  %4743 = vmatpush1.msra.mxu0 0.0
  %4744 = vmatprep.subr.mxu0 0.0
  %4745 = vmatpush1.msra.mxu0 0.0
  %4746 = vmatprep.subr.mxu0 0.0
  %4747 = vmatpush1.msra.mxu0 0.0
  %4748 = vmatprep.subr.mxu0 0.0
  %4749 = vmatpush1.msra.mxu0 0.0
  %4750 = vmatprep.subr.mxu0 0.0
  %4751 = vmatpush1.msra.mxu0 0.0
  %4752 = vmatprep.subr.mxu0 0.0
  %4753 = vmatpush1.msra.mxu0 0.0
  %4754 = vmatprep.subr.mxu0 0.0
  %4755 = vmatpush1.msra.mxu0 0.0
  %4756 = vmatprep.subr.mxu0 0.0
  %4757 = vmatpush1.msra.mxu0 0.0
  %4758 = vmatprep.subr.mxu0 0.0
  %4759 = vmatpush1.msra.mxu0 0.0
  %4760 = vmatprep.subr.mxu0 0.0
  %4761 = vmatpush1.msra.mxu0 0.0
  %4762 = vmatprep.mubr.f32.mxu0 0.0
  %v4763 = vand.u32 %v3417, 4294901760
  %v4764 = vsub.f32 %v3417, %v4763
  %v4765 = vand.u32 %v4764, 4294901760
  %4766 = vmatmul.mubr.f32.gmra.mrb[0].mxu0 %v4765
  %v4767 = vpop.f32.mrb[0].mxu0
  %v4768 = vadd.f32 %v4679, %v4767
  %v4769 = vpop.f32.mrb[0].mxu0
  %4770 = vdwg.mxu0
  %4771 = vmatprep.subr.mxu0 0.0
  %v4772 = vand.u32 %v3451, 4294901760
  %v4773 = vsub.f32 %v3451, %v4772
  %v4774 = vand.u32 %v4773, 4294901760
  %4775 = vmatpush1.msra.mxu0 %v4774
  %4776 = vmatprep.subr.mxu0 0.0
  %v4777 = vand.u32 %v3452, 4294901760
  %v4778 = vsub.f32 %v3452, %v4777
  %v4779 = vand.u32 %v4778, 4294901760
  %4780 = vmatpush1.msra.mxu0 %v4779
  %4781 = vmatprep.subr.mxu0 0.0
  %v4782 = vand.u32 %v3453, 4294901760
  %v4783 = vsub.f32 %v3453, %v4782
  %v4784 = vand.u32 %v4783, 4294901760
  %4785 = vmatpush1.msra.mxu0 %v4784
  %4786 = vmatprep.subr.mxu0 0.0
  %v4787 = vand.u32 %v3454, 4294901760
  %v4788 = vsub.f32 %v3454, %v4787
  %v4789 = vand.u32 %v4788, 4294901760
  %4790 = vmatpush1.msra.mxu0 %v4789
  %4791 = vmatprep.subr.mxu0 0.0
  %v4792 = vand.u32 %v3455, 4294901760
  %v4793 = vsub.f32 %v3455, %v4792
  %v4794 = vand.u32 %v4793, 4294901760
  %4795 = vmatpush1.msra.mxu0 %v4794
  %4796 = vmatprep.subr.mxu0 0.0
  %v4797 = vand.u32 %v3456, 4294901760
  %v4798 = vsub.f32 %v3456, %v4797
  %v4799 = vand.u32 %v4798, 4294901760
  %4800 = vmatpush1.msra.mxu0 %v4799
  %4801 = vmatprep.subr.mxu0 0.0
  %v4802 = vand.u32 %v3457, 4294901760
  %v4803 = vsub.f32 %v3457, %v4802
  %v4804 = vand.u32 %v4803, 4294901760
  %4805 = vmatpush1.msra.mxu0 %v4804
  %4806 = vmatprep.subr.mxu0 0.0
  %v4807 = vand.u32 %v3458, 4294901760
  %v4808 = vsub.f32 %v3458, %v4807
  %v4809 = vand.u32 %v4808, 4294901760
  %4810 = vmatpush1.msra.mxu0 %v4809
  %4811 = vmatprep.subr.mxu0 0.0
  %v4812 = vand.u32 %v3459, 4294901760
  %v4813 = vsub.f32 %v3459, %v4812
  %v4814 = vand.u32 %v4813, 4294901760
  %4815 = vmatpush1.msra.mxu0 %v4814
  %4816 = vmatprep.subr.mxu0 0.0
  %v4817 = vand.u32 %v3460, 4294901760
  %v4818 = vsub.f32 %v3460, %v4817
  %v4819 = vand.u32 %v4818, 4294901760
  %4820 = vmatpush1.msra.mxu0 %v4819
  %4821 = vmatprep.subr.mxu0 0.0
  %v4822 = vand.u32 %v3461, 4294901760
  %v4823 = vsub.f32 %v3461, %v4822
  %v4824 = vand.u32 %v4823, 4294901760
  %4825 = vmatpush1.msra.mxu0 %v4824
  %4826 = vmatprep.subr.mxu0 0.0
  %v4827 = vand.u32 %v3462, 4294901760
  %v4828 = vsub.f32 %v3462, %v4827
  %v4829 = vand.u32 %v4828, 4294901760
  %4830 = vmatpush1.msra.mxu0 %v4829
  %4831 = vmatprep.subr.mxu0 0.0
  %v4832 = vand.u32 %v3463, 4294901760
  %v4833 = vsub.f32 %v3463, %v4832
  %v4834 = vand.u32 %v4833, 4294901760
  %4835 = vmatpush1.msra.mxu0 %v4834
  %4836 = vmatprep.subr.mxu0 0.0
  %v4837 = vand.u32 %v3464, 4294901760
  %v4838 = vsub.f32 %v3464, %v4837
  %v4839 = vand.u32 %v4838, 4294901760
  %4840 = vmatpush1.msra.mxu0 %v4839
  %4841 = vmatprep.subr.mxu0 0.0
  %v4842 = vand.u32 %v3465, 4294901760
  %v4843 = vsub.f32 %v3465, %v4842
  %v4844 = vand.u32 %v4843, 4294901760
  %4845 = vmatpush1.msra.mxu0 %v4844
  %4846 = vmatprep.subr.mxu0 0.0
  %v4847 = vand.u32 %v3466, 4294901760
  %v4848 = vsub.f32 %v3466, %v4847
  %v4849 = vand.u32 %v4848, 4294901760
  %4850 = vmatpush1.msra.mxu0 %v4849
  %4851 = vmatprep.subr.mxu0 0.0
  %4852 = vmatpush1.msra.mxu0 0.0
  %4853 = vmatprep.subr.mxu0 0.0
  %4854 = vmatpush1.msra.mxu0 0.0
  %4855 = vmatprep.subr.mxu0 0.0
  %4856 = vmatpush1.msra.mxu0 0.0
  %4857 = vmatprep.subr.mxu0 0.0
  %4858 = vmatpush1.msra.mxu0 0.0
  %4859 = vmatprep.subr.mxu0 0.0
  %4860 = vmatpush1.msra.mxu0 0.0
  %4861 = vmatprep.subr.mxu0 0.0
  %4862 = vmatpush1.msra.mxu0 0.0
  %4863 = vmatprep.subr.mxu0 0.0
  %4864 = vmatpush1.msra.mxu0 0.0
  %4865 = vmatprep.subr.mxu0 0.0
  %4866 = vmatpush1.msra.mxu0 0.0
  %4867 = vmatprep.subr.mxu0 0.0
  %4868 = vmatpush1.msra.mxu0 0.0
  %4869 = vmatprep.subr.mxu0 0.0
  %4870 = vmatpush1.msra.mxu0 0.0
  %4871 = vmatprep.subr.mxu0 0.0
  %4872 = vmatpush1.msra.mxu0 0.0
  %4873 = vmatprep.subr.mxu0 0.0
  %4874 = vmatpush1.msra.mxu0 0.0
  %4875 = vmatprep.subr.mxu0 0.0
  %4876 = vmatpush1.msra.mxu0 0.0
  %4877 = vmatprep.subr.mxu0 0.0
  %4878 = vmatpush1.msra.mxu0 0.0
  %4879 = vmatprep.subr.mxu0 0.0
  %4880 = vmatpush1.msra.mxu0 0.0
  %4881 = vmatprep.subr.mxu0 0.0
  %4882 = vmatpush1.msra.mxu0 0.0
  %4883 = vmatprep.mubr.f32.mxu0 0.0
  %v4884 = vand.u32 %v3417, 4294901760
  %4885 = vmatmul.mubr.f32.gmra.mrb[0].mxu0 %v4884
  %v4886 = vpop.f32.mrb[0].mxu0
  %v4887 = vadd.f32 %v4768, %v4886
  %v4888 = vpop.f32.mrb[0].mxu0
  %4889 = vdwg.mxu0
  %4890 = vmatprep.subr.mxu0 0.0
  %v4891 = vand.u32 %v3451, 4294901760
  %4892 = vmatpush1.msra.mxu0 %v4891
  %4893 = vmatprep.subr.mxu0 0.0
  %v4894 = vand.u32 %v3452, 4294901760
  %4895 = vmatpush1.msra.mxu0 %v4894
  %4896 = vmatprep.subr.mxu0 0.0
  %v4897 = vand.u32 %v3453, 4294901760
  %4898 = vmatpush1.msra.mxu0 %v4897
  %4899 = vmatprep.subr.mxu0 0.0
  %v4900 = vand.u32 %v3454, 4294901760
  %4901 = vmatpush1.msra.mxu0 %v4900
  %4902 = vmatprep.subr.mxu0 0.0
  %v4903 = vand.u32 %v3455, 4294901760
  %4904 = vmatpush1.msra.mxu0 %v4903
  %4905 = vmatprep.subr.mxu0 0.0
  %v4906 = vand.u32 %v3456, 4294901760
  %4907 = vmatpush1.msra.mxu0 %v4906
  %4908 = vmatprep.subr.mxu0 0.0
  %v4909 = vand.u32 %v3457, 4294901760
  %4910 = vmatpush1.msra.mxu0 %v4909
  %4911 = vmatprep.subr.mxu0 0.0
  %v4912 = vand.u32 %v3458, 4294901760
  %4913 = vmatpush1.msra.mxu0 %v4912
  %4914 = vmatprep.subr.mxu0 0.0
  %v4915 = vand.u32 %v3459, 4294901760
  %4916 = vmatpush1.msra.mxu0 %v4915
  %4917 = vmatprep.subr.mxu0 0.0
  %v4918 = vand.u32 %v3460, 4294901760
  %4919 = vmatpush1.msra.mxu0 %v4918
  %4920 = vmatprep.subr.mxu0 0.0
  %v4921 = vand.u32 %v3461, 4294901760
  %4922 = vmatpush1.msra.mxu0 %v4921
  %4923 = vmatprep.subr.mxu0 0.0
  %v4924 = vand.u32 %v3462, 4294901760
  %4925 = vmatpush1.msra.mxu0 %v4924
  %4926 = vmatprep.subr.mxu0 0.0
  %v4927 = vand.u32 %v3463, 4294901760
  %4928 = vmatpush1.msra.mxu0 %v4927
  %4929 = vmatprep.subr.mxu0 0.0
  %v4930 = vand.u32 %v3464, 4294901760
  %4931 = vmatpush1.msra.mxu0 %v4930
  %4932 = vmatprep.subr.mxu0 0.0
  %v4933 = vand.u32 %v3465, 4294901760
  %4934 = vmatpush1.msra.mxu0 %v4933
  %4935 = vmatprep.subr.mxu0 0.0
  %v4936 = vand.u32 %v3466, 4294901760
  %4937 = vmatpush1.msra.mxu0 %v4936
  %4938 = vmatprep.subr.mxu0 0.0
  %4939 = vmatpush1.msra.mxu0 0.0
  %4940 = vmatprep.subr.mxu0 0.0
  %4941 = vmatpush1.msra.mxu0 0.0
  %4942 = vmatprep.subr.mxu0 0.0
  %4943 = vmatpush1.msra.mxu0 0.0
  %4944 = vmatprep.subr.mxu0 0.0
  %4945 = vmatpush1.msra.mxu0 0.0
  %4946 = vmatprep.subr.mxu0 0.0
  %4947 = vmatpush1.msra.mxu0 0.0
  %4948 = vmatprep.subr.mxu0 0.0
  %4949 = vmatpush1.msra.mxu0 0.0
  %4950 = vmatprep.subr.mxu0 0.0
  %4951 = vmatpush1.msra.mxu0 0.0
  %4952 = vmatprep.subr.mxu0 0.0
  %4953 = vmatpush1.msra.mxu0 0.0
  %4954 = vmatprep.subr.mxu0 0.0
  %4955 = vmatpush1.msra.mxu0 0.0
  %4956 = vmatprep.subr.mxu0 0.0
  %4957 = vmatpush1.msra.mxu0 0.0
  %4958 = vmatprep.subr.mxu0 0.0
  %4959 = vmatpush1.msra.mxu0 0.0
  %4960 = vmatprep.subr.mxu0 0.0
  %4961 = vmatpush1.msra.mxu0 0.0
  %4962 = vmatprep.subr.mxu0 0.0
  %4963 = vmatpush1.msra.mxu0 0.0
  %4964 = vmatprep.subr.mxu0 0.0
  %4965 = vmatpush1.msra.mxu0 0.0
  %4966 = vmatprep.subr.mxu0 0.0
  %4967 = vmatpush1.msra.mxu0 0.0
  %4968 = vmatprep.subr.mxu0 0.0
  %4969 = vmatpush1.msra.mxu0 0.0
  %4970 = vmatprep.mubr.f32.mxu0 0.0
  %v4971 = vand.u32 %v3417, 4294901760
  %4972 = vmatmul.mubr.f32.gmra.mrb[0].mxu0 %v4971
  %v4973 = vpop.f32.mrb[0].mxu0
  %v4974 = vadd.f32 %v4887, %v4973
  %v4975 = vpop.f32.mrb[0].mxu0
  %4976 = vdwg.mxu0
  %vm4977 = vcmp.gt.f32.partialorder %v4974, 0.0
  %v4978 = vmul.f32 %v4974, 1.442695
  %v4979 = vpow.pop %v4978
  %v4980 = vsub.f32 %v4979, 1.0
  %v4981 = vsel %vm4977, %v4974, %v4980
  %v4982 = vld [vmem:[%s9] sm:$0x1]
  %v4984 = vlaneseq
  %v4985 = vshrl.u32 %v4984, 7
  %v4986 = vsub.s32 0, %v4985
  %v4987 = vrot.slane %v4982, %v4986
  %v4989 = vmul.f32 %v4981, %v4987
  %v4990 = vsel %vm1620, %v4989, 0.0
  %4991 = vadd.xlane.f32.xlu0 %v4990
  %v4992 = vpop.xlane.xlu0 %4991
  %v4993 = vld [vmem:[#allocation2] sm:$0x1]
  %v4995 = vlaneseq
  %v4996 = vshrl.u32 %v4995, 7
  %v4997 = vsub.s32 0, %v4996
  %v4998 = vrot.slane %v4993, %v4997
  %v5000 = vadd.f32 %v4992, %v4998
  %v5001 = vsub.f32 0.0, %v5000
  %v5002 = vmul.f32 %v5001, 1.442695
  %v5003 = vpow.pop %v5002
  %v5004 = vadd.f32 %v5003, 1.0
  %v5005 = vrcp.pop %v5004
  %v5006 = vmul.f32 1.0, %v5005
  %vm5007 = vcmask 1024
  %5008 = vst.msk [vmem:[%s11] sm:$0x3] %vm5007, %v5006
  // Predicated region
  $region46: #{simple_cnn_forward.1} parent=0 // pred_check
    _
  $region47: #{simple_cnn_forward.1} parent=0 // pred_check_branch
    %5010 = sbr.rel (0) target = $region49
  $region48: #{simple_cnn_forward.1} parent=0 // pred_region
    _
  $region49: #{simple_cnn_forward.1} parent=0 // pred_fallthru
    _
  // Predicated region
  $region50: #{simple_cnn_forward.1} parent=0 // pred_check
    _
  $region51: #{simple_cnn_forward.1} parent=0 // pred_check_branch
    %5012 = sbr.rel (0) target = $region53
  $region52: #{simple_cnn_forward.1} parent=0 // pred_region
    _
  $region53: #{simple_cnn_forward.1} parent=0 // pred_fallthru
    _

</llo_original>
